<compile_context>
chip_gen: v7x
topology: tpu7x:2x2x1
jax: 0.10.0
libtpu: 0.0.40
codegen_flags: <defaults>
</compile_context>

<pallas_src>
import functools

import jax
import jax.numpy as jnp
from jax.experimental import pallas as pl
from jax.experimental.pallas import tpu as pltpu


def _span_marker_kernel(
    xs_ref, xe_ref,                          # (bm, H) each, bf16
    w1s_ref, b1s_ref, w2s_ref, b2s_ref,
    w1e_ref, b1e_ref, w2e_ref, b2e_ref,
    w1o_ref, b1o_ref, w2o_ref, b2o_ref,
    o_ref,                                   # (bm, H)
    *, hidden_size,
):
    f32 = jnp.float32
    bf16 = jnp.bfloat16
    H = hidden_size

    xs = xs_ref[...]
    xe = xe_ref[...]

    # project_start: Linear(H, I) -> ReLU -> (Dropout = id) -> Linear(I, H)
    hs = jnp.dot(xs, w1s_ref[...], preferred_element_type=f32) + b1s_ref[...]
    hs = jnp.maximum(hs, 0.0)
    hs = jnp.dot(hs.astype(bf16), w2s_ref[...], preferred_element_type=f32) + b2s_ref[...]

    # project_end
    he = jnp.dot(xe, w1e_ref[...], preferred_element_type=f32) + b1e_ref[...]
    he = jnp.maximum(he, 0.0)
    he = jnp.dot(he.astype(bf16), w2e_ref[...], preferred_element_type=f32) + b2e_ref[...]

    hs_b = hs.astype(bf16)
    he_b = he.astype(bf16)
    if H < 256:
        # Small H: a single K=2H matmul fills the 256-deep MXU on v6e/v7x; the
        # lane-axis concat of two 128-lane blocks is layout-free.
        cat = jnp.concatenate([hs_b, he_b], axis=-1)
        ho = jnp.dot(cat, w1o_ref[...], preferred_element_type=f32) + b1o_ref[...]
    else:
        # H >= 256 already saturates MXU depth; split-K over static, 8-aligned
        # row slices of W1o avoids materializing a (bm, 2H) bf16 VMEM copy
        # (extra vst/vld traffic, worst on v5e's single store slot).
        ho = (jnp.dot(hs_b, w1o_ref[:H, :], preferred_element_type=f32)
              + jnp.dot(he_b, w1o_ref[H:, :], preferred_element_type=f32)
              + b1o_ref[...])
    ho = jnp.maximum(ho, 0.0)
    out = jnp.dot(ho.astype(bf16), w2o_ref[...], preferred_element_type=f32) + b2o_ref[...]

    o_ref[...] = out.astype(o_ref.dtype)


def _round_up(x, m):
    return ((x + m - 1) // m) * m


def _vmem_capacity_bytes():
    try:
        return int(pltpu.get_tpu_info().vmem_capacity_bytes)
    except Exception:
        return 64 * 2 ** 20  # conservative (v7x-sized) fallback


def _num_tensorcores_per_chip():
    # v7x has 2 TensorCores per chip; v5e/v6e have 1.
    try:
        kind = jax.devices()[0].device_kind.lower()
    except Exception:
        return 1
    return 2 if "7" in kind else 1


def _pick_block_m(M, requested, num_cores):
    M8 = _round_up(max(M, 1), 8)
    bm = max(8, min(_round_up(requested, 8), M8))
    if num_cores > 1 and M > 64:
        # Multi-TC chip (v7x): the 'parallel' grid axis is sharded across
        # TensorCores.  Prefer >= 2 steps per core so pipeline ramp / imbalance
        # is hidden, but keep bm >= 64 so the MXU M-dim stays filled.
        per_step = max(64, _round_up(pl.cdiv(M, 2 * num_cores), 8))
        bm = min(bm, per_step)
    return bm


def span_marker_forward(start_emb, end_emb, params, *, block_m=None, out_dtype=None):
    """start_emb, end_emb: (..., H).  Returns (..., H)."""
    assert start_emb.shape == end_emb.shape
    H = start_emb.shape[-1]
    lead_shape = start_emb.shape[:-1]
    if out_dtype is None:
        # TODO(synk): emit bf16 output when downstream tolerates it — halves the
        # HBM write-back (lane width stays a multiple of 128, stores unmasked).
        out_dtype = start_emb.dtype

    (w1s, b1s, w2s, b2s,
     w1e, b1e, w2e, b2e,
     w1o, b1o, w2o, b2o) = params
    I = w1s.shape[1]

    bf16, f32 = jnp.bfloat16, jnp.float32

    xs = start_emb.reshape(-1, H).astype(bf16)
    xe = end_emb.reshape(-1, H).astype(bf16)
    M = xs.shape[0]

    vmem_cap = _vmem_capacity_bytes()
    num_cores = _num_tensorcores_per_chip()

    if block_m is None:
        # Single-TC chips with 128 MiB VMEM can afford bigger tiles (fewer
        # ~0.35us grid steps); keep 256 on v7x (64 MiB VMEM, 2 TCs).
        block_m = 512 if (num_cores == 1 and vmem_cap >= 96 * 2 ** 20) else 256
    bm = _pick_block_m(M, block_m, num_cores)
    M_pad = _round_up(M, bm)
    if M_pad != M:
        pad = ((0, M_pad - M), (0, 0))
        xs = jnp.pad(xs, pad)
        xe = jnp.pad(xe, pad)

    # TODO(synk): on v7x, fp8 weights (per-output-channel scales folded into the
    # f32 epilogue) would halve weight VMEM again and ~2x the MXU-bound path.
    w1s_, w2s_ = w1s.astype(bf16), w2s.astype(bf16)
    w1e_, w2e_ = w1e.astype(bf16), w2e.astype(bf16)
    w1o_, w2o_ = w1o.astype(bf16), w2o.astype(bf16)
    # Biases stay f32 (added to the f32 accumulators), shaped (1, dim).
    b1s_, b2s_ = b1s.reshape(1, I).astype(f32), b2s.reshape(1, H).astype(f32)
    b1e_, b2e_ = b1e.reshape(1, I).astype(f32), b2e.reshape(1, H).astype(f32)
    b1o_, b2o_ = b1o.reshape(1, I).astype(f32), b2o.reshape(1, H).astype(f32)

    weights = (w1s_, b1s_, w2s_, b2s_,
               w1e_, b1e_, w2e_, b2e_,
               w1o_, b1o_, w2o_, b2o_)

    x_spec = pl.BlockSpec((bm, H), lambda i: (i, 0))
    out_spec = pl.BlockSpec((bm, H), lambda i: (i, 0))

    # VMEM budget: single-buffered weights + double-buffered activation tiles
    # + f32 intermediates (with headroom), capped per chip generation.
    w_bytes = sum(int(a.size) * a.dtype.itemsize for a in weights)
    act_bytes = 2 * (2 * bm * H * 2 + bm * H * jnp.dtype(out_dtype).itemsize)
    interm_bytes = 4 * bm * (3 * I + 4 * H)
    need = w_bytes + act_bytes + interm_bytes
    vmem_limit = int(min(max(int(1.5 * need), 32 * 2 ** 20), int(0.85 * vmem_cap)))
    vmem_limit = max(vmem_limit, 16 * 2 ** 20)

    kernel = functools.partial(_span_marker_kernel, hidden_size=H)

    def build(single_buffer_weights):
        if single_buffer_weights:
            # Grid-invariant inputs: constant index_map, so double-buffering
            # buys nothing — single-buffer to halve their VMEM footprint.
            wspec = lambda a: pl.BlockSpec(a.shape, lambda i: (0, 0),
                                           pipeline_mode=pl.Buffered(1))
        else:
            wspec = lambda a: pl.BlockSpec(a.shape, lambda i: (0, 0))
        return pl.pallas_call(
            kernel,
            out_shape=jax.ShapeDtypeStruct((M_pad, H), out_dtype),
            grid_spec=pltpu.PrefetchScalarGridSpec(
                num_scalar_prefetch=0,
                grid=(M_pad // bm,),
                in_specs=[x_spec, x_spec] + [wspec(a) for a in weights],
                out_specs=out_spec,
            ),
            compiler_params=pltpu.CompilerParams(
                dimension_semantics=("parallel",),
                vmem_limit_bytes=vmem_limit,
            ),
        )

    try:
        out = jax.block_until_ready(build(True)(xs, xe, *weights))
    except Exception:
        # TODO(synk): fallback for toolchains without BlockSpec.pipeline_mode —
        # default double-buffering (only costs VMEM headroom at BERT scale).
        out = build(False)(xs, xe, *weights)

    if M_pad != M:
        out = out[:M]
    return out.reshape(*lead_shape, H)


def init_params(key, hidden_size, inter_size, dtype=jnp.float32):
    """Deterministic init mimicking nn.Linear uniform(-1/sqrt(fan_in), +)."""
    def linear(k, fan_in, fan_out):
        kw, kb = jax.random.split(k)
        bound = 1.0 / (fan_in ** 0.5)
        w = jax.random.uniform(kw, (fan_in, fan_out), dtype, -bound, bound)
        b = jax.random.uniform(kb, (fan_out,), dtype, -bound, bound)
        return w, b

    keys = jax.random.split(key, 6)
    w1s, b1s = linear(keys[0], hidden_size, inter_size)
    w2s, b2s = linear(keys[1], inter_size, hidden_size)
    w1e, b1e = linear(keys[2], hidden_size, inter_size)
    w2e, b2e = linear(keys[3], inter_size, hidden_size)
    w1o, b1o = linear(keys[4], 2 * hidden_size, inter_size)
    w2o, b2o = linear(keys[5], inter_size, hidden_size)
    return (w1s, b1s, w2s, b2s, w1e, b1e, w2e, b2e, w1o, b1o, w2o, b2o)


def span_marker_reference(start_emb, end_emb, params):
    (w1s, b1s, w2s, b2s,
     w1e, b1e, w2e, b2e,
     w1o, b1o, w2o, b2o) = params
    hs = jnp.maximum(start_emb @ w1s + b1s, 0.0) @ w2s + b2s
    he = jnp.maximum(end_emb @ w1e + b1e, 0.0) @ w2e + b2e
    cat = jnp.concatenate([hs, he], axis=-1)
    return jnp.maximum(cat @ w1o + b1o, 0.0) @ w2o + b2o


if __name__ == "__main__":
    # Small shapes consistent with the module: hidden=128, intermediate=4*hidden
    # (same 4x expansion ratio as 768 -> 3072), batch=2, seq=8.
    B, S, H = 2, 8, 128
    I = 4 * H

    key = jax.random.PRNGKey(0)
    k_params, k_start, k_end = jax.random.split(key, 3)

    params = init_params(k_params, H, I)
    start_emb = jax.random.normal(k_start, (B, S, H), jnp.float32)
    end_emb = jax.random.normal(k_end, (B, S, H), jnp.float32)

    # TODO(synk): Dropout(p=0.3) is training-only; kernel implements eval/inference mode.
    out = span_marker_forward(start_emb, end_emb, params)
    out = jax.block_until_ready(out)

    ref = jax.block_until_ready(span_marker_reference(start_emb, end_emb, params))
    assert out.shape == (B, S, H), out.shape
    # bf16 MXU operands with f32 accumulation -> loosened tolerance vs f32 reference.
    assert jnp.allclose(out, ref, atol=3e-2, rtol=3e-2), "mismatch vs reference"

    print("KERNEL_OK")
</pallas_src>

<mosaic_0001>
module attributes {stable_mosaic.version = 11 : i64} {
  func.func @_span_marker_kernel(%arg0: i32, %arg1: memref<16x128xbf16, #tpu.memory_space<vmem>>, %arg2: memref<16x128xbf16, #tpu.memory_space<vmem>>, %arg3: memref<128x512xbf16, #tpu.memory_space<vmem>>, %arg4: memref<1x512xf32, #tpu.memory_space<vmem>>, %arg5: memref<512x128xbf16, #tpu.memory_space<vmem>>, %arg6: memref<1x128xf32, #tpu.memory_space<vmem>>, %arg7: memref<128x512xbf16, #tpu.memory_space<vmem>>, %arg8: memref<1x512xf32, #tpu.memory_space<vmem>>, %arg9: memref<512x128xbf16, #tpu.memory_space<vmem>>, %arg10: memref<1x128xf32, #tpu.memory_space<vmem>>, %arg11: memref<256x512xbf16, #tpu.memory_space<vmem>>, %arg12: memref<1x512xf32, #tpu.memory_space<vmem>>, %arg13: memref<512x128xbf16, #tpu.memory_space<vmem>>, %arg14: memref<1x128xf32, #tpu.memory_space<vmem>>, %arg15: memref<16x128xf32, #tpu.memory_space<vmem>>) attributes {dimension_semantics = [#tpu.dimension_semantics<parallel>], iteration_bounds = array<i64: 1>, scalar_prefetch = 0 : i64, scratch_operands = 0 : i64, tpu.core_type = #tpu.core_type<tc>, window_params = [{transform_indices = @transform_0, window_bounds = array<i64: 16, 128>}, {transform_indices = @transform_1, window_bounds = array<i64: 16, 128>}, {pipeline_mode = #tpu.pipeline_mode<synchronous>, transform_indices = @transform_2, window_bounds = array<i64: 128, 512>}, {pipeline_mode = #tpu.pipeline_mode<synchronous>, transform_indices = @transform_3, window_bounds = array<i64: 1, 512>}, {pipeline_mode = #tpu.pipeline_mode<synchronous>, transform_indices = @transform_4, window_bounds = array<i64: 512, 128>}, {pipeline_mode = #tpu.pipeline_mode<synchronous>, transform_indices = @transform_5, window_bounds = array<i64: 1, 128>}, {pipeline_mode = #tpu.pipeline_mode<synchronous>, transform_indices = @transform_6, window_bounds = array<i64: 128, 512>}, {pipeline_mode = #tpu.pipeline_mode<synchronous>, transform_indices = @transform_7, window_bounds = array<i64: 1, 512>}, {pipeline_mode = #tpu.pipeline_mode<synchronous>, transform_indices = @transform_8, window_bounds = array<i64: 512, 128>}, {pipeline_mode = #tpu.pipeline_mode<synchronous>, transform_indices = @transform_9, window_bounds = array<i64: 1, 128>}, {pipeline_mode = #tpu.pipeline_mode<synchronous>, transform_indices = @transform_10, window_bounds = array<i64: 256, 512>}, {pipeline_mode = #tpu.pipeline_mode<synchronous>, transform_indices = @transform_11, window_bounds = array<i64: 1, 512>}, {pipeline_mode = #tpu.pipeline_mode<synchronous>, transform_indices = @transform_12, window_bounds = array<i64: 512, 128>}, {pipeline_mode = #tpu.pipeline_mode<synchronous>, transform_indices = @transform_13, window_bounds = array<i64: 1, 128>}, {transform_indices = @transform_14, window_bounds = array<i64: 16, 128>}]} {
    %c0 = arith.constant 0 : index
    %c0_0 = arith.constant 0 : index
    %0 = vector.load %arg1[%c0, %c0_0] : memref<16x128xbf16, #tpu.memory_space<vmem>>, vector<16x128xbf16>
    %c0_1 = arith.constant 0 : index
    %c0_2 = arith.constant 0 : index
    %1 = vector.load %arg2[%c0_1, %c0_2] : memref<16x128xbf16, #tpu.memory_space<vmem>>, vector<16x128xbf16>
    %c0_3 = arith.constant 0 : index
    %c0_4 = arith.constant 0 : index
    %2 = vector.load %arg3[%c0_3, %c0_4] : memref<128x512xbf16, #tpu.memory_space<vmem>>, vector<128x512xbf16>
    %cst = arith.constant dense<0.000000e+00> : vector<16x512xf32>
    %3 = tpu.matmul %0, %2, %cst {dimension_numbers = #tpu.dot_dimension_numbers<[1], [0], [0], [1], [0, 0, 1, 1], [], []>} : vector<16x128xbf16>, vector<128x512xbf16>, vector<16x512xf32> -> vector<16x512xf32>
    %c0_5 = arith.constant 0 : index
    %c0_6 = arith.constant 0 : index
    %4 = vector.load %arg4[%c0_5, %c0_6] : memref<1x512xf32, #tpu.memory_space<vmem>>, vector<1x512xf32>
    %5 = vector.broadcast %4 : vector<1x512xf32> to vector<16x512xf32>
    %6 = arith.addf %3, %5 : vector<16x512xf32>
    %cst_7 = arith.constant 0.000000e+00 : f32
    %7 = vector.broadcast %cst_7 : f32 to vector<16x512xf32>
    %8 = arith.maximumf %6, %7 : vector<16x512xf32>
    %9 = arith.truncf %8 : vector<16x512xf32> to vector<16x512xbf16>
    %c0_8 = arith.constant 0 : index
    %c0_9 = arith.constant 0 : index
    %10 = vector.load %arg5[%c0_8, %c0_9] : memref<512x128xbf16, #tpu.memory_space<vmem>>, vector<512x128xbf16>
    %cst_10 = arith.constant dense<0.000000e+00> : vector<16x128xf32>
    %11 = tpu.matmul %9, %10, %cst_10 {dimension_numbers = #tpu.dot_dimension_numbers<[1], [0], [0], [1], [0, 0, 1, 1], [], []>} : vector<16x512xbf16>, vector<512x128xbf16>, vector<16x128xf32> -> vector<16x128xf32>
    %c0_11 = arith.constant 0 : index
    %c0_12 = arith.constant 0 : index
    %12 = vector.load %arg6[%c0_11, %c0_12] : memref<1x128xf32, #tpu.memory_space<vmem>>, vector<1x128xf32>
    %13 = vector.broadcast %12 : vector<1x128xf32> to vector<16x128xf32>
    %14 = arith.addf %11, %13 : vector<16x128xf32>
    %c0_13 = arith.constant 0 : index
    %c0_14 = arith.constant 0 : index
    %15 = vector.load %arg7[%c0_13, %c0_14] : memref<128x512xbf16, #tpu.memory_space<vmem>>, vector<128x512xbf16>
    %cst_15 = arith.constant dense<0.000000e+00> : vector<16x512xf32>
    %16 = tpu.matmul %1, %15, %cst_15 {dimension_numbers = #tpu.dot_dimension_numbers<[1], [0], [0], [1], [0, 0, 1, 1], [], []>} : vector<16x128xbf16>, vector<128x512xbf16>, vector<16x512xf32> -> vector<16x512xf32>
    %c0_16 = arith.constant 0 : index
    %c0_17 = arith.constant 0 : index
    %17 = vector.load %arg8[%c0_16, %c0_17] : memref<1x512xf32, #tpu.memory_space<vmem>>, vector<1x512xf32>
    %18 = vector.broadcast %17 : vector<1x512xf32> to vector<16x512xf32>
    %19 = arith.addf %16, %18 : vector<16x512xf32>
    %cst_18 = arith.constant 0.000000e+00 : f32
    %20 = vector.broadcast %cst_18 : f32 to vector<16x512xf32>
    %21 = arith.maximumf %19, %20 : vector<16x512xf32>
    %22 = arith.truncf %21 : vector<16x512xf32> to vector<16x512xbf16>
    %c0_19 = arith.constant 0 : index
    %c0_20 = arith.constant 0 : index
    %23 = vector.load %arg9[%c0_19, %c0_20] : memref<512x128xbf16, #tpu.memory_space<vmem>>, vector<512x128xbf16>
    %cst_21 = arith.constant dense<0.000000e+00> : vector<16x128xf32>
    %24 = tpu.matmul %22, %23, %cst_21 {dimension_numbers = #tpu.dot_dimension_numbers<[1], [0], [0], [1], [0, 0, 1, 1], [], []>} : vector<16x512xbf16>, vector<512x128xbf16>, vector<16x128xf32> -> vector<16x128xf32>
    %c0_22 = arith.constant 0 : index
    %c0_23 = arith.constant 0 : index
    %25 = vector.load %arg10[%c0_22, %c0_23] : memref<1x128xf32, #tpu.memory_space<vmem>>, vector<1x128xf32>
    %26 = vector.broadcast %25 : vector<1x128xf32> to vector<16x128xf32>
    %27 = arith.addf %24, %26 : vector<16x128xf32>
    %28 = arith.truncf %14 : vector<16x128xf32> to vector<16x128xbf16>
    %29 = arith.truncf %27 : vector<16x128xf32> to vector<16x128xbf16>
    %30 = tpu.concatenate %28, %29 in 1 : vector<16x128xbf16>, vector<16x128xbf16> -> vector<16x256xbf16>
    %c0_24 = arith.constant 0 : index
    %c0_25 = arith.constant 0 : index
    %31 = vector.load %arg11[%c0_24, %c0_25] : memref<256x512xbf16, #tpu.memory_space<vmem>>, vector<256x512xbf16>
    %cst_26 = arith.constant dense<0.000000e+00> : vector<16x512xf32>
    %32 = tpu.matmul %30, %31, %cst_26 {dimension_numbers = #tpu.dot_dimension_numbers<[1], [0], [0], [1], [0, 0, 1, 1], [], []>} : vector<16x256xbf16>, vector<256x512xbf16>, vector<16x512xf32> -> vector<16x512xf32>
    %c0_27 = arith.constant 0 : index
    %c0_28 = arith.constant 0 : index
    %33 = vector.load %arg12[%c0_27, %c0_28] : memref<1x512xf32, #tpu.memory_space<vmem>>, vector<1x512xf32>
    %34 = vector.broadcast %33 : vector<1x512xf32> to vector<16x512xf32>
    %35 = arith.addf %32, %34 : vector<16x512xf32>
    %cst_29 = arith.constant 0.000000e+00 : f32
    %36 = vector.broadcast %cst_29 : f32 to vector<16x512xf32>
    %37 = arith.maximumf %35, %36 : vector<16x512xf32>
    %38 = arith.truncf %37 : vector<16x512xf32> to vector<16x512xbf16>
    %c0_30 = arith.constant 0 : index
    %c0_31 = arith.constant 0 : index
    %39 = vector.load %arg13[%c0_30, %c0_31] : memref<512x128xbf16, #tpu.memory_space<vmem>>, vector<512x128xbf16>
    %cst_32 = arith.constant dense<0.000000e+00> : vector<16x128xf32>
    %40 = tpu.matmul %38, %39, %cst_32 {dimension_numbers = #tpu.dot_dimension_numbers<[1], [0], [0], [1], [0, 0, 1, 1], [], []>} : vector<16x512xbf16>, vector<512x128xbf16>, vector<16x128xf32> -> vector<16x128xf32>
    %c0_33 = arith.constant 0 : index
    %c0_34 = arith.constant 0 : index
    %41 = vector.load %arg14[%c0_33, %c0_34] : memref<1x128xf32, #tpu.memory_space<vmem>>, vector<1x128xf32>
    %42 = vector.broadcast %41 : vector<1x128xf32> to vector<16x128xf32>
    %43 = arith.addf %40, %42 : vector<16x128xf32>
    %c0_35 = arith.constant 0 : index
    %c0_36 = arith.constant 0 : index
    %44 = vector.load %arg15[%c0_35, %c0_36] : memref<16x128xf32, #tpu.memory_space<vmem>>, vector<16x128xf32>
    tpu.vector_store %arg15[%c0_35, %c0_36], %43 {strides = array<i32>} : memref<16x128xf32, #tpu.memory_space<vmem>>, vector<16x128xf32>,
    return
  }
  func.func @transform_0(%arg0: i32) -> (i32, i32) {
    %c0_i32 = arith.constant 0 : i32
    %c0_i32_0 = arith.constant 0 : i32
    return %arg0, %c0_i32 : i32, i32
  }
  func.func @transform_1(%arg0: i32) -> (i32, i32) {
    %c0_i32 = arith.constant 0 : i32
    %c0_i32_0 = arith.constant 0 : i32
    return %arg0, %c0_i32 : i32, i32
  }
  func.func @transform_2(%arg0: i32) -> (i32, i32) {
    %c0_i32 = arith.constant 0 : i32
    %c0_i32_0 = arith.constant 0 : i32
    %c0_i32_1 = arith.constant 0 : i32
    return %c0_i32, %c0_i32_0 : i32, i32
  }
  func.func @transform_3(%arg0: i32) -> (i32, i32) {
    %c0_i32 = arith.constant 0 : i32
    %c0_i32_0 = arith.constant 0 : i32
    %c0_i32_1 = arith.constant 0 : i32
    return %c0_i32, %c0_i32_0 : i32, i32
  }
  func.func @transform_4(%arg0: i32) -> (i32, i32) {
    %c0_i32 = arith.constant 0 : i32
    %c0_i32_0 = arith.constant 0 : i32
    %c0_i32_1 = arith.constant 0 : i32
    return %c0_i32, %c0_i32_0 : i32, i32
  }
  func.func @transform_5(%arg0: i32) -> (i32, i32) {
    %c0_i32 = arith.constant 0 : i32
    %c0_i32_0 = arith.constant 0 : i32
    %c0_i32_1 = arith.constant 0 : i32
    return %c0_i32, %c0_i32_0 : i32, i32
  }
  func.func @transform_6(%arg0: i32) -> (i32, i32) {
    %c0_i32 = arith.constant 0 : i32
    %c0_i32_0 = arith.constant 0 : i32
    %c0_i32_1 = arith.constant 0 : i32
    return %c0_i32, %c0_i32_0 : i32, i32
  }
  func.func @transform_7(%arg0: i32) -> (i32, i32) {
    %c0_i32 = arith.constant 0 : i32
    %c0_i32_0 = arith.constant 0 : i32
    %c0_i32_1 = arith.constant 0 : i32
    return %c0_i32, %c0_i32_0 : i32, i32
  }
  func.func @transform_8(%arg0: i32) -> (i32, i32) {
    %c0_i32 = arith.constant 0 : i32
    %c0_i32_0 = arith.constant 0 : i32
    %c0_i32_1 = arith.constant 0 : i32
    return %c0_i32, %c0_i32_0 : i32, i32
  }
  func.func @transform_9(%arg0: i32) -> (i32, i32) {
    %c0_i32 = arith.constant 0 : i32
    %c0_i32_0 = arith.constant 0 : i32
    %c0_i32_1 = arith.constant 0 : i32
    return %c0_i32, %c0_i32_0 : i32, i32
  }
  func.func @transform_10(%arg0: i32) -> (i32, i32) {
    %c0_i32 = arith.constant 0 : i32
    %c0_i32_0 = arith.constant 0 : i32
    %c0_i32_1 = arith.constant 0 : i32
    return %c0_i32, %c0_i32_0 : i32, i32
  }
  func.func @transform_11(%arg0: i32) -> (i32, i32) {
    %c0_i32 = arith.constant 0 : i32
    %c0_i32_0 = arith.constant 0 : i32
    %c0_i32_1 = arith.constant 0 : i32
    return %c0_i32, %c0_i32_0 : i32, i32
  }
  func.func @transform_12(%arg0: i32) -> (i32, i32) {
    %c0_i32 = arith.constant 0 : i32
    %c0_i32_0 = arith.constant 0 : i32
    %c0_i32_1 = arith.constant 0 : i32
    return %c0_i32, %c0_i32_0 : i32, i32
  }
  func.func @transform_13(%arg0: i32) -> (i32, i32) {
    %c0_i32 = arith.constant 0 : i32
    %c0_i32_0 = arith.constant 0 : i32
    %c0_i32_1 = arith.constant 0 : i32
    return %c0_i32, %c0_i32_0 : i32, i32
  }
  func.func @transform_14(%arg0: i32) -> (i32, i32) {
    %c0_i32 = arith.constant 0 : i32
    %c0_i32_0 = arith.constant 0 : i32
    return %arg0, %c0_i32 : i32, i32
  }
}

module attributes {stable_mosaic.version = 11 : i64} {
  func.func @_span_marker_kernel(%arg0: i32, %arg1: memref<16x128xbf16, #tpu.memory_space<vmem>>, %arg2: memref<16x128xbf16, #tpu.memory_space<vmem>>, %arg3: memref<128x512xbf16, #tpu.memory_space<vmem>>, %arg4: memref<1x512xf32, #tpu.memory_space<vmem>>, %arg5: memref<512x128xbf16, #tpu.memory_space<vmem>>, %arg6: memref<1x128xf32, #tpu.memory_space<vmem>>, %arg7: memref<128x512xbf16, #tpu.memory_space<vmem>>, %arg8: memref<1x512xf32, #tpu.memory_space<vmem>>, %arg9: memref<512x128xbf16, #tpu.memory_space<vmem>>, %arg10: memref<1x128xf32, #tpu.memory_space<vmem>>, %arg11: memref<256x512xbf16, #tpu.memory_space<vmem>>, %arg12: memref<1x512xf32, #tpu.memory_space<vmem>>, %arg13: memref<512x128xbf16, #tpu.memory_space<vmem>>, %arg14: memref<1x128xf32, #tpu.memory_space<vmem>>, %arg15: memref<16x128xf32, #tpu.memory_space<vmem>>) attributes {dimension_semantics = [#tpu.dimension_semantics<parallel>], iteration_bounds = array<i64: 1>, scalar_prefetch = 0 : i64, scratch_operands = 0 : i64, tpu.core_type = #tpu.core_type<tc>, window_params = [{transform_indices = @transform_0, window_bounds = array<i64: 16, 128>}, {transform_indices = @transform_1, window_bounds = array<i64: 16, 128>}, {pipeline_mode = #tpu.pipeline_mode<synchronous>, transform_indices = @transform_2, window_bounds = array<i64: 128, 512>}, {pipeline_mode = #tpu.pipeline_mode<synchronous>, transform_indices = @transform_3, window_bounds = array<i64: 1, 512>}, {pipeline_mode = #tpu.pipeline_mode<synchronous>, transform_indices = @transform_4, window_bounds = array<i64: 512, 128>}, {pipeline_mode = #tpu.pipeline_mode<synchronous>, transform_indices = @transform_5, window_bounds = array<i64: 1, 128>}, {pipeline_mode = #tpu.pipeline_mode<synchronous>, transform_indices = @transform_6, window_bounds = array<i64: 128, 512>}, {pipeline_mode = #tpu.pipeline_mode<synchronous>, transform_indices = @transform_7, window_bounds = array<i64: 1, 512>}, {pipeline_mode = #tpu.pipeline_mode<synchronous>, transform_indices = @transform_8, window_bounds = array<i64: 512, 128>}, {pipeline_mode = #tpu.pipeline_mode<synchronous>, transform_indices = @transform_9, window_bounds = array<i64: 1, 128>}, {pipeline_mode = #tpu.pipeline_mode<synchronous>, transform_indices = @transform_10, window_bounds = array<i64: 256, 512>}, {pipeline_mode = #tpu.pipeline_mode<synchronous>, transform_indices = @transform_11, window_bounds = array<i64: 1, 512>}, {pipeline_mode = #tpu.pipeline_mode<synchronous>, transform_indices = @transform_12, window_bounds = array<i64: 512, 128>}, {pipeline_mode = #tpu.pipeline_mode<synchronous>, transform_indices = @transform_13, window_bounds = array<i64: 1, 128>}, {transform_indices = @transform_14, window_bounds = array<i64: 16, 128>}]} {
    %c0 = arith.constant 0 : index
    %c0_0 = arith.constant 0 : index
    %0 = vector.load %arg1[%c0, %c0_0] : memref<16x128xbf16, #tpu.memory_space<vmem>>, vector<16x128xbf16>
    %c0_1 = arith.constant 0 : index
    %c0_2 = arith.constant 0 : index
    %1 = vector.load %arg2[%c0_1, %c0_2] : memref<16x128xbf16, #tpu.memory_space<vmem>>, vector<16x128xbf16>
    %c0_3 = arith.constant 0 : index
    %c0_4 = arith.constant 0 : index
    %2 = vector.load %arg3[%c0_3, %c0_4] : memref<128x512xbf16, #tpu.memory_space<vmem>>, vector<128x512xbf16>
    %cst = arith.constant dense<0.000000e+00> : vector<16x512xf32>
    %3 = tpu.matmul %0, %2, %cst {dimension_numbers = #tpu.dot_dimension_numbers<[1], [0], [0], [1], [0, 0, 1, 1], [], []>} : vector<16x128xbf16>, vector<128x512xbf16>, vector<16x512xf32> -> vector<16x512xf32>
    %c0_5 = arith.constant 0 : index
    %c0_6 = arith.constant 0 : index
    %4 = vector.load %arg4[%c0_5, %c0_6] : memref<1x512xf32, #tpu.memory_space<vmem>>, vector<1x512xf32>
    %5 = vector.broadcast %4 : vector<1x512xf32> to vector<16x512xf32>
    %6 = arith.addf %3, %5 : vector<16x512xf32>
    %cst_7 = arith.constant 0.000000e+00 : f32
    %7 = vector.broadcast %cst_7 : f32 to vector<16x512xf32>
    %8 = arith.maximumf %6, %7 : vector<16x512xf32>
    %9 = arith.truncf %8 : vector<16x512xf32> to vector<16x512xbf16>
    %c0_8 = arith.constant 0 : index
    %c0_9 = arith.constant 0 : index
    %10 = vector.load %arg5[%c0_8, %c0_9] : memref<512x128xbf16, #tpu.memory_space<vmem>>, vector<512x128xbf16>
    %cst_10 = arith.constant dense<0.000000e+00> : vector<16x128xf32>
    %11 = tpu.matmul %9, %10, %cst_10 {dimension_numbers = #tpu.dot_dimension_numbers<[1], [0], [0], [1], [0, 0, 1, 1], [], []>} : vector<16x512xbf16>, vector<512x128xbf16>, vector<16x128xf32> -> vector<16x128xf32>
    %c0_11 = arith.constant 0 : index
    %c0_12 = arith.constant 0 : index
    %12 = vector.load %arg6[%c0_11, %c0_12] : memref<1x128xf32, #tpu.memory_space<vmem>>, vector<1x128xf32>
    %13 = vector.broadcast %12 : vector<1x128xf32> to vector<16x128xf32>
    %14 = arith.addf %11, %13 : vector<16x128xf32>
    %c0_13 = arith.constant 0 : index
    %c0_14 = arith.constant 0 : index
    %15 = vector.load %arg7[%c0_13, %c0_14] : memref<128x512xbf16, #tpu.memory_space<vmem>>, vector<128x512xbf16>
    %cst_15 = arith.constant dense<0.000000e+00> : vector<16x512xf32>
    %16 = tpu.matmul %1, %15, %cst_15 {dimension_numbers = #tpu.dot_dimension_numbers<[1], [0], [0], [1], [0, 0, 1, 1], [], []>} : vector<16x128xbf16>, vector<128x512xbf16>, vector<16x512xf32> -> vector<16x512xf32>
    %c0_16 = arith.constant 0 : index
    %c0_17 = arith.constant 0 : index
    %17 = vector.load %arg8[%c0_16, %c0_17] : memref<1x512xf32, #tpu.memory_space<vmem>>, vector<1x512xf32>
    %18 = vector.broadcast %17 : vector<1x512xf32> to vector<16x512xf32>
    %19 = arith.addf %16, %18 : vector<16x512xf32>
    %cst_18 = arith.constant 0.000000e+00 : f32
    %20 = vector.broadcast %cst_18 : f32 to vector<16x512xf32>
    %21 = arith.maximumf %19, %20 : vector<16x512xf32>
    %22 = arith.truncf %21 : vector<16x512xf32> to vector<16x512xbf16>
    %c0_19 = arith.constant 0 : index
    %c0_20 = arith.constant 0 : index
    %23 = vector.load %arg9[%c0_19, %c0_20] : memref<512x128xbf16, #tpu.memory_space<vmem>>, vector<512x128xbf16>
    %cst_21 = arith.constant dense<0.000000e+00> : vector<16x128xf32>
    %24 = tpu.matmul %22, %23, %cst_21 {dimension_numbers = #tpu.dot_dimension_numbers<[1], [0], [0], [1], [0, 0, 1, 1], [], []>} : vector<16x512xbf16>, vector<512x128xbf16>, vector<16x128xf32> -> vector<16x128xf32>
    %c0_22 = arith.constant 0 : index
    %c0_23 = arith.constant 0 : index
    %25 = vector.load %arg10[%c0_22, %c0_23] : memref<1x128xf32, #tpu.memory_space<vmem>>, vector<1x128xf32>
    %26 = vector.broadcast %25 : vector<1x128xf32> to vector<16x128xf32>
    %27 = arith.addf %24, %26 : vector<16x128xf32>
    %28 = arith.truncf %14 : vector<16x128xf32> to vector<16x128xbf16>
    %29 = arith.truncf %27 : vector<16x128xf32> to vector<16x128xbf16>
    %30 = tpu.concatenate %28, %29 in 1 : vector<16x128xbf16>, vector<16x128xbf16> -> vector<16x256xbf16>
    %c0_24 = arith.constant 0 : index
    %c0_25 = arith.constant 0 : index
    %31 = vector.load %arg11[%c0_24, %c0_25] : memref<256x512xbf16, #tpu.memory_space<vmem>>, vector<256x512xbf16>
    %cst_26 = arith.constant dense<0.000000e+00> : vector<16x512xf32>
    %32 = tpu.matmul %30, %31, %cst_26 {dimension_numbers = #tpu.dot_dimension_numbers<[1], [0], [0], [1], [0, 0, 1, 1], [], []>} : vector<16x256xbf16>, vector<256x512xbf16>, vector<16x512xf32> -> vector<16x512xf32>
    %c0_27 = arith.constant 0 : index
    %c0_28 = arith.constant 0 : index
    %33 = vector.load %arg12[%c0_27, %c0_28] : memref<1x512xf32, #tpu.memory_space<vmem>>, vector<1x512xf32>
    %34 = vector.broadcast %33 : vector<1x512xf32> to vector<16x512xf32>
    %35 = arith.addf %32, %34 : vector<16x512xf32>
    %cst_29 = arith.constant 0.000000e+00 : f32
    %36 = vector.broadcast %cst_29 : f32 to vector<16x512xf32>
    %37 = arith.maximumf %35, %36 : vector<16x512xf32>
    %38 = arith.truncf %37 : vector<16x512xf32> to vector<16x512xbf16>
    %c0_30 = arith.constant 0 : index
    %c0_31 = arith.constant 0 : index
    %39 = vector.load %arg13[%c0_30, %c0_31] : memref<512x128xbf16, #tpu.memory_space<vmem>>, vector<512x128xbf16>
    %cst_32 = arith.constant dense<0.000000e+00> : vector<16x128xf32>
    %40 = tpu.matmul %38, %39, %cst_32 {dimension_numbers = #tpu.dot_dimension_numbers<[1], [0], [0], [1], [0, 0, 1, 1], [], []>} : vector<16x512xbf16>, vector<512x128xbf16>, vector<16x128xf32> -> vector<16x128xf32>
    %c0_33 = arith.constant 0 : index
    %c0_34 = arith.constant 0 : index
    %41 = vector.load %arg14[%c0_33, %c0_34] : memref<1x128xf32, #tpu.memory_space<vmem>>, vector<1x128xf32>
    %42 = vector.broadcast %41 : vector<1x128xf32> to vector<16x128xf32>
    %43 = arith.addf %40, %42 : vector<16x128xf32>
    %c0_35 = arith.constant 0 : index
    %c0_36 = arith.constant 0 : index
    %44 = vector.load %arg15[%c0_35, %c0_36] : memref<16x128xf32, #tpu.memory_space<vmem>>, vector<16x128xf32>
    tpu.vector_store %arg15[%c0_35, %c0_36], %43 {strides = array<i32>} : memref<16x128xf32, #tpu.memory_space<vmem>>, vector<16x128xf32>,
    return
  }
  func.func @transform_0(%arg0: i32) -> (i32, i32) {
    %c0_i32 = arith.constant 0 : i32
    %c0_i32_0 = arith.constant 0 : i32
    return %arg0, %c0_i32 : i32, i32
  }
  func.func @transform_1(%arg0: i32) -> (i32, i32) {
    %c0_i32 = arith.constant 0 : i32
    %c0_i32_0 = arith.constant 0 : i32
    return %arg0, %c0_i32 : i32, i32
  }
  func.func @transform_2(%arg0: i32) -> (i32, i32) {
    %c0_i32 = arith.constant 0 : i32
    %c0_i32_0 = arith.constant 0 : i32
    %c0_i32_1 = arith.constant 0 : i32
    return %c0_i32, %c0_i32_0 : i32, i32
  }
  func.func @transform_3(%arg0: i32) -> (i32, i32) {
    %c0_i32 = arith.constant 0 : i32
    %c0_i32_0 = arith.constant 0 : i32
    %c0_i32_1 = arith.constant 0 : i32
    return %c0_i32, %c0_i32_0 : i32, i32
  }
  func.func @transform_4(%arg0: i32) -> (i32, i32) {
    %c0_i32 = arith.constant 0 : i32
    %c0_i32_0 = arith.constant 0 : i32
    %c0_i32_1 = arith.constant 0 : i32
    return %c0_i32, %c0_i32_0 : i32, i32
  }
  func.func @transform_5(%arg0: i32) -> (i32, i32) {
    %c0_i32 = arith.constant 0 : i32
    %c0_i32_0 = arith.constant 0 : i32
    %c0_i32_1 = arith.constant 0 : i32
    return %c0_i32, %c0_i32_0 : i32, i32
  }
  func.func @transform_6(%arg0: i32) -> (i32, i32) {
    %c0_i32 = arith.constant 0 : i32
    %c0_i32_0 = arith.constant 0 : i32
    %c0_i32_1 = arith.constant 0 : i32
    return %c0_i32, %c0_i32_0 : i32, i32
  }
  func.func @transform_7(%arg0: i32) -> (i32, i32) {
    %c0_i32 = arith.constant 0 : i32
    %c0_i32_0 = arith.constant 0 : i32
    %c0_i32_1 = arith.constant 0 : i32
    return %c0_i32, %c0_i32_0 : i32, i32
  }
  func.func @transform_8(%arg0: i32) -> (i32, i32) {
    %c0_i32 = arith.constant 0 : i32
    %c0_i32_0 = arith.constant 0 : i32
    %c0_i32_1 = arith.constant 0 : i32
    return %c0_i32, %c0_i32_0 : i32, i32
  }
  func.func @transform_9(%arg0: i32) -> (i32, i32) {
    %c0_i32 = arith.constant 0 : i32
    %c0_i32_0 = arith.constant 0 : i32
    %c0_i32_1 = arith.constant 0 : i32
    return %c0_i32, %c0_i32_0 : i32, i32
  }
  func.func @transform_10(%arg0: i32) -> (i32, i32) {
    %c0_i32 = arith.constant 0 : i32
    %c0_i32_0 = arith.constant 0 : i32
    %c0_i32_1 = arith.constant 0 : i32
    return %c0_i32, %c0_i32_0 : i32, i32
  }
  func.func @transform_11(%arg0: i32) -> (i32, i32) {
    %c0_i32 = arith.constant 0 : i32
    %c0_i32_0 = arith.constant 0 : i32
    %c0_i32_1 = arith.constant 0 : i32
    return %c0_i32, %c0_i32_0 : i32, i32
  }
  func.func @transform_12(%arg0: i32) -> (i32, i32) {
    %c0_i32 = arith.constant 0 : i32
    %c0_i32_0 = arith.constant 0 : i32
    %c0_i32_1 = arith.constant 0 : i32
    return %c0_i32, %c0_i32_0 : i32, i32
  }
  func.func @transform_13(%arg0: i32) -> (i32, i32) {
    %c0_i32 = arith.constant 0 : i32
    %c0_i32_0 = arith.constant 0 : i32
    %c0_i32_1 = arith.constant 0 : i32
    return %c0_i32, %c0_i32_0 : i32, i32
  }
  func.func @transform_14(%arg0: i32) -> (i32, i32) {
    %c0_i32 = arith.constant 0 : i32
    %c0_i32_0 = arith.constant 0 : i32
    return %arg0, %c0_i32 : i32, i32
  }
}

</mosaic_0001>

<llo_original>
// kernel: tpu_custom_call.1
$region0: #{tpu_custom_call.1}
  #allocation0 [shape = 'u32[]', space=smem, size = 0x4, offset = 0x4, fixed_abs, tag = 'smem constant byte address 0x4 - core index']
  #allocation1 [shape = 'u32[144,128]{1,0:T(1,128)}', space=vmem, size = 0x12000, scoped, tag = 'internal scratch']
  %s0 = inlined_call_operand.hbm [shape: bf16[16,128], index: 0, kind: input, shape index: {}]
  %s1 = inlined_call_operand.hbm [shape: bf16[16,128], index: 1, kind: input, shape index: {}]
  %s2 = inlined_call_operand.hbm [shape: bf16[128,512], index: 2, kind: input, shape index: {}]
  %s3 = inlined_call_operand.vmem [shape: f32[1,512], index: 3, kind: input, shape index: {}]
  %s4 = inlined_call_operand.hbm [shape: bf16[512,128], index: 4, kind: input, shape index: {}]
  %s5 = inlined_call_operand.vmem [shape: f32[1,128], index: 5, kind: input, shape index: {}]
  %s6 = inlined_call_operand.hbm [shape: bf16[128,512], index: 6, kind: input, shape index: {}]
  %s7 = inlined_call_operand.vmem [shape: f32[1,512], index: 7, kind: input, shape index: {}]
  %s8 = inlined_call_operand.hbm [shape: bf16[512,128], index: 8, kind: input, shape index: {}]
  %s9 = inlined_call_operand.vmem [shape: f32[1,128], index: 9, kind: input, shape index: {}]
  %s10 = inlined_call_operand.hbm [shape: bf16[256,512], index: 10, kind: input, shape index: {}]
  %s11 = inlined_call_operand.vmem [shape: f32[1,512], index: 11, kind: input, shape index: {}]
  %s12 = inlined_call_operand.hbm [shape: bf16[512,128], index: 12, kind: input, shape index: {}]
  %s13 = inlined_call_operand.vmem [shape: f32[1,128], index: 13, kind: input, shape index: {}]
  %s14 = inlined_call_operand.hbm [shape: f32[16,128], index: 14, kind: output, shape index: {}]
  %s15 = sld [smem:[#allocation0]]
  $region98: #{tpu_custom_call.1} parent=0
    _
  %s17 = ssub.s32 1, %s15
  %s18 = scalar_select 0, %s17, %s15
  $region1: #{tpu_custom_call.1} parent=0
    #allocation2 [shape = 'u8[4096]{0}', space=vmem, size = 0x1000, scoped, tag = 'input window, operand 0, single buffered']
    #allocation3 [shape = 's32[1]{0}', space=sflag, size = 0x4, scoped, tag = 'scoped memory for tpu_custom_call.1']
    #allocation4 [shape = 's32[1]{0}', space=sflag, size = 0x4, scoped, tag = 'scoped memory for tpu_custom_call.1']
    #allocation5 [shape = 'u8[4096]{0}', space=vmem, size = 0x1000, scoped, tag = 'input window, operand 1, single buffered']
    #allocation6 [shape = 's32[1]{0}', space=sflag, size = 0x4, scoped, tag = 'scoped memory for tpu_custom_call.1']
    #allocation7 [shape = 'u8[131072]{0}', space=vmem, size = 0x20000, scoped, tag = 'input window, operand 2, single buffered']
    #allocation8 [shape = 'u8[131072]{0}', space=vmem, size = 0x20000, scoped, tag = 'input window, operand 4, single buffered']
    #allocation9 [shape = 's32[1]{0}', space=sflag, size = 0x4, scoped, tag = 'scoped memory for tpu_custom_call.1']
    #allocation10 [shape = 'u8[131072]{0}', space=vmem, size = 0x20000, scoped, tag = 'input window, operand 6, single buffered']
    #allocation11 [shape = 'u8[131072]{0}', space=vmem, size = 0x20000, scoped, tag = 'input window, operand 8, single buffered']
    #allocation12 [shape = 's32[1]{0}', space=sflag, size = 0x4, scoped, tag = 'scoped memory for tpu_custom_call.1']
    #allocation13 [shape = 'u8[262144]{0}', space=vmem, size = 0x40000, scoped, tag = 'input window, operand 10, single buffered']
    #allocation14 [shape = 'u8[131072]{0}', space=vmem, size = 0x20000, scoped, tag = 'input window, operand 12, single buffered']
    #allocation15 [shape = 's32[1]{0}', space=sflag, size = 0x4, scoped, tag = 'scoped memory for tpu_custom_call.1']
    #allocation16 [shape = 'u8[8192]{0}', space=vmem, size = 0x2000, scoped, tag = 'output window, operand 0, single buffered']
    %19 = vsyncpa [#allocation3], 0
    %20 = vsyncpa [#allocation6], 0
    %21 = vsyncpa [#allocation9], 0
    %22 = vsyncpa [#allocation12], 0
    %23 = vsyncpa [#allocation15], 0
    %24 = vsyncpa [#allocation4], 0
    // Predicated region
    $region2: #{tpu_custom_call.1} parent=1 // pred_check
      _
    $region3: #{tpu_custom_call.1} parent=1 // pred_check_branch
      %26 = sbr.rel (0) target = $region5
    $region4: #{tpu_custom_call.1} parent=1 // pred_region
      %s28 = ssub.s32 128, 128
      %29 = vsyncadd [#allocation3], %s28
      %s30 = sshll.u32 [#allocation2], 4
      %s31 = int_to_ptr.vmem [resolvable:$true] %s30
      %36 = dma.hbm_to_vmem [thread:$0]  %s0, 128, %s31, [#allocation3], 64, 64, 4
    $region5: #{tpu_custom_call.1} parent=1 // pred_fallthru
      _
    // Predicated region
    $region6: #{tpu_custom_call.1} parent=1 // pred_check
      _
    $region7: #{tpu_custom_call.1} parent=1 // pred_check_branch
      %38 = sbr.rel (0) target = $region9
    $region8: #{tpu_custom_call.1} parent=1 // pred_region
      %s40 = ssub.s32 128, 128
      %41 = vsyncadd [#allocation6], %s40
      %s42 = sshll.u32 [#allocation5], 4
      %s43 = int_to_ptr.vmem [resolvable:$true] %s42
      %48 = dma.hbm_to_vmem [thread:$0]  %s1, 128, %s43, [#allocation6], 64, 64, 4
    $region9: #{tpu_custom_call.1} parent=1 // pred_fallthru
      _
    // Predicated region
    $region10: #{tpu_custom_call.1} parent=1 // pred_check
      _
    $region11: #{tpu_custom_call.1} parent=1 // pred_check_branch
      %50 = sbr.rel (0) target = $region13
    $region12: #{tpu_custom_call.1} parent=1 // pred_region
      %s52 = ssub.s32 4096, 4096
      %53 = vsyncadd [#allocation6], %s52
      %s54 = sshll.u32 [#allocation7], 4
      %s55 = int_to_ptr.vmem [resolvable:$true] %s54
      %60 = dma.hbm_to_vmem [thread:$0]  %s2, 4096, %s55, [#allocation6], 256, 256, 16
    $region13: #{tpu_custom_call.1} parent=1 // pred_fallthru
      _
    // Predicated region
    $region14: #{tpu_custom_call.1} parent=1 // pred_check
      _
    $region15: #{tpu_custom_call.1} parent=1 // pred_check_branch
      %62 = sbr.rel (0) target = $region17
    $region16: #{tpu_custom_call.1} parent=1 // pred_region
      _
    $region17: #{tpu_custom_call.1} parent=1 // pred_fallthru
      _
    // Predicated region
    $region18: #{tpu_custom_call.1} parent=1 // pred_check
      _
    $region19: #{tpu_custom_call.1} parent=1 // pred_check_branch
      %64 = sbr.rel (0) target = $region21
    $region20: #{tpu_custom_call.1} parent=1 // pred_region
      %s66 = ssub.s32 4096, 4096
      %67 = vsyncadd [#allocation9], %s66
      %s68 = sshll.u32 [#allocation8], 4
      %s69 = int_to_ptr.vmem [resolvable:$true] %s68
      %74 = dma.hbm_to_vmem [thread:$0]  %s4, 4096, %s69, [#allocation9], 64, 64, 4
    $region21: #{tpu_custom_call.1} parent=1 // pred_fallthru
      _
    // Predicated region
    $region22: #{tpu_custom_call.1} parent=1 // pred_check
      _
    $region23: #{tpu_custom_call.1} parent=1 // pred_check_branch
      %76 = sbr.rel (0) target = $region25
    $region24: #{tpu_custom_call.1} parent=1 // pred_region
      _
    $region25: #{tpu_custom_call.1} parent=1 // pred_fallthru
      _
    // Predicated region
    $region26: #{tpu_custom_call.1} parent=1 // pred_check
      _
    $region27: #{tpu_custom_call.1} parent=1 // pred_check_branch
      %78 = sbr.rel (0) target = $region29
    $region28: #{tpu_custom_call.1} parent=1 // pred_region
      %s80 = ssub.s32 4096, 4096
      %81 = vsyncadd [#allocation9], %s80
      %s82 = sshll.u32 [#allocation10], 4
      %s83 = int_to_ptr.vmem [resolvable:$true] %s82
      %88 = dma.hbm_to_vmem [thread:$0]  %s6, 4096, %s83, [#allocation9], 256, 256, 16
    $region29: #{tpu_custom_call.1} parent=1 // pred_fallthru
      _
    // Predicated region
    $region30: #{tpu_custom_call.1} parent=1 // pred_check
      _
    $region31: #{tpu_custom_call.1} parent=1 // pred_check_branch
      %90 = sbr.rel (0) target = $region33
    $region32: #{tpu_custom_call.1} parent=1 // pred_region
      _
    $region33: #{tpu_custom_call.1} parent=1 // pred_fallthru
      _
    // Predicated region
    $region34: #{tpu_custom_call.1} parent=1 // pred_check
      _
    $region35: #{tpu_custom_call.1} parent=1 // pred_check_branch
      %92 = sbr.rel (0) target = $region37
    $region36: #{tpu_custom_call.1} parent=1 // pred_region
      %s94 = ssub.s32 4096, 4096
      %95 = vsyncadd [#allocation12], %s94
      %s96 = sshll.u32 [#allocation11], 4
      %s97 = int_to_ptr.vmem [resolvable:$true] %s96
      %102 = dma.hbm_to_vmem [thread:$0]  %s8, 4096, %s97, [#allocation12], 64, 64, 4
    $region37: #{tpu_custom_call.1} parent=1 // pred_fallthru
      _
    // Predicated region
    $region38: #{tpu_custom_call.1} parent=1 // pred_check
      _
    $region39: #{tpu_custom_call.1} parent=1 // pred_check_branch
      %104 = sbr.rel (0) target = $region41
    $region40: #{tpu_custom_call.1} parent=1 // pred_region
      _
    $region41: #{tpu_custom_call.1} parent=1 // pred_fallthru
      _
    // Predicated region
    $region42: #{tpu_custom_call.1} parent=1 // pred_check
      _
    $region43: #{tpu_custom_call.1} parent=1 // pred_check_branch
      %106 = sbr.rel (0) target = $region45
    $region44: #{tpu_custom_call.1} parent=1 // pred_region
      %s108 = ssub.s32 8192, 8192
      %109 = vsyncadd [#allocation12], %s108
      %s110 = sshll.u32 [#allocation13], 4
      %s111 = int_to_ptr.vmem [resolvable:$true] %s110
      %116 = dma.hbm_to_vmem [thread:$0]  %s10, 8192, %s111, [#allocation12], 256, 256, 16
    $region45: #{tpu_custom_call.1} parent=1 // pred_fallthru
      _
    // Predicated region
    $region46: #{tpu_custom_call.1} parent=1 // pred_check
      _
    $region47: #{tpu_custom_call.1} parent=1 // pred_check_branch
      %118 = sbr.rel (0) target = $region49
    $region48: #{tpu_custom_call.1} parent=1 // pred_region
      _
    $region49: #{tpu_custom_call.1} parent=1 // pred_fallthru
      _
    // Predicated region
    $region50: #{tpu_custom_call.1} parent=1 // pred_check
      _
    $region51: #{tpu_custom_call.1} parent=1 // pred_check_branch
      %120 = sbr.rel (0) target = $region53
    $region52: #{tpu_custom_call.1} parent=1 // pred_region
      %s122 = ssub.s32 4096, 4096
      %123 = vsyncadd [#allocation15], %s122
      %s124 = sshll.u32 [#allocation14], 4
      %s125 = int_to_ptr.vmem [resolvable:$true] %s124
      %130 = dma.hbm_to_vmem [thread:$0]  %s12, 4096, %s125, [#allocation15], 64, 64, 4
    $region53: #{tpu_custom_call.1} parent=1 // pred_fallthru
      _
    // Predicated region
    $region54: #{tpu_custom_call.1} parent=1 // pred_check
      _
    $region55: #{tpu_custom_call.1} parent=1 // pred_check_branch
      %132 = sbr.rel (0) target = $region57
    $region56: #{tpu_custom_call.1} parent=1 // pred_region
      _
    $region57: #{tpu_custom_call.1} parent=1 // pred_fallthru
      _
    // Predicated region
    $region58: #{tpu_custom_call.1} parent=1 // pred_check
      _
    $region59: #{tpu_custom_call.1} parent=1 // pred_check_branch
      %134 = sbr.rel (0) target = $region61
    $region60: #{tpu_custom_call.1} parent=1 // pred_region
      %135 = dma.done [#allocation3], 128
    $region61: #{tpu_custom_call.1} parent=1 // pred_fallthru
      _
    // Predicated region
    $region62: #{tpu_custom_call.1} parent=1 // pred_check
      _
    $region63: #{tpu_custom_call.1} parent=1 // pred_check_branch
      %137 = sbr.rel (0) target = $region65
    $region64: #{tpu_custom_call.1} parent=1 // pred_region
      %138 = dma.done [#allocation6], 128
    $region65: #{tpu_custom_call.1} parent=1 // pred_fallthru
      _
    // Predicated region
    $region66: #{tpu_custom_call.1} parent=1 // pred_check
      _
    $region67: #{tpu_custom_call.1} parent=1 // pred_check_branch
      %140 = sbr.rel (0) target = $region69
    $region68: #{tpu_custom_call.1} parent=1 // pred_region
      %141 = dma.done [#allocation6], 4096
    $region69: #{tpu_custom_call.1} parent=1 // pred_fallthru
      _
    // Predicated region
    $region70: #{tpu_custom_call.1} parent=1 // pred_check
      _
    $region71: #{tpu_custom_call.1} parent=1 // pred_check_branch
      %143 = sbr.rel (0) target = $region73
    $region72: #{tpu_custom_call.1} parent=1 // pred_region
      %144 = dma.done [#allocation9], 4096
    $region73: #{tpu_custom_call.1} parent=1 // pred_fallthru
      _
    // Predicated region
    $region74: #{tpu_custom_call.1} parent=1 // pred_check
      _
    $region75: #{tpu_custom_call.1} parent=1 // pred_check_branch
      %146 = sbr.rel (0) target = $region77
    $region76: #{tpu_custom_call.1} parent=1 // pred_region
      %147 = dma.done [#allocation9], 4096
    $region77: #{tpu_custom_call.1} parent=1 // pred_fallthru
      _
    // Predicated region
    $region78: #{tpu_custom_call.1} parent=1 // pred_check
      _
    $region79: #{tpu_custom_call.1} parent=1 // pred_check_branch
      %149 = sbr.rel (0) target = $region81
    $region80: #{tpu_custom_call.1} parent=1 // pred_region
      %150 = dma.done [#allocation12], 4096
    $region81: #{tpu_custom_call.1} parent=1 // pred_fallthru
      _
    // Predicated region
    $region82: #{tpu_custom_call.1} parent=1 // pred_check
      _
    $region83: #{tpu_custom_call.1} parent=1 // pred_check_branch
      %152 = sbr.rel (0) target = $region85
    $region84: #{tpu_custom_call.1} parent=1 // pred_region
      %153 = dma.done [#allocation12], 8192
    $region85: #{tpu_custom_call.1} parent=1 // pred_fallthru
      _
    // Predicated region
    $region86: #{tpu_custom_call.1} parent=1 // pred_check
      _
    $region87: #{tpu_custom_call.1} parent=1 // pred_check_branch
      %155 = sbr.rel (0) target = $region89
    $region88: #{tpu_custom_call.1} parent=1 // pred_region
      %156 = dma.done [#allocation15], 4096
    $region89: #{tpu_custom_call.1} parent=1 // pred_fallthru
      _
    %v158 = vld [vmem:[#allocation2] sm:$0xf]
    %v159 = vld [vmem:[#allocation2 + $0x4] sm:$0xf]
    %v160 = vld [vmem:[#allocation5] sm:$0xf]
    %v161 = vld [vmem:[#allocation5 + $0x4] sm:$0xf]
    %v162 = vld [vmem:[#allocation7] sm:$0xff]
    %v163 = vld [vmem:[#allocation7 + $0x8] sm:$0xff]
    %v164 = vld [vmem:[#allocation7 + $0x10] sm:$0xff]
    %v165 = vld [vmem:[#allocation7 + $0x18] sm:$0xff]
    %v166 = vld [vmem:[#allocation7 + $0x20] sm:$0xff]
    %v167 = vld [vmem:[#allocation7 + $0x28] sm:$0xff]
    %v168 = vld [vmem:[#allocation7 + $0x30] sm:$0xff]
    %v169 = vld [vmem:[#allocation7 + $0x38] sm:$0xff]
    %v170 = vld [vmem:[#allocation7 + $0x40] sm:$0xff]
    %v171 = vld [vmem:[#allocation7 + $0x48] sm:$0xff]
    %v172 = vld [vmem:[#allocation7 + $0x50] sm:$0xff]
    %v173 = vld [vmem:[#allocation7 + $0x58] sm:$0xff]
    %v174 = vld [vmem:[#allocation7 + $0x60] sm:$0xff]
    %v175 = vld [vmem:[#allocation7 + $0x68] sm:$0xff]
    %v176 = vld [vmem:[#allocation7 + $0x70] sm:$0xff]
    %v177 = vld [vmem:[#allocation7 + $0x78] sm:$0xff]
    %v178 = vld [vmem:[#allocation7 + $0x80] sm:$0xff]
    %v179 = vld [vmem:[#allocation7 + $0x88] sm:$0xff]
    %v180 = vld [vmem:[#allocation7 + $0x90] sm:$0xff]
    %v181 = vld [vmem:[#allocation7 + $0x98] sm:$0xff]
    %v182 = vld [vmem:[#allocation7 + $0xa0] sm:$0xff]
    %v183 = vld [vmem:[#allocation7 + $0xa8] sm:$0xff]
    %v184 = vld [vmem:[#allocation7 + $0xb0] sm:$0xff]
    %v185 = vld [vmem:[#allocation7 + $0xb8] sm:$0xff]
    %v186 = vld [vmem:[#allocation7 + $0xc0] sm:$0xff]
    %v187 = vld [vmem:[#allocation7 + $0xc8] sm:$0xff]
    %v188 = vld [vmem:[#allocation7 + $0xd0] sm:$0xff]
    %v189 = vld [vmem:[#allocation7 + $0xd8] sm:$0xff]
    %v190 = vld [vmem:[#allocation7 + $0xe0] sm:$0xff]
    %v191 = vld [vmem:[#allocation7 + $0xe8] sm:$0xff]
    %v192 = vld [vmem:[#allocation7 + $0xf0] sm:$0xff]
    %v193 = vld [vmem:[#allocation7 + $0xf8] sm:$0xff]
    %v194 = vld [vmem:[%s3] sm:$0xf]
    %v196 = vlaneseq
    %v197 = vshrl.u32 %v196, 7
    %v198 = vsub.s32 0, %v197
    %v199 = vrot.slane %v194, %v198
    %v200 = vlaneseq
    %v201 = vshrl.u32 %v200, 7
    %v202 = vsub.s32 1, %v201
    %v203 = vrot.slane %v194, %v202
    %v204 = vlaneseq
    %v205 = vshrl.u32 %v204, 7
    %v206 = vsub.s32 2, %v205
    %v207 = vrot.slane %v194, %v206
    %v208 = vlaneseq
    %v209 = vshrl.u32 %v208, 7
    %v210 = vsub.s32 3, %v209
    %v211 = vrot.slane %v194, %v210
    %v218 = vunpack.c.l.b16 %v158
    %v219 = vunpack.c.l.b16 %v159
    %v220 = vpack.c.b16 %v219, %v218
    %v254 = vunpack.c.l.b16 %v162
    %v255 = vunpack.c.h.b16 %v162
    %v256 = vunpack.c.l.b16 %v163
    %v257 = vunpack.c.h.b16 %v163
    %v258 = vunpack.c.l.b16 %v164
    %v259 = vunpack.c.h.b16 %v164
    %v260 = vunpack.c.l.b16 %v165
    %v261 = vunpack.c.h.b16 %v165
    %v262 = vunpack.c.l.b16 %v166
    %v263 = vunpack.c.h.b16 %v166
    %v264 = vunpack.c.l.b16 %v167
    %v265 = vunpack.c.h.b16 %v167
    %v266 = vunpack.c.l.b16 %v168
    %v267 = vunpack.c.h.b16 %v168
    %v268 = vunpack.c.l.b16 %v169
    %v269 = vunpack.c.h.b16 %v169
    %v270 = vunpack.c.l.b16 %v170
    %v271 = vunpack.c.h.b16 %v170
    %v272 = vunpack.c.l.b16 %v171
    %v273 = vunpack.c.h.b16 %v171
    %v274 = vunpack.c.l.b16 %v172
    %v275 = vunpack.c.h.b16 %v172
    %v276 = vunpack.c.l.b16 %v173
    %v277 = vunpack.c.h.b16 %v173
    %v278 = vunpack.c.l.b16 %v174
    %v279 = vunpack.c.h.b16 %v174
    %v280 = vunpack.c.l.b16 %v175
    %v281 = vunpack.c.h.b16 %v175
    %v282 = vunpack.c.l.b16 %v176
    %v283 = vunpack.c.h.b16 %v176
    %v284 = vunpack.c.l.b16 %v177
    %v285 = vunpack.c.h.b16 %v177
    %v286 = vunpack.c.l.b16 %v178
    %v287 = vunpack.c.h.b16 %v178
    %v288 = vunpack.c.l.b16 %v179
    %v289 = vunpack.c.h.b16 %v179
    %v290 = vunpack.c.l.b16 %v180
    %v291 = vunpack.c.h.b16 %v180
    %v292 = vunpack.c.l.b16 %v181
    %v293 = vunpack.c.h.b16 %v181
    %v294 = vunpack.c.l.b16 %v182
    %v295 = vunpack.c.h.b16 %v182
    %v296 = vunpack.c.l.b16 %v183
    %v297 = vunpack.c.h.b16 %v183
    %v298 = vunpack.c.l.b16 %v184
    %v299 = vunpack.c.h.b16 %v184
    %v300 = vunpack.c.l.b16 %v185
    %v301 = vunpack.c.h.b16 %v185
    %v302 = vunpack.c.l.b16 %v186
    %v303 = vunpack.c.h.b16 %v186
    %v304 = vunpack.c.l.b16 %v187
    %v305 = vunpack.c.h.b16 %v187
    %v306 = vunpack.c.l.b16 %v188
    %v307 = vunpack.c.h.b16 %v188
    %v308 = vunpack.c.l.b16 %v189
    %v309 = vunpack.c.h.b16 %v189
    %v310 = vunpack.c.l.b16 %v190
    %v311 = vunpack.c.h.b16 %v190
    %v312 = vunpack.c.l.b16 %v191
    %v313 = vunpack.c.h.b16 %v191
    %v314 = vunpack.c.l.b16 %v192
    %v315 = vunpack.c.h.b16 %v192
    %v316 = vunpack.c.l.b16 %v193
    %v317 = vunpack.c.h.b16 %v193
    %v318 = vpack.c.b16 %v258, %v254
    %v319 = vpack.c.b16 %v259, %v255
    %v320 = vpack.c.b16 %v260, %v256
    %v321 = vpack.c.b16 %v261, %v257
    %v322 = vpack.c.b16 %v266, %v262
    %v323 = vpack.c.b16 %v267, %v263
    %v324 = vpack.c.b16 %v268, %v264
    %v325 = vpack.c.b16 %v269, %v265
    %v326 = vpack.c.b16 %v274, %v270
    %v327 = vpack.c.b16 %v275, %v271
    %v328 = vpack.c.b16 %v276, %v272
    %v329 = vpack.c.b16 %v277, %v273
    %v330 = vpack.c.b16 %v282, %v278
    %v331 = vpack.c.b16 %v283, %v279
    %v332 = vpack.c.b16 %v284, %v280
    %v333 = vpack.c.b16 %v285, %v281
    %v334 = vpack.c.b16 %v290, %v286
    %v335 = vpack.c.b16 %v291, %v287
    %v336 = vpack.c.b16 %v292, %v288
    %v337 = vpack.c.b16 %v293, %v289
    %v338 = vpack.c.b16 %v298, %v294
    %v339 = vpack.c.b16 %v299, %v295
    %v340 = vpack.c.b16 %v300, %v296
    %v341 = vpack.c.b16 %v301, %v297
    %v342 = vpack.c.b16 %v306, %v302
    %v343 = vpack.c.b16 %v307, %v303
    %v344 = vpack.c.b16 %v308, %v304
    %v345 = vpack.c.b16 %v309, %v305
    %v346 = vpack.c.b16 %v314, %v310
    %v347 = vpack.c.b16 %v315, %v311
    %v348 = vpack.c.b16 %v316, %v312
    %v349 = vpack.c.b16 %v317, %v313
    %382 = vmatprep.subr.bf16.mxu0 %v319
    %383 = vmatpush1.bf16.msra.mxu0 %v318
    %384 = vmatprep.subr.bf16.mxu0 %v323
    %385 = vmatpush1.bf16.msra.mxu0 %v322
    %386 = vmatprep.subr.bf16.mxu0 %v327
    %387 = vmatpush1.bf16.msra.mxu0 %v326
    %388 = vmatprep.subr.bf16.mxu0 %v331
    %389 = vmatpush1.bf16.msra.mxu0 %v330
    %390 = vmatprep.subr.bf16.mxu0 %v335
    %391 = vmatpush1.bf16.msra.mxu0 %v334
    %392 = vmatprep.subr.bf16.mxu0 %v339
    %393 = vmatpush1.bf16.msra.mxu0 %v338
    %394 = vmatprep.subr.bf16.mxu0 %v343
    %395 = vmatpush1.bf16.msra.mxu0 %v342
    %396 = vmatprep.subr.bf16.mxu0 %v347
    %397 = vmatpush1.bf16.msra.mxu0 %v346
    %398 = vmatprep.subr.bf16.mxu0 0
    %399 = vmatpush1.bf16.msra.mxu0 0
    %400 = vmatprep.subr.bf16.mxu0 0
    %401 = vmatpush1.bf16.msra.mxu0 0
    %402 = vmatprep.subr.bf16.mxu0 0
    %403 = vmatpush1.bf16.msra.mxu0 0
    %404 = vmatprep.subr.bf16.mxu0 0
    %405 = vmatpush1.bf16.msra.mxu0 0
    %406 = vmatprep.subr.bf16.mxu0 0
    %407 = vmatpush1.bf16.msra.mxu0 0
    %408 = vmatprep.subr.bf16.mxu0 0
    %409 = vmatpush1.bf16.msra.mxu0 0
    %410 = vmatprep.subr.bf16.mxu0 0
    %411 = vmatpush1.bf16.msra.mxu0 0
    %412 = vmatprep.subr.bf16.mxu0 0
    %413 = vmatpush1.bf16.msra.mxu0 0
    %414 = vmatprep.mubr.bf16.mxu0 0
    %415 = vmatmul.mubr.bf16.gmra.mrb[0].mxu0 %v220
    %v416 = vpop.f32.mrb[0].mxu0
    %v417 = vadd.f32 %v199, %v416
    %v418 = vpop.f32.mrb[0].mxu0
    %v419 = vadd.f32 %v203, %v418
    %v420 = vpop.f32.mrb[0].mxu0
    %v421 = vadd.f32 %v199, %v420
    %v422 = vpop.f32.mrb[0].mxu0
    %v423 = vadd.f32 %v203, %v422
    %424 = vdwg.mxu0
    %425 = vmatprep.subr.bf16.mxu0 %v321
    %426 = vmatpush1.bf16.msra.mxu0 %v320
    %427 = vmatprep.subr.bf16.mxu0 %v325
    %428 = vmatpush1.bf16.msra.mxu0 %v324
    %429 = vmatprep.subr.bf16.mxu0 %v329
    %430 = vmatpush1.bf16.msra.mxu0 %v328
    %431 = vmatprep.subr.bf16.mxu0 %v333
    %432 = vmatpush1.bf16.msra.mxu0 %v332
    %433 = vmatprep.subr.bf16.mxu0 %v337
    %434 = vmatpush1.bf16.msra.mxu0 %v336
    %435 = vmatprep.subr.bf16.mxu0 %v341
    %436 = vmatpush1.bf16.msra.mxu0 %v340
    %437 = vmatprep.subr.bf16.mxu0 %v345
    %438 = vmatpush1.bf16.msra.mxu0 %v344
    %439 = vmatprep.subr.bf16.mxu0 %v349
    %440 = vmatpush1.bf16.msra.mxu0 %v348
    %441 = vmatprep.subr.bf16.mxu0 0
    %442 = vmatpush1.bf16.msra.mxu0 0
    %443 = vmatprep.subr.bf16.mxu0 0
    %444 = vmatpush1.bf16.msra.mxu0 0
    %445 = vmatprep.subr.bf16.mxu0 0
    %446 = vmatpush1.bf16.msra.mxu0 0
    %447 = vmatprep.subr.bf16.mxu0 0
    %448 = vmatpush1.bf16.msra.mxu0 0
    %449 = vmatprep.subr.bf16.mxu0 0
    %450 = vmatpush1.bf16.msra.mxu0 0
    %451 = vmatprep.subr.bf16.mxu0 0
    %452 = vmatpush1.bf16.msra.mxu0 0
    %453 = vmatprep.subr.bf16.mxu0 0
    %454 = vmatpush1.bf16.msra.mxu0 0
    %455 = vmatprep.subr.bf16.mxu0 0
    %456 = vmatpush1.bf16.msra.mxu0 0
    %457 = vmatprep.mubr.bf16.mxu0 0
    %458 = vmatmul.mubr.bf16.gmra.mrb[0].mxu0 %v220
    %v459 = vpop.f32.mrb[0].mxu0
    %v460 = vadd.f32 %v207, %v459
    %v461 = vpop.f32.mrb[0].mxu0
    %v462 = vadd.f32 %v211, %v461
    %v463 = vpop.f32.mrb[0].mxu0
    %v464 = vadd.f32 %v207, %v463
    %v465 = vpop.f32.mrb[0].mxu0
    %v466 = vadd.f32 %v211, %v465
    %467 = vdwg.mxu0
    %v468 = vmax.f32 %v417, 0.0
    %v469 = vmax.f32 %v419, 0.0
    %v470 = vmax.f32 %v460, 0.0
    %v471 = vmax.f32 %v462, 0.0
    %v472 = vmax.f32 %v421, 0.0
    %v473 = vmax.f32 %v423, 0.0
    %v474 = vmax.f32 %v464, 0.0
    %v475 = vmax.f32 %v466, 0.0
    %v476 = vpack.c.bf16 %v472, %v468
    %v477 = vpack.c.bf16 %v473, %v469
    %v478 = vpack.c.bf16 %v474, %v470
    %v479 = vpack.c.bf16 %v475, %v471
    %v480 = vld [vmem:[#allocation8] sm:$0xf]
    %v481 = vld [vmem:[#allocation8 + $0x4] sm:$0xf]
    %v482 = vld [vmem:[#allocation8 + $0x8] sm:$0xf]
    %v483 = vld [vmem:[#allocation8 + $0xc] sm:$0xf]
    %v484 = vld [vmem:[#allocation8 + $0x10] sm:$0xf]
    %v485 = vld [vmem:[#allocation8 + $0x14] sm:$0xf]
    %v486 = vld [vmem:[#allocation8 + $0x18] sm:$0xf]
    %v487 = vld [vmem:[#allocation8 + $0x1c] sm:$0xf]
    %v488 = vld [vmem:[#allocation8 + $0x20] sm:$0xf]
    %v489 = vld [vmem:[#allocation8 + $0x24] sm:$0xf]
    %v490 = vld [vmem:[#allocation8 + $0x28] sm:$0xf]
    %v491 = vld [vmem:[#allocation8 + $0x2c] sm:$0xf]
    %v492 = vld [vmem:[#allocation8 + $0x30] sm:$0xf]
    %v493 = vld [vmem:[#allocation8 + $0x34] sm:$0xf]
    %v494 = vld [vmem:[#allocation8 + $0x38] sm:$0xf]
    %v495 = vld [vmem:[#allocation8 + $0x3c] sm:$0xf]
    %v496 = vld [vmem:[#allocation8 + $0x40] sm:$0xf]
    %v497 = vld [vmem:[#allocation8 + $0x44] sm:$0xf]
    %v498 = vld [vmem:[#allocation8 + $0x48] sm:$0xf]
    %v499 = vld [vmem:[#allocation8 + $0x4c] sm:$0xf]
    %v500 = vld [vmem:[#allocation8 + $0x50] sm:$0xf]
    %v501 = vld [vmem:[#allocation8 + $0x54] sm:$0xf]
    %v502 = vld [vmem:[#allocation8 + $0x58] sm:$0xf]
    %v503 = vld [vmem:[#allocation8 + $0x5c] sm:$0xf]
    %v504 = vld [vmem:[#allocation8 + $0x60] sm:$0xf]
    %v505 = vld [vmem:[#allocation8 + $0x64] sm:$0xf]
    %v506 = vld [vmem:[#allocation8 + $0x68] sm:$0xf]
    %v507 = vld [vmem:[#allocation8 + $0x6c] sm:$0xf]
    %v508 = vld [vmem:[#allocation8 + $0x70] sm:$0xf]
    %v509 = vld [vmem:[#allocation8 + $0x74] sm:$0xf]
    %v510 = vld [vmem:[#allocation8 + $0x78] sm:$0xf]
    %v511 = vld [vmem:[#allocation8 + $0x7c] sm:$0xf]
    %v512 = vld [vmem:[#allocation8 + $0x80] sm:$0xf]
    %v513 = vld [vmem:[#allocation8 + $0x84] sm:$0xf]
    %v514 = vld [vmem:[#allocation8 + $0x88] sm:$0xf]
    %v515 = vld [vmem:[#allocation8 + $0x8c] sm:$0xf]
    %v516 = vld [vmem:[#allocation8 + $0x90] sm:$0xf]
    %v517 = vld [vmem:[#allocation8 + $0x94] sm:$0xf]
    %v518 = vld [vmem:[#allocation8 + $0x98] sm:$0xf]
    %v519 = vld [vmem:[#allocation8 + $0x9c] sm:$0xf]
    %v520 = vld [vmem:[#allocation8 + $0xa0] sm:$0xf]
    %v521 = vld [vmem:[#allocation8 + $0xa4] sm:$0xf]
    %v522 = vld [vmem:[#allocation8 + $0xa8] sm:$0xf]
    %v523 = vld [vmem:[#allocation8 + $0xac] sm:$0xf]
    %v524 = vld [vmem:[#allocation8 + $0xb0] sm:$0xf]
    %v525 = vld [vmem:[#allocation8 + $0xb4] sm:$0xf]
    %v526 = vld [vmem:[#allocation8 + $0xb8] sm:$0xf]
    %v527 = vld [vmem:[#allocation8 + $0xbc] sm:$0xf]
    %v528 = vld [vmem:[#allocation8 + $0xc0] sm:$0xf]
    %v529 = vld [vmem:[#allocation8 + $0xc4] sm:$0xf]
    %v530 = vld [vmem:[#allocation8 + $0xc8] sm:$0xf]
    %v531 = vld [vmem:[#allocation8 + $0xcc] sm:$0xf]
    %v532 = vld [vmem:[#allocation8 + $0xd0] sm:$0xf]
    %v533 = vld [vmem:[#allocation8 + $0xd4] sm:$0xf]
    %v534 = vld [vmem:[#allocation8 + $0xd8] sm:$0xf]
    %v535 = vld [vmem:[#allocation8 + $0xdc] sm:$0xf]
    %v536 = vld [vmem:[#allocation8 + $0xe0] sm:$0xf]
    %v537 = vld [vmem:[#allocation8 + $0xe4] sm:$0xf]
    %v538 = vld [vmem:[#allocation8 + $0xe8] sm:$0xf]
    %v539 = vld [vmem:[#allocation8 + $0xec] sm:$0xf]
    %v540 = vld [vmem:[#allocation8 + $0xf0] sm:$0xf]
    %v541 = vld [vmem:[#allocation8 + $0xf4] sm:$0xf]
    %v542 = vld [vmem:[#allocation8 + $0xf8] sm:$0xf]
    %v543 = vld [vmem:[#allocation8 + $0xfc] sm:$0xf]
    %v544 = vld [vmem:[%s5] sm:$0x1]
    %v546 = vlaneseq
    %v547 = vshrl.u32 %v546, 7
    %v548 = vsub.s32 0, %v547
    %v549 = vrot.slane %v544, %v548
    %v615 = vunpack.c.l.b16 %v480
    %v616 = vunpack.c.l.b16 %v481
    %v617 = vunpack.c.l.b16 %v482
    %v618 = vunpack.c.l.b16 %v483
    %v619 = vunpack.c.l.b16 %v484
    %v620 = vunpack.c.l.b16 %v485
    %v621 = vunpack.c.l.b16 %v486
    %v622 = vunpack.c.l.b16 %v487
    %v623 = vunpack.c.l.b16 %v488
    %v624 = vunpack.c.l.b16 %v489
    %v625 = vunpack.c.l.b16 %v490
    %v626 = vunpack.c.l.b16 %v491
    %v627 = vunpack.c.l.b16 %v492
    %v628 = vunpack.c.l.b16 %v493
    %v629 = vunpack.c.l.b16 %v494
    %v630 = vunpack.c.l.b16 %v495
    %v631 = vunpack.c.l.b16 %v496
    %v632 = vunpack.c.l.b16 %v497
    %v633 = vunpack.c.l.b16 %v498
    %v634 = vunpack.c.l.b16 %v499
    %v635 = vunpack.c.l.b16 %v500
    %v636 = vunpack.c.l.b16 %v501
    %v637 = vunpack.c.l.b16 %v502
    %v638 = vunpack.c.l.b16 %v503
    %v639 = vunpack.c.l.b16 %v504
    %v640 = vunpack.c.l.b16 %v505
    %v641 = vunpack.c.l.b16 %v506
    %v642 = vunpack.c.l.b16 %v507
    %v643 = vunpack.c.l.b16 %v508
    %v644 = vunpack.c.l.b16 %v509
    %v645 = vunpack.c.l.b16 %v510
    %v646 = vunpack.c.l.b16 %v511
    %v647 = vunpack.c.l.b16 %v512
    %v648 = vunpack.c.l.b16 %v513
    %v649 = vunpack.c.l.b16 %v514
    %v650 = vunpack.c.l.b16 %v515
    %v651 = vunpack.c.l.b16 %v516
    %v652 = vunpack.c.l.b16 %v517
    %v653 = vunpack.c.l.b16 %v518
    %v654 = vunpack.c.l.b16 %v519
    %v655 = vunpack.c.l.b16 %v520
    %v656 = vunpack.c.l.b16 %v521
    %v657 = vunpack.c.l.b16 %v522
    %v658 = vunpack.c.l.b16 %v523
    %v659 = vunpack.c.l.b16 %v524
    %v660 = vunpack.c.l.b16 %v525
    %v661 = vunpack.c.l.b16 %v526
    %v662 = vunpack.c.l.b16 %v527
    %v663 = vunpack.c.l.b16 %v528
    %v664 = vunpack.c.l.b16 %v529
    %v665 = vunpack.c.l.b16 %v530
    %v666 = vunpack.c.l.b16 %v531
    %v667 = vunpack.c.l.b16 %v532
    %v668 = vunpack.c.l.b16 %v533
    %v669 = vunpack.c.l.b16 %v534
    %v670 = vunpack.c.l.b16 %v535
    %v671 = vunpack.c.l.b16 %v536
    %v672 = vunpack.c.l.b16 %v537
    %v673 = vunpack.c.l.b16 %v538
    %v674 = vunpack.c.l.b16 %v539
    %v675 = vunpack.c.l.b16 %v540
    %v676 = vunpack.c.l.b16 %v541
    %v677 = vunpack.c.l.b16 %v542
    %v678 = vunpack.c.l.b16 %v543
    %v679 = vpack.c.b16 %v616, %v615
    %v680 = vpack.c.b16 %v618, %v617
    %v681 = vpack.c.b16 %v620, %v619
    %v682 = vpack.c.b16 %v622, %v621
    %v683 = vpack.c.b16 %v624, %v623
    %v684 = vpack.c.b16 %v626, %v625
    %v685 = vpack.c.b16 %v628, %v627
    %v686 = vpack.c.b16 %v630, %v629
    %v687 = vpack.c.b16 %v632, %v631
    %v688 = vpack.c.b16 %v634, %v633
    %v689 = vpack.c.b16 %v636, %v635
    %v690 = vpack.c.b16 %v638, %v637
    %v691 = vpack.c.b16 %v640, %v639
    %v692 = vpack.c.b16 %v642, %v641
    %v693 = vpack.c.b16 %v644, %v643
    %v694 = vpack.c.b16 %v646, %v645
    %v695 = vpack.c.b16 %v648, %v647
    %v696 = vpack.c.b16 %v650, %v649
    %v697 = vpack.c.b16 %v652, %v651
    %v698 = vpack.c.b16 %v654, %v653
    %v699 = vpack.c.b16 %v656, %v655
    %v700 = vpack.c.b16 %v658, %v657
    %v701 = vpack.c.b16 %v660, %v659
    %v702 = vpack.c.b16 %v662, %v661
    %v703 = vpack.c.b16 %v664, %v663
    %v704 = vpack.c.b16 %v666, %v665
    %v705 = vpack.c.b16 %v668, %v667
    %v706 = vpack.c.b16 %v670, %v669
    %v707 = vpack.c.b16 %v672, %v671
    %v708 = vpack.c.b16 %v674, %v673
    %v709 = vpack.c.b16 %v676, %v675
    %v710 = vpack.c.b16 %v678, %v677
    %743 = vmatprep.subr.bf16.mxu0 0
    %744 = vmatpush1.bf16.msra.mxu0 %v679
    %745 = vmatprep.subr.bf16.mxu0 0
    %746 = vmatpush1.bf16.msra.mxu0 %v680
    %747 = vmatprep.subr.bf16.mxu0 0
    %748 = vmatpush1.bf16.msra.mxu0 %v681
    %749 = vmatprep.subr.bf16.mxu0 0
    %750 = vmatpush1.bf16.msra.mxu0 %v682
    %751 = vmatprep.subr.bf16.mxu0 0
    %752 = vmatpush1.bf16.msra.mxu0 %v683
    %753 = vmatprep.subr.bf16.mxu0 0
    %754 = vmatpush1.bf16.msra.mxu0 %v684
    %755 = vmatprep.subr.bf16.mxu0 0
    %756 = vmatpush1.bf16.msra.mxu0 %v685
    %757 = vmatprep.subr.bf16.mxu0 0
    %758 = vmatpush1.bf16.msra.mxu0 %v686
    %759 = vmatprep.subr.bf16.mxu0 0
    %760 = vmatpush1.bf16.msra.mxu0 %v687
    %761 = vmatprep.subr.bf16.mxu0 0
    %762 = vmatpush1.bf16.msra.mxu0 %v688
    %763 = vmatprep.subr.bf16.mxu0 0
    %764 = vmatpush1.bf16.msra.mxu0 %v689
    %765 = vmatprep.subr.bf16.mxu0 0
    %766 = vmatpush1.bf16.msra.mxu0 %v690
    %767 = vmatprep.subr.bf16.mxu0 0
    %768 = vmatpush1.bf16.msra.mxu0 %v691
    %769 = vmatprep.subr.bf16.mxu0 0
    %770 = vmatpush1.bf16.msra.mxu0 %v692
    %771 = vmatprep.subr.bf16.mxu0 0
    %772 = vmatpush1.bf16.msra.mxu0 %v693
    %773 = vmatprep.subr.bf16.mxu0 0
    %774 = vmatpush1.bf16.msra.mxu0 %v694
    %775 = vmatprep.mubr.bf16.mxu0 %v477
    %776 = vmatmul.mubr.bf16.gmra.mrb[0].mxu0 %v476
    %v777 = vpop.f32.mrb[0].mxu0
    %v778 = vadd.f32 %v549, %v777
    %v779 = vpop.f32.mrb[0].mxu0
    %v780 = vpop.f32.mrb[0].mxu0
    %v781 = vadd.f32 %v549, %v780
    %v782 = vpop.f32.mrb[0].mxu0
    %783 = vdwg.mxu0
    %784 = vmatprep.subr.bf16.mxu0 0
    %785 = vmatpush1.bf16.msra.mxu0 %v695
    %786 = vmatprep.subr.bf16.mxu0 0
    %787 = vmatpush1.bf16.msra.mxu0 %v696
    %788 = vmatprep.subr.bf16.mxu0 0
    %789 = vmatpush1.bf16.msra.mxu0 %v697
    %790 = vmatprep.subr.bf16.mxu0 0
    %791 = vmatpush1.bf16.msra.mxu0 %v698
    %792 = vmatprep.subr.bf16.mxu0 0
    %793 = vmatpush1.bf16.msra.mxu0 %v699
    %794 = vmatprep.subr.bf16.mxu0 0
    %795 = vmatpush1.bf16.msra.mxu0 %v700
    %796 = vmatprep.subr.bf16.mxu0 0
    %797 = vmatpush1.bf16.msra.mxu0 %v701
    %798 = vmatprep.subr.bf16.mxu0 0
    %799 = vmatpush1.bf16.msra.mxu0 %v702
    %800 = vmatprep.subr.bf16.mxu0 0
    %801 = vmatpush1.bf16.msra.mxu0 %v703
    %802 = vmatprep.subr.bf16.mxu0 0
    %803 = vmatpush1.bf16.msra.mxu0 %v704
    %804 = vmatprep.subr.bf16.mxu0 0
    %805 = vmatpush1.bf16.msra.mxu0 %v705
    %806 = vmatprep.subr.bf16.mxu0 0
    %807 = vmatpush1.bf16.msra.mxu0 %v706
    %808 = vmatprep.subr.bf16.mxu0 0
    %809 = vmatpush1.bf16.msra.mxu0 %v707
    %810 = vmatprep.subr.bf16.mxu0 0
    %811 = vmatpush1.bf16.msra.mxu0 %v708
    %812 = vmatprep.subr.bf16.mxu0 0
    %813 = vmatpush1.bf16.msra.mxu0 %v709
    %814 = vmatprep.subr.bf16.mxu0 0
    %815 = vmatpush1.bf16.msra.mxu0 %v710
    %816 = vmatprep.mubr.bf16.mxu0 %v479
    %817 = vmatmul.mubr.bf16.gmra.mrb[0].mxu0 %v478
    %v818 = vpop.f32.mrb[0].mxu0
    %v819 = vadd.f32 %v778, %v818
    %v820 = vpop.f32.mrb[0].mxu0
    %v821 = vpop.f32.mrb[0].mxu0
    %v822 = vadd.f32 %v781, %v821
    %v823 = vpop.f32.mrb[0].mxu0
    %824 = vdwg.mxu0
    %v825 = vld [vmem:[#allocation10] sm:$0xff]
    %v826 = vld [vmem:[#allocation10 + $0x8] sm:$0xff]
    %v827 = vld [vmem:[#allocation10 + $0x10] sm:$0xff]
    %v828 = vld [vmem:[#allocation10 + $0x18] sm:$0xff]
    %v829 = vld [vmem:[#allocation10 + $0x20] sm:$0xff]
    %v830 = vld [vmem:[#allocation10 + $0x28] sm:$0xff]
    %v831 = vld [vmem:[#allocation10 + $0x30] sm:$0xff]
    %v832 = vld [vmem:[#allocation10 + $0x38] sm:$0xff]
    %v833 = vld [vmem:[#allocation10 + $0x40] sm:$0xff]
    %v834 = vld [vmem:[#allocation10 + $0x48] sm:$0xff]
    %v835 = vld [vmem:[#allocation10 + $0x50] sm:$0xff]
    %v836 = vld [vmem:[#allocation10 + $0x58] sm:$0xff]
    %v837 = vld [vmem:[#allocation10 + $0x60] sm:$0xff]
    %v838 = vld [vmem:[#allocation10 + $0x68] sm:$0xff]
    %v839 = vld [vmem:[#allocation10 + $0x70] sm:$0xff]
    %v840 = vld [vmem:[#allocation10 + $0x78] sm:$0xff]
    %v841 = vld [vmem:[#allocation10 + $0x80] sm:$0xff]
    %v842 = vld [vmem:[#allocation10 + $0x88] sm:$0xff]
    %v843 = vld [vmem:[#allocation10 + $0x90] sm:$0xff]
    %v844 = vld [vmem:[#allocation10 + $0x98] sm:$0xff]
    %v845 = vld [vmem:[#allocation10 + $0xa0] sm:$0xff]
    %v846 = vld [vmem:[#allocation10 + $0xa8] sm:$0xff]
    %v847 = vld [vmem:[#allocation10 + $0xb0] sm:$0xff]
    %v848 = vld [vmem:[#allocation10 + $0xb8] sm:$0xff]
    %v849 = vld [vmem:[#allocation10 + $0xc0] sm:$0xff]
    %v850 = vld [vmem:[#allocation10 + $0xc8] sm:$0xff]
    %v851 = vld [vmem:[#allocation10 + $0xd0] sm:$0xff]
    %v852 = vld [vmem:[#allocation10 + $0xd8] sm:$0xff]
    %v853 = vld [vmem:[#allocation10 + $0xe0] sm:$0xff]
    %v854 = vld [vmem:[#allocation10 + $0xe8] sm:$0xff]
    %v855 = vld [vmem:[#allocation10 + $0xf0] sm:$0xff]
    %v856 = vld [vmem:[#allocation10 + $0xf8] sm:$0xff]
    %v857 = vld [vmem:[%s7] sm:$0xf]
    %v859 = vlaneseq
    %v860 = vshrl.u32 %v859, 7
    %v861 = vsub.s32 0, %v860
    %v862 = vrot.slane %v857, %v861
    %v863 = vlaneseq
    %v864 = vshrl.u32 %v863, 7
    %v865 = vsub.s32 1, %v864
    %v866 = vrot.slane %v857, %v865
    %v867 = vlaneseq
    %v868 = vshrl.u32 %v867, 7
    %v869 = vsub.s32 2, %v868
    %v870 = vrot.slane %v857, %v869
    %v871 = vlaneseq
    %v872 = vshrl.u32 %v871, 7
    %v873 = vsub.s32 3, %v872
    %v874 = vrot.slane %v857, %v873
    %v881 = vunpack.c.l.b16 %v160
    %v882 = vunpack.c.l.b16 %v161
    %v883 = vpack.c.b16 %v882, %v881
    %v917 = vunpack.c.l.b16 %v825
    %v918 = vunpack.c.h.b16 %v825
    %v919 = vunpack.c.l.b16 %v826
    %v920 = vunpack.c.h.b16 %v826
    %v921 = vunpack.c.l.b16 %v827
    %v922 = vunpack.c.h.b16 %v827
    %v923 = vunpack.c.l.b16 %v828
    %v924 = vunpack.c.h.b16 %v828
    %v925 = vunpack.c.l.b16 %v829
    %v926 = vunpack.c.h.b16 %v829
    %v927 = vunpack.c.l.b16 %v830
    %v928 = vunpack.c.h.b16 %v830
    %v929 = vunpack.c.l.b16 %v831
    %v930 = vunpack.c.h.b16 %v831
    %v931 = vunpack.c.l.b16 %v832
    %v932 = vunpack.c.h.b16 %v832
    %v933 = vunpack.c.l.b16 %v833
    %v934 = vunpack.c.h.b16 %v833
    %v935 = vunpack.c.l.b16 %v834
    %v936 = vunpack.c.h.b16 %v834
    %v937 = vunpack.c.l.b16 %v835
    %v938 = vunpack.c.h.b16 %v835
    %v939 = vunpack.c.l.b16 %v836
    %v940 = vunpack.c.h.b16 %v836
    %v941 = vunpack.c.l.b16 %v837
    %v942 = vunpack.c.h.b16 %v837
    %v943 = vunpack.c.l.b16 %v838
    %v944 = vunpack.c.h.b16 %v838
    %v945 = vunpack.c.l.b16 %v839
    %v946 = vunpack.c.h.b16 %v839
    %v947 = vunpack.c.l.b16 %v840
    %v948 = vunpack.c.h.b16 %v840
    %v949 = vunpack.c.l.b16 %v841
    %v950 = vunpack.c.h.b16 %v841
    %v951 = vunpack.c.l.b16 %v842
    %v952 = vunpack.c.h.b16 %v842
    %v953 = vunpack.c.l.b16 %v843
    %v954 = vunpack.c.h.b16 %v843
    %v955 = vunpack.c.l.b16 %v844
    %v956 = vunpack.c.h.b16 %v844
    %v957 = vunpack.c.l.b16 %v845
    %v958 = vunpack.c.h.b16 %v845
    %v959 = vunpack.c.l.b16 %v846
    %v960 = vunpack.c.h.b16 %v846
    %v961 = vunpack.c.l.b16 %v847
    %v962 = vunpack.c.h.b16 %v847
    %v963 = vunpack.c.l.b16 %v848
    %v964 = vunpack.c.h.b16 %v848
    %v965 = vunpack.c.l.b16 %v849
    %v966 = vunpack.c.h.b16 %v849
    %v967 = vunpack.c.l.b16 %v850
    %v968 = vunpack.c.h.b16 %v850
    %v969 = vunpack.c.l.b16 %v851
    %v970 = vunpack.c.h.b16 %v851
    %v971 = vunpack.c.l.b16 %v852
    %v972 = vunpack.c.h.b16 %v852
    %v973 = vunpack.c.l.b16 %v853
    %v974 = vunpack.c.h.b16 %v853
    %v975 = vunpack.c.l.b16 %v854
    %v976 = vunpack.c.h.b16 %v854
    %v977 = vunpack.c.l.b16 %v855
    %v978 = vunpack.c.h.b16 %v855
    %v979 = vunpack.c.l.b16 %v856
    %v980 = vunpack.c.h.b16 %v856
    %v981 = vpack.c.b16 %v921, %v917
    %v982 = vpack.c.b16 %v922, %v918
    %v983 = vpack.c.b16 %v923, %v919
    %v984 = vpack.c.b16 %v924, %v920
    %v985 = vpack.c.b16 %v929, %v925
    %v986 = vpack.c.b16 %v930, %v926
    %v987 = vpack.c.b16 %v931, %v927
    %v988 = vpack.c.b16 %v932, %v928
    %v989 = vpack.c.b16 %v937, %v933
    %v990 = vpack.c.b16 %v938, %v934
    %v991 = vpack.c.b16 %v939, %v935
    %v992 = vpack.c.b16 %v940, %v936
    %v993 = vpack.c.b16 %v945, %v941
    %v994 = vpack.c.b16 %v946, %v942
    %v995 = vpack.c.b16 %v947, %v943
    %v996 = vpack.c.b16 %v948, %v944
    %v997 = vpack.c.b16 %v953, %v949
    %v998 = vpack.c.b16 %v954, %v950
    %v999 = vpack.c.b16 %v955, %v951
    %v1000 = vpack.c.b16 %v956, %v952
    %v1001 = vpack.c.b16 %v961, %v957
    %v1002 = vpack.c.b16 %v962, %v958
    %v1003 = vpack.c.b16 %v963, %v959
    %v1004 = vpack.c.b16 %v964, %v960
    %v1005 = vpack.c.b16 %v969, %v965
    %v1006 = vpack.c.b16 %v970, %v966
    %v1007 = vpack.c.b16 %v971, %v967
    %v1008 = vpack.c.b16 %v972, %v968
    %v1009 = vpack.c.b16 %v977, %v973
    %v1010 = vpack.c.b16 %v978, %v974
    %v1011 = vpack.c.b16 %v979, %v975
    %v1012 = vpack.c.b16 %v980, %v976
    %1045 = vmatprep.subr.bf16.mxu0 %v982
    %1046 = vmatpush1.bf16.msra.mxu0 %v981
    %1047 = vmatprep.subr.bf16.mxu0 %v986
    %1048 = vmatpush1.bf16.msra.mxu0 %v985
    %1049 = vmatprep.subr.bf16.mxu0 %v990
    %1050 = vmatpush1.bf16.msra.mxu0 %v989
    %1051 = vmatprep.subr.bf16.mxu0 %v994
    %1052 = vmatpush1.bf16.msra.mxu0 %v993
    %1053 = vmatprep.subr.bf16.mxu0 %v998
    %1054 = vmatpush1.bf16.msra.mxu0 %v997
    %1055 = vmatprep.subr.bf16.mxu0 %v1002
    %1056 = vmatpush1.bf16.msra.mxu0 %v1001
    %1057 = vmatprep.subr.bf16.mxu0 %v1006
    %1058 = vmatpush1.bf16.msra.mxu0 %v1005
    %1059 = vmatprep.subr.bf16.mxu0 %v1010
    %1060 = vmatpush1.bf16.msra.mxu0 %v1009
    %1061 = vmatprep.subr.bf16.mxu0 0
    %1062 = vmatpush1.bf16.msra.mxu0 0
    %1063 = vmatprep.subr.bf16.mxu0 0
    %1064 = vmatpush1.bf16.msra.mxu0 0
    %1065 = vmatprep.subr.bf16.mxu0 0
    %1066 = vmatpush1.bf16.msra.mxu0 0
    %1067 = vmatprep.subr.bf16.mxu0 0
    %1068 = vmatpush1.bf16.msra.mxu0 0
    %1069 = vmatprep.subr.bf16.mxu0 0
    %1070 = vmatpush1.bf16.msra.mxu0 0
    %1071 = vmatprep.subr.bf16.mxu0 0
    %1072 = vmatpush1.bf16.msra.mxu0 0
    %1073 = vmatprep.subr.bf16.mxu0 0
    %1074 = vmatpush1.bf16.msra.mxu0 0
    %1075 = vmatprep.subr.bf16.mxu0 0
    %1076 = vmatpush1.bf16.msra.mxu0 0
    %1077 = vmatprep.mubr.bf16.mxu0 0
    %1078 = vmatmul.mubr.bf16.gmra.mrb[0].mxu0 %v883
    %v1079 = vpop.f32.mrb[0].mxu0
    %v1080 = vadd.f32 %v862, %v1079
    %v1081 = vpop.f32.mrb[0].mxu0
    %v1082 = vadd.f32 %v866, %v1081
    %v1083 = vpop.f32.mrb[0].mxu0
    %v1084 = vadd.f32 %v862, %v1083
    %v1085 = vpop.f32.mrb[0].mxu0
    %v1086 = vadd.f32 %v866, %v1085
    %1087 = vdwg.mxu0
    %1088 = vmatprep.subr.bf16.mxu0 %v984
    %1089 = vmatpush1.bf16.msra.mxu0 %v983
    %1090 = vmatprep.subr.bf16.mxu0 %v988
    %1091 = vmatpush1.bf16.msra.mxu0 %v987
    %1092 = vmatprep.subr.bf16.mxu0 %v992
    %1093 = vmatpush1.bf16.msra.mxu0 %v991
    %1094 = vmatprep.subr.bf16.mxu0 %v996
    %1095 = vmatpush1.bf16.msra.mxu0 %v995
    %1096 = vmatprep.subr.bf16.mxu0 %v1000
    %1097 = vmatpush1.bf16.msra.mxu0 %v999
    %1098 = vmatprep.subr.bf16.mxu0 %v1004
    %1099 = vmatpush1.bf16.msra.mxu0 %v1003
    %1100 = vmatprep.subr.bf16.mxu0 %v1008
    %1101 = vmatpush1.bf16.msra.mxu0 %v1007
    %1102 = vmatprep.subr.bf16.mxu0 %v1012
    %1103 = vmatpush1.bf16.msra.mxu0 %v1011
    %1104 = vmatprep.subr.bf16.mxu0 0
    %1105 = vmatpush1.bf16.msra.mxu0 0
    %1106 = vmatprep.subr.bf16.mxu0 0
    %1107 = vmatpush1.bf16.msra.mxu0 0
    %1108 = vmatprep.subr.bf16.mxu0 0
    %1109 = vmatpush1.bf16.msra.mxu0 0
    %1110 = vmatprep.subr.bf16.mxu0 0
    %1111 = vmatpush1.bf16.msra.mxu0 0
    %1112 = vmatprep.subr.bf16.mxu0 0
    %1113 = vmatpush1.bf16.msra.mxu0 0
    %1114 = vmatprep.subr.bf16.mxu0 0
    %1115 = vmatpush1.bf16.msra.mxu0 0
    %1116 = vmatprep.subr.bf16.mxu0 0
    %1117 = vmatpush1.bf16.msra.mxu0 0
    %1118 = vmatprep.subr.bf16.mxu0 0
    %1119 = vmatpush1.bf16.msra.mxu0 0
    %1120 = vmatprep.mubr.bf16.mxu0 0
    %1121 = vmatmul.mubr.bf16.gmra.mrb[0].mxu0 %v883
    %v1122 = vpop.f32.mrb[0].mxu0
    %v1123 = vadd.f32 %v870, %v1122
    %v1124 = vpop.f32.mrb[0].mxu0
    %v1125 = vadd.f32 %v874, %v1124
    %v1126 = vpop.f32.mrb[0].mxu0
    %v1127 = vadd.f32 %v870, %v1126
    %v1128 = vpop.f32.mrb[0].mxu0
    %v1129 = vadd.f32 %v874, %v1128
    %1130 = vdwg.mxu0
    %v1131 = vmax.f32 %v1080, 0.0
    %v1132 = vmax.f32 %v1082, 0.0
    %v1133 = vmax.f32 %v1123, 0.0
    %v1134 = vmax.f32 %v1125, 0.0
    %v1135 = vmax.f32 %v1084, 0.0
    %v1136 = vmax.f32 %v1086, 0.0
    %v1137 = vmax.f32 %v1127, 0.0
    %v1138 = vmax.f32 %v1129, 0.0
    %v1139 = vpack.c.bf16 %v1135, %v1131
    %v1140 = vpack.c.bf16 %v1136, %v1132
    %v1141 = vpack.c.bf16 %v1137, %v1133
    %v1142 = vpack.c.bf16 %v1138, %v1134
    %v1143 = vld [vmem:[#allocation11] sm:$0xf]
    %v1144 = vld [vmem:[#allocation11 + $0x4] sm:$0xf]
    %v1145 = vld [vmem:[#allocation11 + $0x8] sm:$0xf]
    %v1146 = vld [vmem:[#allocation11 + $0xc] sm:$0xf]
    %v1147 = vld [vmem:[#allocation11 + $0x10] sm:$0xf]
    %v1148 = vld [vmem:[#allocation11 + $0x14] sm:$0xf]
    %v1149 = vld [vmem:[#allocation11 + $0x18] sm:$0xf]
    %v1150 = vld [vmem:[#allocation11 + $0x1c] sm:$0xf]
    %v1151 = vld [vmem:[#allocation11 + $0x20] sm:$0xf]
    %v1152 = vld [vmem:[#allocation11 + $0x24] sm:$0xf]
    %v1153 = vld [vmem:[#allocation11 + $0x28] sm:$0xf]
    %v1154 = vld [vmem:[#allocation11 + $0x2c] sm:$0xf]
    %v1155 = vld [vmem:[#allocation11 + $0x30] sm:$0xf]
    %v1156 = vld [vmem:[#allocation11 + $0x34] sm:$0xf]
    %v1157 = vld [vmem:[#allocation11 + $0x38] sm:$0xf]
    %v1158 = vld [vmem:[#allocation11 + $0x3c] sm:$0xf]
    %v1159 = vld [vmem:[#allocation11 + $0x40] sm:$0xf]
    %v1160 = vld [vmem:[#allocation11 + $0x44] sm:$0xf]
    %v1161 = vld [vmem:[#allocation11 + $0x48] sm:$0xf]
    %v1162 = vld [vmem:[#allocation11 + $0x4c] sm:$0xf]
    %v1163 = vld [vmem:[#allocation11 + $0x50] sm:$0xf]
    %v1164 = vld [vmem:[#allocation11 + $0x54] sm:$0xf]
    %v1165 = vld [vmem:[#allocation11 + $0x58] sm:$0xf]
    %v1166 = vld [vmem:[#allocation11 + $0x5c] sm:$0xf]
    %v1167 = vld [vmem:[#allocation11 + $0x60] sm:$0xf]
    %v1168 = vld [vmem:[#allocation11 + $0x64] sm:$0xf]
    %v1169 = vld [vmem:[#allocation11 + $0x68] sm:$0xf]
    %v1170 = vld [vmem:[#allocation11 + $0x6c] sm:$0xf]
    %v1171 = vld [vmem:[#allocation11 + $0x70] sm:$0xf]
    %v1172 = vld [vmem:[#allocation11 + $0x74] sm:$0xf]
    %v1173 = vld [vmem:[#allocation11 + $0x78] sm:$0xf]
    %v1174 = vld [vmem:[#allocation11 + $0x7c] sm:$0xf]
    %v1175 = vld [vmem:[#allocation11 + $0x80] sm:$0xf]
    %v1176 = vld [vmem:[#allocation11 + $0x84] sm:$0xf]
    %v1177 = vld [vmem:[#allocation11 + $0x88] sm:$0xf]
    %v1178 = vld [vmem:[#allocation11 + $0x8c] sm:$0xf]
    %v1179 = vld [vmem:[#allocation11 + $0x90] sm:$0xf]
    %v1180 = vld [vmem:[#allocation11 + $0x94] sm:$0xf]
    %v1181 = vld [vmem:[#allocation11 + $0x98] sm:$0xf]
    %v1182 = vld [vmem:[#allocation11 + $0x9c] sm:$0xf]
    %v1183 = vld [vmem:[#allocation11 + $0xa0] sm:$0xf]
    %v1184 = vld [vmem:[#allocation11 + $0xa4] sm:$0xf]
    %v1185 = vld [vmem:[#allocation11 + $0xa8] sm:$0xf]
    %v1186 = vld [vmem:[#allocation11 + $0xac] sm:$0xf]
    %v1187 = vld [vmem:[#allocation11 + $0xb0] sm:$0xf]
    %v1188 = vld [vmem:[#allocation11 + $0xb4] sm:$0xf]
    %v1189 = vld [vmem:[#allocation11 + $0xb8] sm:$0xf]
    %v1190 = vld [vmem:[#allocation11 + $0xbc] sm:$0xf]
    %v1191 = vld [vmem:[#allocation11 + $0xc0] sm:$0xf]
    %v1192 = vld [vmem:[#allocation11 + $0xc4] sm:$0xf]
    %v1193 = vld [vmem:[#allocation11 + $0xc8] sm:$0xf]
    %v1194 = vld [vmem:[#allocation11 + $0xcc] sm:$0xf]
    %v1195 = vld [vmem:[#allocation11 + $0xd0] sm:$0xf]
    %v1196 = vld [vmem:[#allocation11 + $0xd4] sm:$0xf]
    %v1197 = vld [vmem:[#allocation11 + $0xd8] sm:$0xf]
    %v1198 = vld [vmem:[#allocation11 + $0xdc] sm:$0xf]
    %v1199 = vld [vmem:[#allocation11 + $0xe0] sm:$0xf]
    %v1200 = vld [vmem:[#allocation11 + $0xe4] sm:$0xf]
    %v1201 = vld [vmem:[#allocation11 + $0xe8] sm:$0xf]
    %v1202 = vld [vmem:[#allocation11 + $0xec] sm:$0xf]
    %v1203 = vld [vmem:[#allocation11 + $0xf0] sm:$0xf]
    %v1204 = vld [vmem:[#allocation11 + $0xf4] sm:$0xf]
    %v1205 = vld [vmem:[#allocation11 + $0xf8] sm:$0xf]
    %v1206 = vld [vmem:[#allocation11 + $0xfc] sm:$0xf]
    %v1207 = vld [vmem:[%s9] sm:$0x1]
    %v1209 = vlaneseq
    %v1210 = vshrl.u32 %v1209, 7
    %v1211 = vsub.s32 0, %v1210
    %v1212 = vrot.slane %v1207, %v1211
    %v1278 = vunpack.c.l.b16 %v1143
    %v1279 = vunpack.c.l.b16 %v1144
    %v1280 = vunpack.c.l.b16 %v1145
    %v1281 = vunpack.c.l.b16 %v1146
    %v1282 = vunpack.c.l.b16 %v1147
    %v1283 = vunpack.c.l.b16 %v1148
    %v1284 = vunpack.c.l.b16 %v1149
    %v1285 = vunpack.c.l.b16 %v1150
    %v1286 = vunpack.c.l.b16 %v1151
    %v1287 = vunpack.c.l.b16 %v1152
    %v1288 = vunpack.c.l.b16 %v1153
    %v1289 = vunpack.c.l.b16 %v1154
    %v1290 = vunpack.c.l.b16 %v1155
    %v1291 = vunpack.c.l.b16 %v1156
    %v1292 = vunpack.c.l.b16 %v1157
    %v1293 = vunpack.c.l.b16 %v1158
    %v1294 = vunpack.c.l.b16 %v1159
    %v1295 = vunpack.c.l.b16 %v1160
    %v1296 = vunpack.c.l.b16 %v1161
    %v1297 = vunpack.c.l.b16 %v1162
    %v1298 = vunpack.c.l.b16 %v1163
    %v1299 = vunpack.c.l.b16 %v1164
    %v1300 = vunpack.c.l.b16 %v1165
    %v1301 = vunpack.c.l.b16 %v1166
    %v1302 = vunpack.c.l.b16 %v1167
    %v1303 = vunpack.c.l.b16 %v1168
    %v1304 = vunpack.c.l.b16 %v1169
    %v1305 = vunpack.c.l.b16 %v1170
    %v1306 = vunpack.c.l.b16 %v1171
    %v1307 = vunpack.c.l.b16 %v1172
    %v1308 = vunpack.c.l.b16 %v1173
    %v1309 = vunpack.c.l.b16 %v1174
    %v1310 = vunpack.c.l.b16 %v1175
    %v1311 = vunpack.c.l.b16 %v1176
    %v1312 = vunpack.c.l.b16 %v1177
    %v1313 = vunpack.c.l.b16 %v1178
    %v1314 = vunpack.c.l.b16 %v1179
    %v1315 = vunpack.c.l.b16 %v1180
    %v1316 = vunpack.c.l.b16 %v1181
    %v1317 = vunpack.c.l.b16 %v1182
    %v1318 = vunpack.c.l.b16 %v1183
    %v1319 = vunpack.c.l.b16 %v1184
    %v1320 = vunpack.c.l.b16 %v1185
    %v1321 = vunpack.c.l.b16 %v1186
    %v1322 = vunpack.c.l.b16 %v1187
    %v1323 = vunpack.c.l.b16 %v1188
    %v1324 = vunpack.c.l.b16 %v1189
    %v1325 = vunpack.c.l.b16 %v1190
    %v1326 = vunpack.c.l.b16 %v1191
    %v1327 = vunpack.c.l.b16 %v1192
    %v1328 = vunpack.c.l.b16 %v1193
    %v1329 = vunpack.c.l.b16 %v1194
    %v1330 = vunpack.c.l.b16 %v1195
    %v1331 = vunpack.c.l.b16 %v1196
    %v1332 = vunpack.c.l.b16 %v1197
    %v1333 = vunpack.c.l.b16 %v1198
    %v1334 = vunpack.c.l.b16 %v1199
    %v1335 = vunpack.c.l.b16 %v1200
    %v1336 = vunpack.c.l.b16 %v1201
    %v1337 = vunpack.c.l.b16 %v1202
    %v1338 = vunpack.c.l.b16 %v1203
    %v1339 = vunpack.c.l.b16 %v1204
    %v1340 = vunpack.c.l.b16 %v1205
    %v1341 = vunpack.c.l.b16 %v1206
    %v1342 = vpack.c.b16 %v1279, %v1278
    %v1343 = vpack.c.b16 %v1281, %v1280
    %v1344 = vpack.c.b16 %v1283, %v1282
    %v1345 = vpack.c.b16 %v1285, %v1284
    %v1346 = vpack.c.b16 %v1287, %v1286
    %v1347 = vpack.c.b16 %v1289, %v1288
    %v1348 = vpack.c.b16 %v1291, %v1290
    %v1349 = vpack.c.b16 %v1293, %v1292
    %v1350 = vpack.c.b16 %v1295, %v1294
    %v1351 = vpack.c.b16 %v1297, %v1296
    %v1352 = vpack.c.b16 %v1299, %v1298
    %v1353 = vpack.c.b16 %v1301, %v1300
    %v1354 = vpack.c.b16 %v1303, %v1302
    %v1355 = vpack.c.b16 %v1305, %v1304
    %v1356 = vpack.c.b16 %v1307, %v1306
    %v1357 = vpack.c.b16 %v1309, %v1308
    %v1358 = vpack.c.b16 %v1311, %v1310
    %v1359 = vpack.c.b16 %v1313, %v1312
    %v1360 = vpack.c.b16 %v1315, %v1314
    %v1361 = vpack.c.b16 %v1317, %v1316
    %v1362 = vpack.c.b16 %v1319, %v1318
    %v1363 = vpack.c.b16 %v1321, %v1320
    %v1364 = vpack.c.b16 %v1323, %v1322
    %v1365 = vpack.c.b16 %v1325, %v1324
    %v1366 = vpack.c.b16 %v1327, %v1326
    %v1367 = vpack.c.b16 %v1329, %v1328
    %v1368 = vpack.c.b16 %v1331, %v1330
    %v1369 = vpack.c.b16 %v1333, %v1332
    %v1370 = vpack.c.b16 %v1335, %v1334
    %v1371 = vpack.c.b16 %v1337, %v1336
    %v1372 = vpack.c.b16 %v1339, %v1338
    %v1373 = vpack.c.b16 %v1341, %v1340
    %1406 = vmatprep.subr.bf16.mxu0 0
    %1407 = vmatpush1.bf16.msra.mxu0 %v1342
    %1408 = vmatprep.subr.bf16.mxu0 0
    %1409 = vmatpush1.bf16.msra.mxu0 %v1343
    %1410 = vmatprep.subr.bf16.mxu0 0
    %1411 = vmatpush1.bf16.msra.mxu0 %v1344
    %1412 = vmatprep.subr.bf16.mxu0 0
    %1413 = vmatpush1.bf16.msra.mxu0 %v1345
    %1414 = vmatprep.subr.bf16.mxu0 0
    %1415 = vmatpush1.bf16.msra.mxu0 %v1346
    %1416 = vmatprep.subr.bf16.mxu0 0
    %1417 = vmatpush1.bf16.msra.mxu0 %v1347
    %1418 = vmatprep.subr.bf16.mxu0 0
    %1419 = vmatpush1.bf16.msra.mxu0 %v1348
    %1420 = vmatprep.subr.bf16.mxu0 0
    %1421 = vmatpush1.bf16.msra.mxu0 %v1349
    %1422 = vmatprep.subr.bf16.mxu0 0
    %1423 = vmatpush1.bf16.msra.mxu0 %v1350
    %1424 = vmatprep.subr.bf16.mxu0 0
    %1425 = vmatpush1.bf16.msra.mxu0 %v1351
    %1426 = vmatprep.subr.bf16.mxu0 0
    %1427 = vmatpush1.bf16.msra.mxu0 %v1352
    %1428 = vmatprep.subr.bf16.mxu0 0
    %1429 = vmatpush1.bf16.msra.mxu0 %v1353
    %1430 = vmatprep.subr.bf16.mxu0 0
    %1431 = vmatpush1.bf16.msra.mxu0 %v1354
    %1432 = vmatprep.subr.bf16.mxu0 0
    %1433 = vmatpush1.bf16.msra.mxu0 %v1355
    %1434 = vmatprep.subr.bf16.mxu0 0
    %1435 = vmatpush1.bf16.msra.mxu0 %v1356
    %1436 = vmatprep.subr.bf16.mxu0 0
    %1437 = vmatpush1.bf16.msra.mxu0 %v1357
    %1438 = vmatprep.mubr.bf16.mxu0 %v1140
    %1439 = vmatmul.mubr.bf16.gmra.mrb[0].mxu0 %v1139
    %v1440 = vpop.f32.mrb[0].mxu0
    %v1441 = vadd.f32 %v1212, %v1440
    %v1442 = vpop.f32.mrb[0].mxu0
    %v1443 = vpop.f32.mrb[0].mxu0
    %v1444 = vadd.f32 %v1212, %v1443
    %v1445 = vpop.f32.mrb[0].mxu0
    %1446 = vdwg.mxu0
    %1447 = vmatprep.subr.bf16.mxu0 0
    %1448 = vmatpush1.bf16.msra.mxu0 %v1358
    %1449 = vmatprep.subr.bf16.mxu0 0
    %1450 = vmatpush1.bf16.msra.mxu0 %v1359
    %1451 = vmatprep.subr.bf16.mxu0 0
    %1452 = vmatpush1.bf16.msra.mxu0 %v1360
    %1453 = vmatprep.subr.bf16.mxu0 0
    %1454 = vmatpush1.bf16.msra.mxu0 %v1361
    %1455 = vmatprep.subr.bf16.mxu0 0
    %1456 = vmatpush1.bf16.msra.mxu0 %v1362
    %1457 = vmatprep.subr.bf16.mxu0 0
    %1458 = vmatpush1.bf16.msra.mxu0 %v1363
    %1459 = vmatprep.subr.bf16.mxu0 0
    %1460 = vmatpush1.bf16.msra.mxu0 %v1364
    %1461 = vmatprep.subr.bf16.mxu0 0
    %1462 = vmatpush1.bf16.msra.mxu0 %v1365
    %1463 = vmatprep.subr.bf16.mxu0 0
    %1464 = vmatpush1.bf16.msra.mxu0 %v1366
    %1465 = vmatprep.subr.bf16.mxu0 0
    %1466 = vmatpush1.bf16.msra.mxu0 %v1367
    %1467 = vmatprep.subr.bf16.mxu0 0
    %1468 = vmatpush1.bf16.msra.mxu0 %v1368
    %1469 = vmatprep.subr.bf16.mxu0 0
    %1470 = vmatpush1.bf16.msra.mxu0 %v1369
    %1471 = vmatprep.subr.bf16.mxu0 0
    %1472 = vmatpush1.bf16.msra.mxu0 %v1370
    %1473 = vmatprep.subr.bf16.mxu0 0
    %1474 = vmatpush1.bf16.msra.mxu0 %v1371
    %1475 = vmatprep.subr.bf16.mxu0 0
    %1476 = vmatpush1.bf16.msra.mxu0 %v1372
    %1477 = vmatprep.subr.bf16.mxu0 0
    %1478 = vmatpush1.bf16.msra.mxu0 %v1373
    %1479 = vmatprep.mubr.bf16.mxu0 %v1142
    %1480 = vmatmul.mubr.bf16.gmra.mrb[0].mxu0 %v1141
    %v1481 = vpop.f32.mrb[0].mxu0
    %v1482 = vadd.f32 %v1441, %v1481
    %v1483 = vpop.f32.mrb[0].mxu0
    %v1484 = vpop.f32.mrb[0].mxu0
    %v1485 = vadd.f32 %v1444, %v1484
    %v1486 = vpop.f32.mrb[0].mxu0
    %1487 = vdwg.mxu0
    %v1488 = vpack.c.bf16 %v822, %v819
    %v1489 = vpack.c.bf16 %v1485, %v1482
    %v1490 = vld [vmem:[#allocation13] sm:$0xff]
    %v1491 = vld [vmem:[#allocation13 + $0x8] sm:$0xff]
    %v1492 = vld [vmem:[#allocation13 + $0x10] sm:$0xff]
    %v1493 = vld [vmem:[#allocation13 + $0x18] sm:$0xff]
    %v1494 = vld [vmem:[#allocation13 + $0x20] sm:$0xff]
    %v1495 = vld [vmem:[#allocation13 + $0x28] sm:$0xff]
    %v1496 = vld [vmem:[#allocation13 + $0x30] sm:$0xff]
    %v1497 = vld [vmem:[#allocation13 + $0x38] sm:$0xff]
    %v1498 = vld [vmem:[#allocation13 + $0x40] sm:$0xff]
    %v1499 = vld [vmem:[#allocation13 + $0x48] sm:$0xff]
    %v1500 = vld [vmem:[#allocation13 + $0x50] sm:$0xff]
    %v1501 = vld [vmem:[#allocation13 + $0x58] sm:$0xff]
    %v1502 = vld [vmem:[#allocation13 + $0x60] sm:$0xff]
    %v1503 = vld [vmem:[#allocation13 + $0x68] sm:$0xff]
    %v1504 = vld [vmem:[#allocation13 + $0x70] sm:$0xff]
    %v1505 = vld [vmem:[#allocation13 + $0x78] sm:$0xff]
    %v1506 = vld [vmem:[#allocation13 + $0x80] sm:$0xff]
    %v1507 = vld [vmem:[#allocation13 + $0x88] sm:$0xff]
    %v1508 = vld [vmem:[#allocation13 + $0x90] sm:$0xff]
    %v1509 = vld [vmem:[#allocation13 + $0x98] sm:$0xff]
    %v1510 = vld [vmem:[#allocation13 + $0xa0] sm:$0xff]
    %v1511 = vld [vmem:[#allocation13 + $0xa8] sm:$0xff]
    %v1512 = vld [vmem:[#allocation13 + $0xb0] sm:$0xff]
    %v1513 = vld [vmem:[#allocation13 + $0xb8] sm:$0xff]
    %v1514 = vld [vmem:[#allocation13 + $0xc0] sm:$0xff]
    %v1515 = vld [vmem:[#allocation13 + $0xc8] sm:$0xff]
    %v1516 = vld [vmem:[#allocation13 + $0xd0] sm:$0xff]
    %v1517 = vld [vmem:[#allocation13 + $0xd8] sm:$0xff]
    %v1518 = vld [vmem:[#allocation13 + $0xe0] sm:$0xff]
    %v1519 = vld [vmem:[#allocation13 + $0xe8] sm:$0xff]
    %v1520 = vld [vmem:[#allocation13 + $0xf0] sm:$0xff]
    %v1521 = vld [vmem:[#allocation13 + $0xf8] sm:$0xff]
    %v1522 = vld [vmem:[#allocation13 + $0x100] sm:$0xff]
    %v1523 = vld [vmem:[#allocation13 + $0x108] sm:$0xff]
    %v1524 = vld [vmem:[#allocation13 + $0x110] sm:$0xff]
    %v1525 = vld [vmem:[#allocation13 + $0x118] sm:$0xff]
    %v1526 = vld [vmem:[#allocation13 + $0x120] sm:$0xff]
    %v1527 = vld [vmem:[#allocation13 + $0x128] sm:$0xff]
    %v1528 = vld [vmem:[#allocation13 + $0x130] sm:$0xff]
    %v1529 = vld [vmem:[#allocation13 + $0x138] sm:$0xff]
    %v1530 = vld [vmem:[#allocation13 + $0x140] sm:$0xff]
    %v1531 = vld [vmem:[#allocation13 + $0x148] sm:$0xff]
    %v1532 = vld [vmem:[#allocation13 + $0x150] sm:$0xff]
    %v1533 = vld [vmem:[#allocation13 + $0x158] sm:$0xff]
    %v1534 = vld [vmem:[#allocation13 + $0x160] sm:$0xff]
    %v1535 = vld [vmem:[#allocation13 + $0x168] sm:$0xff]
    %v1536 = vld [vmem:[#allocation13 + $0x170] sm:$0xff]
    %v1537 = vld [vmem:[#allocation13 + $0x178] sm:$0xff]
    %v1538 = vld [vmem:[#allocation13 + $0x180] sm:$0xff]
    %v1539 = vld [vmem:[#allocation13 + $0x188] sm:$0xff]
    %v1540 = vld [vmem:[#allocation13 + $0x190] sm:$0xff]
    %v1541 = vld [vmem:[#allocation13 + $0x198] sm:$0xff]
    %v1542 = vld [vmem:[#allocation13 + $0x1a0] sm:$0xff]
    %v1543 = vld [vmem:[#allocation13 + $0x1a8] sm:$0xff]
    %v1544 = vld [vmem:[#allocation13 + $0x1b0] sm:$0xff]
    %v1545 = vld [vmem:[#allocation13 + $0x1b8] sm:$0xff]
    %v1546 = vld [vmem:[#allocation13 + $0x1c0] sm:$0xff]
    %v1547 = vld [vmem:[#allocation13 + $0x1c8] sm:$0xff]
    %v1548 = vld [vmem:[#allocation13 + $0x1d0] sm:$0xff]
    %v1549 = vld [vmem:[#allocation13 + $0x1d8] sm:$0xff]
    %v1550 = vld [vmem:[#allocation13 + $0x1e0] sm:$0xff]
    %v1551 = vld [vmem:[#allocation13 + $0x1e8] sm:$0xff]
    %v1552 = vld [vmem:[#allocation13 + $0x1f0] sm:$0xff]
    %v1553 = vld [vmem:[#allocation13 + $0x1f8] sm:$0xff]
    %v1554 = vld [vmem:[%s11] sm:$0xf]
    %v1556 = vlaneseq
    %v1557 = vshrl.u32 %v1556, 7
    %v1558 = vsub.s32 0, %v1557
    %v1559 = vrot.slane %v1554, %v1558
    %v1560 = vlaneseq
    %v1561 = vshrl.u32 %v1560, 7
    %v1562 = vsub.s32 1, %v1561
    %v1563 = vrot.slane %v1554, %v1562
    %v1564 = vlaneseq
    %v1565 = vshrl.u32 %v1564, 7
    %v1566 = vsub.s32 2, %v1565
    %v1567 = vrot.slane %v1554, %v1566
    %v1568 = vlaneseq
    %v1569 = vshrl.u32 %v1568, 7
    %v1570 = vsub.s32 3, %v1569
    %v1571 = vrot.slane %v1554, %v1570
    %v1640 = vunpack.c.l.b16 %v1490
    %v1641 = vunpack.c.h.b16 %v1490
    %v1642 = vunpack.c.l.b16 %v1491
    %v1643 = vunpack.c.h.b16 %v1491
    %v1644 = vunpack.c.l.b16 %v1492
    %v1645 = vunpack.c.h.b16 %v1492
    %v1646 = vunpack.c.l.b16 %v1493
    %v1647 = vunpack.c.h.b16 %v1493
    %v1648 = vunpack.c.l.b16 %v1494
    %v1649 = vunpack.c.h.b16 %v1494
    %v1650 = vunpack.c.l.b16 %v1495
    %v1651 = vunpack.c.h.b16 %v1495
    %v1652 = vunpack.c.l.b16 %v1496
    %v1653 = vunpack.c.h.b16 %v1496
    %v1654 = vunpack.c.l.b16 %v1497
    %v1655 = vunpack.c.h.b16 %v1497
    %v1656 = vunpack.c.l.b16 %v1498
    %v1657 = vunpack.c.h.b16 %v1498
    %v1658 = vunpack.c.l.b16 %v1499
    %v1659 = vunpack.c.h.b16 %v1499
    %v1660 = vunpack.c.l.b16 %v1500
    %v1661 = vunpack.c.h.b16 %v1500
    %v1662 = vunpack.c.l.b16 %v1501
    %v1663 = vunpack.c.h.b16 %v1501
    %v1664 = vunpack.c.l.b16 %v1502
    %v1665 = vunpack.c.h.b16 %v1502
    %v1666 = vunpack.c.l.b16 %v1503
    %v1667 = vunpack.c.h.b16 %v1503
    %v1668 = vunpack.c.l.b16 %v1504
    %v1669 = vunpack.c.h.b16 %v1504
    %v1670 = vunpack.c.l.b16 %v1505
    %v1671 = vunpack.c.h.b16 %v1505
    %v1672 = vunpack.c.l.b16 %v1506
    %v1673 = vunpack.c.h.b16 %v1506
    %v1674 = vunpack.c.l.b16 %v1507
    %v1675 = vunpack.c.h.b16 %v1507
    %v1676 = vunpack.c.l.b16 %v1508
    %v1677 = vunpack.c.h.b16 %v1508
    %v1678 = vunpack.c.l.b16 %v1509
    %v1679 = vunpack.c.h.b16 %v1509
    %v1680 = vunpack.c.l.b16 %v1510
    %v1681 = vunpack.c.h.b16 %v1510
    %v1682 = vunpack.c.l.b16 %v1511
    %v1683 = vunpack.c.h.b16 %v1511
    %v1684 = vunpack.c.l.b16 %v1512
    %v1685 = vunpack.c.h.b16 %v1512
    %v1686 = vunpack.c.l.b16 %v1513
    %v1687 = vunpack.c.h.b16 %v1513
    %v1688 = vunpack.c.l.b16 %v1514
    %v1689 = vunpack.c.h.b16 %v1514
    %v1690 = vunpack.c.l.b16 %v1515
    %v1691 = vunpack.c.h.b16 %v1515
    %v1692 = vunpack.c.l.b16 %v1516
    %v1693 = vunpack.c.h.b16 %v1516
    %v1694 = vunpack.c.l.b16 %v1517
    %v1695 = vunpack.c.h.b16 %v1517
    %v1696 = vunpack.c.l.b16 %v1518
    %v1697 = vunpack.c.h.b16 %v1518
    %v1698 = vunpack.c.l.b16 %v1519
    %v1699 = vunpack.c.h.b16 %v1519
    %v1700 = vunpack.c.l.b16 %v1520
    %v1701 = vunpack.c.h.b16 %v1520
    %v1702 = vunpack.c.l.b16 %v1521
    %v1703 = vunpack.c.h.b16 %v1521
    %v1704 = vunpack.c.l.b16 %v1522
    %v1705 = vunpack.c.h.b16 %v1522
    %v1706 = vunpack.c.l.b16 %v1523
    %v1707 = vunpack.c.h.b16 %v1523
    %v1708 = vunpack.c.l.b16 %v1524
    %v1709 = vunpack.c.h.b16 %v1524
    %v1710 = vunpack.c.l.b16 %v1525
    %v1711 = vunpack.c.h.b16 %v1525
    %v1712 = vunpack.c.l.b16 %v1526
    %v1713 = vunpack.c.h.b16 %v1526
    %v1714 = vunpack.c.l.b16 %v1527
    %v1715 = vunpack.c.h.b16 %v1527
    %v1716 = vunpack.c.l.b16 %v1528
    %v1717 = vunpack.c.h.b16 %v1528
    %v1718 = vunpack.c.l.b16 %v1529
    %v1719 = vunpack.c.h.b16 %v1529
    %v1720 = vunpack.c.l.b16 %v1530
    %v1721 = vunpack.c.h.b16 %v1530
    %v1722 = vunpack.c.l.b16 %v1531
    %v1723 = vunpack.c.h.b16 %v1531
    %v1724 = vunpack.c.l.b16 %v1532
    %v1725 = vunpack.c.h.b16 %v1532
    %v1726 = vunpack.c.l.b16 %v1533
    %v1727 = vunpack.c.h.b16 %v1533
    %v1728 = vunpack.c.l.b16 %v1534
    %v1729 = vunpack.c.h.b16 %v1534
    %v1730 = vunpack.c.l.b16 %v1535
    %v1731 = vunpack.c.h.b16 %v1535
    %v1732 = vunpack.c.l.b16 %v1536
    %v1733 = vunpack.c.h.b16 %v1536
    %v1734 = vunpack.c.l.b16 %v1537
    %v1735 = vunpack.c.h.b16 %v1537
    %v1736 = vunpack.c.l.b16 %v1538
    %v1737 = vunpack.c.h.b16 %v1538
    %v1738 = vunpack.c.l.b16 %v1539
    %v1739 = vunpack.c.h.b16 %v1539
    %v1740 = vunpack.c.l.b16 %v1540
    %v1741 = vunpack.c.h.b16 %v1540
    %v1742 = vunpack.c.l.b16 %v1541
    %v1743 = vunpack.c.h.b16 %v1541
    %v1744 = vunpack.c.l.b16 %v1542
    %v1745 = vunpack.c.h.b16 %v1542
    %v1746 = vunpack.c.l.b16 %v1543
    %v1747 = vunpack.c.h.b16 %v1543
    %v1748 = vunpack.c.l.b16 %v1544
    %v1749 = vunpack.c.h.b16 %v1544
    %v1750 = vunpack.c.l.b16 %v1545
    %v1751 = vunpack.c.h.b16 %v1545
    %v1752 = vunpack.c.l.b16 %v1546
    %v1753 = vunpack.c.h.b16 %v1546
    %v1754 = vunpack.c.l.b16 %v1547
    %v1755 = vunpack.c.h.b16 %v1547
    %v1756 = vunpack.c.l.b16 %v1548
    %v1757 = vunpack.c.h.b16 %v1548
    %v1758 = vunpack.c.l.b16 %v1549
    %v1759 = vunpack.c.h.b16 %v1549
    %v1760 = vunpack.c.l.b16 %v1550
    %v1761 = vunpack.c.h.b16 %v1550
    %v1762 = vunpack.c.l.b16 %v1551
    %v1763 = vunpack.c.h.b16 %v1551
    %v1764 = vunpack.c.l.b16 %v1552
    %v1765 = vunpack.c.h.b16 %v1552
    %v1766 = vunpack.c.l.b16 %v1553
    %v1767 = vunpack.c.h.b16 %v1553
    %v1768 = vpack.c.b16 %v1644, %v1640
    %v1769 = vpack.c.b16 %v1645, %v1641
    %v1770 = vpack.c.b16 %v1646, %v1642
    %v1771 = vpack.c.b16 %v1647, %v1643
    %v1772 = vpack.c.b16 %v1652, %v1648
    %v1773 = vpack.c.b16 %v1653, %v1649
    %v1774 = vpack.c.b16 %v1654, %v1650
    %v1775 = vpack.c.b16 %v1655, %v1651
    %v1776 = vpack.c.b16 %v1660, %v1656
    %v1777 = vpack.c.b16 %v1661, %v1657
    %v1778 = vpack.c.b16 %v1662, %v1658
    %v1779 = vpack.c.b16 %v1663, %v1659
    %v1780 = vpack.c.b16 %v1668, %v1664
    %v1781 = vpack.c.b16 %v1669, %v1665
    %v1782 = vpack.c.b16 %v1670, %v1666
    %v1783 = vpack.c.b16 %v1671, %v1667
    %v1784 = vpack.c.b16 %v1676, %v1672
    %v1785 = vpack.c.b16 %v1677, %v1673
    %v1786 = vpack.c.b16 %v1678, %v1674
    %v1787 = vpack.c.b16 %v1679, %v1675
    %v1788 = vpack.c.b16 %v1684, %v1680
    %v1789 = vpack.c.b16 %v1685, %v1681
    %v1790 = vpack.c.b16 %v1686, %v1682
    %v1791 = vpack.c.b16 %v1687, %v1683
    %v1792 = vpack.c.b16 %v1692, %v1688
    %v1793 = vpack.c.b16 %v1693, %v1689
    %v1794 = vpack.c.b16 %v1694, %v1690
    %v1795 = vpack.c.b16 %v1695, %v1691
    %v1796 = vpack.c.b16 %v1700, %v1696
    %v1797 = vpack.c.b16 %v1701, %v1697
    %v1798 = vpack.c.b16 %v1702, %v1698
    %v1799 = vpack.c.b16 %v1703, %v1699
    %v1800 = vpack.c.b16 %v1708, %v1704
    %v1801 = vpack.c.b16 %v1709, %v1705
    %v1802 = vpack.c.b16 %v1710, %v1706
    %v1803 = vpack.c.b16 %v1711, %v1707
    %v1804 = vpack.c.b16 %v1716, %v1712
    %v1805 = vpack.c.b16 %v1717, %v1713
    %v1806 = vpack.c.b16 %v1718, %v1714
    %v1807 = vpack.c.b16 %v1719, %v1715
    %v1808 = vpack.c.b16 %v1724, %v1720
    %v1809 = vpack.c.b16 %v1725, %v1721
    %v1810 = vpack.c.b16 %v1726, %v1722
    %v1811 = vpack.c.b16 %v1727, %v1723
    %v1812 = vpack.c.b16 %v1732, %v1728
    %v1813 = vpack.c.b16 %v1733, %v1729
    %v1814 = vpack.c.b16 %v1734, %v1730
    %v1815 = vpack.c.b16 %v1735, %v1731
    %v1816 = vpack.c.b16 %v1740, %v1736
    %v1817 = vpack.c.b16 %v1741, %v1737
    %v1818 = vpack.c.b16 %v1742, %v1738
    %v1819 = vpack.c.b16 %v1743, %v1739
    %v1820 = vpack.c.b16 %v1748, %v1744
    %v1821 = vpack.c.b16 %v1749, %v1745
    %v1822 = vpack.c.b16 %v1750, %v1746
    %v1823 = vpack.c.b16 %v1751, %v1747
    %v1824 = vpack.c.b16 %v1756, %v1752
    %v1825 = vpack.c.b16 %v1757, %v1753
    %v1826 = vpack.c.b16 %v1758, %v1754
    %v1827 = vpack.c.b16 %v1759, %v1755
    %v1828 = vpack.c.b16 %v1764, %v1760
    %v1829 = vpack.c.b16 %v1765, %v1761
    %v1830 = vpack.c.b16 %v1766, %v1762
    %v1831 = vpack.c.b16 %v1767, %v1763
    %1896 = vmatprep.subr.bf16.mxu0 %v1769
    %1897 = vmatpush1.bf16.msra.mxu0 %v1768
    %1898 = vmatprep.subr.bf16.mxu0 %v1773
    %1899 = vmatpush1.bf16.msra.mxu0 %v1772
    %1900 = vmatprep.subr.bf16.mxu0 %v1777
    %1901 = vmatpush1.bf16.msra.mxu0 %v1776
    %1902 = vmatprep.subr.bf16.mxu0 %v1781
    %1903 = vmatpush1.bf16.msra.mxu0 %v1780
    %1904 = vmatprep.subr.bf16.mxu0 %v1785
    %1905 = vmatpush1.bf16.msra.mxu0 %v1784
    %1906 = vmatprep.subr.bf16.mxu0 %v1789
    %1907 = vmatpush1.bf16.msra.mxu0 %v1788
    %1908 = vmatprep.subr.bf16.mxu0 %v1793
    %1909 = vmatpush1.bf16.msra.mxu0 %v1792
    %1910 = vmatprep.subr.bf16.mxu0 %v1797
    %1911 = vmatpush1.bf16.msra.mxu0 %v1796
    %1912 = vmatprep.subr.bf16.mxu0 %v1801
    %1913 = vmatpush1.bf16.msra.mxu0 %v1800
    %1914 = vmatprep.subr.bf16.mxu0 %v1805
    %1915 = vmatpush1.bf16.msra.mxu0 %v1804
    %1916 = vmatprep.subr.bf16.mxu0 %v1809
    %1917 = vmatpush1.bf16.msra.mxu0 %v1808
    %1918 = vmatprep.subr.bf16.mxu0 %v1813
    %1919 = vmatpush1.bf16.msra.mxu0 %v1812
    %1920 = vmatprep.subr.bf16.mxu0 %v1817
    %1921 = vmatpush1.bf16.msra.mxu0 %v1816
    %1922 = vmatprep.subr.bf16.mxu0 %v1821
    %1923 = vmatpush1.bf16.msra.mxu0 %v1820
    %1924 = vmatprep.subr.bf16.mxu0 %v1825
    %1925 = vmatpush1.bf16.msra.mxu0 %v1824
    %1926 = vmatprep.subr.bf16.mxu0 %v1829
    %1927 = vmatpush1.bf16.msra.mxu0 %v1828
    %1928 = vmatprep.mubr.bf16.mxu0 %v1489
    %1929 = vmatmul.mubr.bf16.gmra.mrb[0].mxu0 %v1488
    %v1930 = vpop.f32.mrb[0].mxu0
    %v1931 = vadd.f32 %v1559, %v1930
    %v1932 = vpop.f32.mrb[0].mxu0
    %v1933 = vadd.f32 %v1563, %v1932
    %v1934 = vpop.f32.mrb[0].mxu0
    %v1935 = vadd.f32 %v1559, %v1934
    %v1936 = vpop.f32.mrb[0].mxu0
    %v1937 = vadd.f32 %v1563, %v1936
    %1938 = vdwg.mxu0
    %1939 = vmatprep.subr.bf16.mxu0 %v1771
    %1940 = vmatpush1.bf16.msra.mxu0 %v1770
    %1941 = vmatprep.subr.bf16.mxu0 %v1775
    %1942 = vmatpush1.bf16.msra.mxu0 %v1774
    %1943 = vmatprep.subr.bf16.mxu0 %v1779
    %1944 = vmatpush1.bf16.msra.mxu0 %v1778
    %1945 = vmatprep.subr.bf16.mxu0 %v1783
    %1946 = vmatpush1.bf16.msra.mxu0 %v1782
    %1947 = vmatprep.subr.bf16.mxu0 %v1787
    %1948 = vmatpush1.bf16.msra.mxu0 %v1786
    %1949 = vmatprep.subr.bf16.mxu0 %v1791
    %1950 = vmatpush1.bf16.msra.mxu0 %v1790
    %1951 = vmatprep.subr.bf16.mxu0 %v1795
    %1952 = vmatpush1.bf16.msra.mxu0 %v1794
    %1953 = vmatprep.subr.bf16.mxu0 %v1799
    %1954 = vmatpush1.bf16.msra.mxu0 %v1798
    %1955 = vmatprep.subr.bf16.mxu0 %v1803
    %1956 = vmatpush1.bf16.msra.mxu0 %v1802
    %1957 = vmatprep.subr.bf16.mxu0 %v1807
    %1958 = vmatpush1.bf16.msra.mxu0 %v1806
    %1959 = vmatprep.subr.bf16.mxu0 %v1811
    %1960 = vmatpush1.bf16.msra.mxu0 %v1810
    %1961 = vmatprep.subr.bf16.mxu0 %v1815
    %1962 = vmatpush1.bf16.msra.mxu0 %v1814
    %1963 = vmatprep.subr.bf16.mxu0 %v1819
    %1964 = vmatpush1.bf16.msra.mxu0 %v1818
    %1965 = vmatprep.subr.bf16.mxu0 %v1823
    %1966 = vmatpush1.bf16.msra.mxu0 %v1822
    %1967 = vmatprep.subr.bf16.mxu0 %v1827
    %1968 = vmatpush1.bf16.msra.mxu0 %v1826
    %1969 = vmatprep.subr.bf16.mxu0 %v1831
    %1970 = vmatpush1.bf16.msra.mxu0 %v1830
    %1971 = vmatprep.mubr.bf16.mxu0 %v1489
    %1972 = vmatmul.mubr.bf16.gmra.mrb[0].mxu0 %v1488
    %v1973 = vpop.f32.mrb[0].mxu0
    %v1974 = vadd.f32 %v1567, %v1973
    %v1975 = vpop.f32.mrb[0].mxu0
    %v1976 = vadd.f32 %v1571, %v1975
    %v1977 = vpop.f32.mrb[0].mxu0
    %v1978 = vadd.f32 %v1567, %v1977
    %v1979 = vpop.f32.mrb[0].mxu0
    %v1980 = vadd.f32 %v1571, %v1979
    %1981 = vdwg.mxu0
    %v1982 = vmax.f32 %v1931, 0.0
    %v1983 = vmax.f32 %v1933, 0.0
    %v1984 = vmax.f32 %v1974, 0.0
    %v1985 = vmax.f32 %v1976, 0.0
    %v1986 = vmax.f32 %v1935, 0.0
    %v1987 = vmax.f32 %v1937, 0.0
    %v1988 = vmax.f32 %v1978, 0.0
    %v1989 = vmax.f32 %v1980, 0.0
    %v1990 = vpack.c.bf16 %v1986, %v1982
    %v1991 = vpack.c.bf16 %v1987, %v1983
    %v1992 = vpack.c.bf16 %v1988, %v1984
    %v1993 = vpack.c.bf16 %v1989, %v1985
    %v1994 = vld [vmem:[#allocation14] sm:$0xf]
    %v1995 = vld [vmem:[#allocation14 + $0x4] sm:$0xf]
    %v1996 = vld [vmem:[#allocation14 + $0x8] sm:$0xf]
    %v1997 = vld [vmem:[#allocation14 + $0xc] sm:$0xf]
    %v1998 = vld [vmem:[#allocation14 + $0x10] sm:$0xf]
    %v1999 = vld [vmem:[#allocation14 + $0x14] sm:$0xf]
    %v2000 = vld [vmem:[#allocation14 + $0x18] sm:$0xf]
    %v2001 = vld [vmem:[#allocation14 + $0x1c] sm:$0xf]
    %v2002 = vld [vmem:[#allocation14 + $0x20] sm:$0xf]
    %v2003 = vld [vmem:[#allocation14 + $0x24] sm:$0xf]
    %v2004 = vld [vmem:[#allocation14 + $0x28] sm:$0xf]
    %v2005 = vld [vmem:[#allocation14 + $0x2c] sm:$0xf]
    %v2006 = vld [vmem:[#allocation14 + $0x30] sm:$0xf]
    %v2007 = vld [vmem:[#allocation14 + $0x34] sm:$0xf]
    %v2008 = vld [vmem:[#allocation14 + $0x38] sm:$0xf]
    %v2009 = vld [vmem:[#allocation14 + $0x3c] sm:$0xf]
    %v2010 = vld [vmem:[#allocation14 + $0x40] sm:$0xf]
    %v2011 = vld [vmem:[#allocation14 + $0x44] sm:$0xf]
    %v2012 = vld [vmem:[#allocation14 + $0x48] sm:$0xf]
    %v2013 = vld [vmem:[#allocation14 + $0x4c] sm:$0xf]
    %v2014 = vld [vmem:[#allocation14 + $0x50] sm:$0xf]
    %v2015 = vld [vmem:[#allocation14 + $0x54] sm:$0xf]
    %v2016 = vld [vmem:[#allocation14 + $0x58] sm:$0xf]
    %v2017 = vld [vmem:[#allocation14 + $0x5c] sm:$0xf]
    %v2018 = vld [vmem:[#allocation14 + $0x60] sm:$0xf]
    %v2019 = vld [vmem:[#allocation14 + $0x64] sm:$0xf]
    %v2020 = vld [vmem:[#allocation14 + $0x68] sm:$0xf]
    %v2021 = vld [vmem:[#allocation14 + $0x6c] sm:$0xf]
    %v2022 = vld [vmem:[#allocation14 + $0x70] sm:$0xf]
    %v2023 = vld [vmem:[#allocation14 + $0x74] sm:$0xf]
    %v2024 = vld [vmem:[#allocation14 + $0x78] sm:$0xf]
    %v2025 = vld [vmem:[#allocation14 + $0x7c] sm:$0xf]
    %v2026 = vld [vmem:[#allocation14 + $0x80] sm:$0xf]
    %v2027 = vld [vmem:[#allocation14 + $0x84] sm:$0xf]
    %v2028 = vld [vmem:[#allocation14 + $0x88] sm:$0xf]
    %v2029 = vld [vmem:[#allocation14 + $0x8c] sm:$0xf]
    %v2030 = vld [vmem:[#allocation14 + $0x90] sm:$0xf]
    %v2031 = vld [vmem:[#allocation14 + $0x94] sm:$0xf]
    %v2032 = vld [vmem:[#allocation14 + $0x98] sm:$0xf]
    %v2033 = vld [vmem:[#allocation14 + $0x9c] sm:$0xf]
    %v2034 = vld [vmem:[#allocation14 + $0xa0] sm:$0xf]
    %v2035 = vld [vmem:[#allocation14 + $0xa4] sm:$0xf]
    %v2036 = vld [vmem:[#allocation14 + $0xa8] sm:$0xf]
    %v2037 = vld [vmem:[#allocation14 + $0xac] sm:$0xf]
    %v2038 = vld [vmem:[#allocation14 + $0xb0] sm:$0xf]
    %v2039 = vld [vmem:[#allocation14 + $0xb4] sm:$0xf]
    %v2040 = vld [vmem:[#allocation14 + $0xb8] sm:$0xf]
    %v2041 = vld [vmem:[#allocation14 + $0xbc] sm:$0xf]
    %v2042 = vld [vmem:[#allocation14 + $0xc0] sm:$0xf]
    %v2043 = vld [vmem:[#allocation14 + $0xc4] sm:$0xf]
    %v2044 = vld [vmem:[#allocation14 + $0xc8] sm:$0xf]
    %v2045 = vld [vmem:[#allocation14 + $0xcc] sm:$0xf]
    %v2046 = vld [vmem:[#allocation14 + $0xd0] sm:$0xf]
    %v2047 = vld [vmem:[#allocation14 + $0xd4] sm:$0xf]
    %v2048 = vld [vmem:[#allocation14 + $0xd8] sm:$0xf]
    %v2049 = vld [vmem:[#allocation14 + $0xdc] sm:$0xf]
    %v2050 = vld [vmem:[#allocation14 + $0xe0] sm:$0xf]
    %v2051 = vld [vmem:[#allocation14 + $0xe4] sm:$0xf]
    %v2052 = vld [vmem:[#allocation14 + $0xe8] sm:$0xf]
    %v2053 = vld [vmem:[#allocation14 + $0xec] sm:$0xf]
    %v2054 = vld [vmem:[#allocation14 + $0xf0] sm:$0xf]
    %v2055 = vld [vmem:[#allocation14 + $0xf4] sm:$0xf]
    %v2056 = vld [vmem:[#allocation14 + $0xf8] sm:$0xf]
    %v2057 = vld [vmem:[#allocation14 + $0xfc] sm:$0xf]
    %v2058 = vld [vmem:[%s13] sm:$0x1]
    %v2060 = vlaneseq
    %v2061 = vshrl.u32 %v2060, 7
    %v2062 = vsub.s32 0, %v2061
    %v2063 = vrot.slane %v2058, %v2062
    %v2129 = vunpack.c.l.b16 %v1994
    %v2130 = vunpack.c.l.b16 %v1995
    %v2131 = vunpack.c.l.b16 %v1996
    %v2132 = vunpack.c.l.b16 %v1997
    %v2133 = vunpack.c.l.b16 %v1998
    %v2134 = vunpack.c.l.b16 %v1999
    %v2135 = vunpack.c.l.b16 %v2000
    %v2136 = vunpack.c.l.b16 %v2001
    %v2137 = vunpack.c.l.b16 %v2002
    %v2138 = vunpack.c.l.b16 %v2003
    %v2139 = vunpack.c.l.b16 %v2004
    %v2140 = vunpack.c.l.b16 %v2005
    %v2141 = vunpack.c.l.b16 %v2006
    %v2142 = vunpack.c.l.b16 %v2007
    %v2143 = vunpack.c.l.b16 %v2008
    %v2144 = vunpack.c.l.b16 %v2009
    %v2145 = vunpack.c.l.b16 %v2010
    %v2146 = vunpack.c.l.b16 %v2011
    %v2147 = vunpack.c.l.b16 %v2012
    %v2148 = vunpack.c.l.b16 %v2013
    %v2149 = vunpack.c.l.b16 %v2014
    %v2150 = vunpack.c.l.b16 %v2015
    %v2151 = vunpack.c.l.b16 %v2016
    %v2152 = vunpack.c.l.b16 %v2017
    %v2153 = vunpack.c.l.b16 %v2018
    %v2154 = vunpack.c.l.b16 %v2019
    %v2155 = vunpack.c.l.b16 %v2020
    %v2156 = vunpack.c.l.b16 %v2021
    %v2157 = vunpack.c.l.b16 %v2022
    %v2158 = vunpack.c.l.b16 %v2023
    %v2159 = vunpack.c.l.b16 %v2024
    %v2160 = vunpack.c.l.b16 %v2025
    %v2161 = vunpack.c.l.b16 %v2026
    %v2162 = vunpack.c.l.b16 %v2027
    %v2163 = vunpack.c.l.b16 %v2028
    %v2164 = vunpack.c.l.b16 %v2029
    %v2165 = vunpack.c.l.b16 %v2030
    %v2166 = vunpack.c.l.b16 %v2031
    %v2167 = vunpack.c.l.b16 %v2032
    %v2168 = vunpack.c.l.b16 %v2033
    %v2169 = vunpack.c.l.b16 %v2034
    %v2170 = vunpack.c.l.b16 %v2035
    %v2171 = vunpack.c.l.b16 %v2036
    %v2172 = vunpack.c.l.b16 %v2037
    %v2173 = vunpack.c.l.b16 %v2038
    %v2174 = vunpack.c.l.b16 %v2039
    %v2175 = vunpack.c.l.b16 %v2040
    %v2176 = vunpack.c.l.b16 %v2041
    %v2177 = vunpack.c.l.b16 %v2042
    %v2178 = vunpack.c.l.b16 %v2043
    %v2179 = vunpack.c.l.b16 %v2044
    %v2180 = vunpack.c.l.b16 %v2045
    %v2181 = vunpack.c.l.b16 %v2046
    %v2182 = vunpack.c.l.b16 %v2047
    %v2183 = vunpack.c.l.b16 %v2048
    %v2184 = vunpack.c.l.b16 %v2049
    %v2185 = vunpack.c.l.b16 %v2050
    %v2186 = vunpack.c.l.b16 %v2051
    %v2187 = vunpack.c.l.b16 %v2052
    %v2188 = vunpack.c.l.b16 %v2053
    %v2189 = vunpack.c.l.b16 %v2054
    %v2190 = vunpack.c.l.b16 %v2055
    %v2191 = vunpack.c.l.b16 %v2056
    %v2192 = vunpack.c.l.b16 %v2057
    %v2193 = vpack.c.b16 %v2130, %v2129
    %v2194 = vpack.c.b16 %v2132, %v2131
    %v2195 = vpack.c.b16 %v2134, %v2133
    %v2196 = vpack.c.b16 %v2136, %v2135
    %v2197 = vpack.c.b16 %v2138, %v2137
    %v2198 = vpack.c.b16 %v2140, %v2139
    %v2199 = vpack.c.b16 %v2142, %v2141
    %v2200 = vpack.c.b16 %v2144, %v2143
    %v2201 = vpack.c.b16 %v2146, %v2145
    %v2202 = vpack.c.b16 %v2148, %v2147
    %v2203 = vpack.c.b16 %v2150, %v2149
    %v2204 = vpack.c.b16 %v2152, %v2151
    %v2205 = vpack.c.b16 %v2154, %v2153
    %v2206 = vpack.c.b16 %v2156, %v2155
    %v2207 = vpack.c.b16 %v2158, %v2157
    %v2208 = vpack.c.b16 %v2160, %v2159
    %v2209 = vpack.c.b16 %v2162, %v2161
    %v2210 = vpack.c.b16 %v2164, %v2163
    %v2211 = vpack.c.b16 %v2166, %v2165
    %v2212 = vpack.c.b16 %v2168, %v2167
    %v2213 = vpack.c.b16 %v2170, %v2169
    %v2214 = vpack.c.b16 %v2172, %v2171
    %v2215 = vpack.c.b16 %v2174, %v2173
    %v2216 = vpack.c.b16 %v2176, %v2175
    %v2217 = vpack.c.b16 %v2178, %v2177
    %v2218 = vpack.c.b16 %v2180, %v2179
    %v2219 = vpack.c.b16 %v2182, %v2181
    %v2220 = vpack.c.b16 %v2184, %v2183
    %v2221 = vpack.c.b16 %v2186, %v2185
    %v2222 = vpack.c.b16 %v2188, %v2187
    %v2223 = vpack.c.b16 %v2190, %v2189
    %v2224 = vpack.c.b16 %v2192, %v2191
    %2257 = vmatprep.subr.bf16.mxu0 0
    %2258 = vmatpush1.bf16.msra.mxu0 %v2193
    %2259 = vmatprep.subr.bf16.mxu0 0
    %2260 = vmatpush1.bf16.msra.mxu0 %v2194
    %2261 = vmatprep.subr.bf16.mxu0 0
    %2262 = vmatpush1.bf16.msra.mxu0 %v2195
    %2263 = vmatprep.subr.bf16.mxu0 0
    %2264 = vmatpush1.bf16.msra.mxu0 %v2196
    %2265 = vmatprep.subr.bf16.mxu0 0
    %2266 = vmatpush1.bf16.msra.mxu0 %v2197
    %2267 = vmatprep.subr.bf16.mxu0 0
    %2268 = vmatpush1.bf16.msra.mxu0 %v2198
    %2269 = vmatprep.subr.bf16.mxu0 0
    %2270 = vmatpush1.bf16.msra.mxu0 %v2199
    %2271 = vmatprep.subr.bf16.mxu0 0
    %2272 = vmatpush1.bf16.msra.mxu0 %v2200
    %2273 = vmatprep.subr.bf16.mxu0 0
    %2274 = vmatpush1.bf16.msra.mxu0 %v2201
    %2275 = vmatprep.subr.bf16.mxu0 0
    %2276 = vmatpush1.bf16.msra.mxu0 %v2202
    %2277 = vmatprep.subr.bf16.mxu0 0
    %2278 = vmatpush1.bf16.msra.mxu0 %v2203
    %2279 = vmatprep.subr.bf16.mxu0 0
    %2280 = vmatpush1.bf16.msra.mxu0 %v2204
    %2281 = vmatprep.subr.bf16.mxu0 0
    %2282 = vmatpush1.bf16.msra.mxu0 %v2205
    %2283 = vmatprep.subr.bf16.mxu0 0
    %2284 = vmatpush1.bf16.msra.mxu0 %v2206
    %2285 = vmatprep.subr.bf16.mxu0 0
    %2286 = vmatpush1.bf16.msra.mxu0 %v2207
    %2287 = vmatprep.subr.bf16.mxu0 0
    %2288 = vmatpush1.bf16.msra.mxu0 %v2208
    %2289 = vmatprep.mubr.bf16.mxu0 %v1991
    %2290 = vmatmul.mubr.bf16.gmra.mrb[0].mxu0 %v1990
    %v2291 = vpop.f32.mrb[0].mxu0
    %v2292 = vadd.f32 %v2063, %v2291
    %v2293 = vpop.f32.mrb[0].mxu0
    %v2294 = vpop.f32.mrb[0].mxu0
    %v2295 = vadd.f32 %v2063, %v2294
    %v2296 = vpop.f32.mrb[0].mxu0
    %2297 = vdwg.mxu0
    %2298 = vmatprep.subr.bf16.mxu0 0
    %2299 = vmatpush1.bf16.msra.mxu0 %v2209
    %2300 = vmatprep.subr.bf16.mxu0 0
    %2301 = vmatpush1.bf16.msra.mxu0 %v2210
    %2302 = vmatprep.subr.bf16.mxu0 0
    %2303 = vmatpush1.bf16.msra.mxu0 %v2211
    %2304 = vmatprep.subr.bf16.mxu0 0
    %2305 = vmatpush1.bf16.msra.mxu0 %v2212
    %2306 = vmatprep.subr.bf16.mxu0 0
    %2307 = vmatpush1.bf16.msra.mxu0 %v2213
    %2308 = vmatprep.subr.bf16.mxu0 0
    %2309 = vmatpush1.bf16.msra.mxu0 %v2214
    %2310 = vmatprep.subr.bf16.mxu0 0
    %2311 = vmatpush1.bf16.msra.mxu0 %v2215
    %2312 = vmatprep.subr.bf16.mxu0 0
    %2313 = vmatpush1.bf16.msra.mxu0 %v2216
    %2314 = vmatprep.subr.bf16.mxu0 0
    %2315 = vmatpush1.bf16.msra.mxu0 %v2217
    %2316 = vmatprep.subr.bf16.mxu0 0
    %2317 = vmatpush1.bf16.msra.mxu0 %v2218
    %2318 = vmatprep.subr.bf16.mxu0 0
    %2319 = vmatpush1.bf16.msra.mxu0 %v2219
    %2320 = vmatprep.subr.bf16.mxu0 0
    %2321 = vmatpush1.bf16.msra.mxu0 %v2220
    %2322 = vmatprep.subr.bf16.mxu0 0
    %2323 = vmatpush1.bf16.msra.mxu0 %v2221
    %2324 = vmatprep.subr.bf16.mxu0 0
    %2325 = vmatpush1.bf16.msra.mxu0 %v2222
    %2326 = vmatprep.subr.bf16.mxu0 0
    %2327 = vmatpush1.bf16.msra.mxu0 %v2223
    %2328 = vmatprep.subr.bf16.mxu0 0
    %2329 = vmatpush1.bf16.msra.mxu0 %v2224
    %2330 = vmatprep.mubr.bf16.mxu0 %v1993
    %2331 = vmatmul.mubr.bf16.gmra.mrb[0].mxu0 %v1992
    %v2332 = vpop.f32.mrb[0].mxu0
    %v2333 = vadd.f32 %v2292, %v2332
    %v2334 = vpop.f32.mrb[0].mxu0
    %v2335 = vpop.f32.mrb[0].mxu0
    %v2336 = vadd.f32 %v2295, %v2335
    %v2337 = vpop.f32.mrb[0].mxu0
    %2338 = vdwg.mxu0
    %2339 = vst [vmem:[#allocation16] sm:$0xff] %v2333
    %2340 = vst [vmem:[#allocation16 + $0x8] sm:$0xff] %v2336
    // Predicated region
    $region90: #{tpu_custom_call.1} parent=1 // pred_check
      _
    $region91: #{tpu_custom_call.1} parent=1 // pred_check_branch
      %2342 = sbr.rel (0) target = $region93
    $region92: #{tpu_custom_call.1} parent=1 // pred_region
      %s2344 = ssub.s32 256, 256
      %2345 = vsyncadd [#allocation4], %s2344
      %s2346 = sshll.u32 [#allocation16], 4
      %s2347 = int_to_ptr.vmem [resolvable:$true] %s2346
      %2352 = dma.vmem_to_hbm [thread:$0]  %s2347, 256, %s14, [#allocation4], 128, 128, 8
    $region93: #{tpu_custom_call.1} parent=1 // pred_fallthru
      _
    // Predicated region
    $region94: #{tpu_custom_call.1} parent=1 // pred_check
      _
    $region95: #{tpu_custom_call.1} parent=1 // pred_check_branch
      %2354 = sbr.rel (0) target = $region97
    $region96: #{tpu_custom_call.1} parent=1 // pred_region
      %2355 = dma.done [#allocation4], 256
    $region97: #{tpu_custom_call.1} parent=1 // pred_fallthru
      _
    %2356 = vsyncpa [#allocation3], 1
    %2357 = vsyncpa [#allocation6], 1
    %2358 = vsyncpa [#allocation9], 1
    %2359 = vsyncpa [#allocation12], 1
    %2360 = vsyncpa [#allocation15], 1
    %2361 = vsyncpa [#allocation4], 1

// kernel: tpu_custom_call.1
$region0: #{tpu_custom_call.1}
  #allocation0 [shape = 'u32[]', space=smem, size = 0x4, offset = 0x4, fixed_abs, tag = 'smem constant byte address 0x4 - core index']
  #allocation1 [shape = 'u32[144,128]{1,0:T(1,128)}', space=vmem, size = 0x12000, scoped, tag = 'internal scratch']
  %s0 = inlined_call_operand.hbm [shape: bf16[16,128], index: 0, kind: input, shape index: {}]
  %s1 = inlined_call_operand.hbm [shape: bf16[16,128], index: 1, kind: input, shape index: {}]
  %s2 = inlined_call_operand.hbm [shape: bf16[128,512], index: 2, kind: input, shape index: {}]
  %s3 = inlined_call_operand.vmem [shape: f32[1,512], index: 3, kind: input, shape index: {}]
  %s4 = inlined_call_operand.hbm [shape: bf16[512,128], index: 4, kind: input, shape index: {}]
  %s5 = inlined_call_operand.vmem [shape: f32[1,128], index: 5, kind: input, shape index: {}]
  %s6 = inlined_call_operand.hbm [shape: bf16[128,512], index: 6, kind: input, shape index: {}]
  %s7 = inlined_call_operand.vmem [shape: f32[1,512], index: 7, kind: input, shape index: {}]
  %s8 = inlined_call_operand.hbm [shape: bf16[512,128], index: 8, kind: input, shape index: {}]
  %s9 = inlined_call_operand.vmem [shape: f32[1,128], index: 9, kind: input, shape index: {}]
  %s10 = inlined_call_operand.hbm [shape: bf16[256,512], index: 10, kind: input, shape index: {}]
  %s11 = inlined_call_operand.vmem [shape: f32[1,512], index: 11, kind: input, shape index: {}]
  %s12 = inlined_call_operand.hbm [shape: bf16[512,128], index: 12, kind: input, shape index: {}]
  %s13 = inlined_call_operand.vmem [shape: f32[1,128], index: 13, kind: input, shape index: {}]
  %s14 = inlined_call_operand.hbm [shape: f32[16,128], index: 14, kind: output, shape index: {}]
  %s15 = sld [smem:[#allocation0]]
  $region98: #{tpu_custom_call.1} parent=0
    _
  %s17 = ssub.s32 1, %s15
  %s18 = scalar_select 0, %s17, %s15
  $region1: #{tpu_custom_call.1} parent=0
    #allocation2 [shape = 'u8[4096]{0}', space=vmem, size = 0x1000, scoped, tag = 'input window, operand 0, single buffered']
    #allocation3 [shape = 's32[1]{0}', space=sflag, size = 0x4, scoped, tag = 'scoped memory for tpu_custom_call.1']
    #allocation4 [shape = 's32[1]{0}', space=sflag, size = 0x4, scoped, tag = 'scoped memory for tpu_custom_call.1']
    #allocation5 [shape = 'u8[4096]{0}', space=vmem, size = 0x1000, scoped, tag = 'input window, operand 1, single buffered']
    #allocation6 [shape = 's32[1]{0}', space=sflag, size = 0x4, scoped, tag = 'scoped memory for tpu_custom_call.1']
    #allocation7 [shape = 'u8[131072]{0}', space=vmem, size = 0x20000, scoped, tag = 'input window, operand 2, single buffered']
    #allocation8 [shape = 'u8[131072]{0}', space=vmem, size = 0x20000, scoped, tag = 'input window, operand 4, single buffered']
    #allocation9 [shape = 's32[1]{0}', space=sflag, size = 0x4, scoped, tag = 'scoped memory for tpu_custom_call.1']
    #allocation10 [shape = 'u8[131072]{0}', space=vmem, size = 0x20000, scoped, tag = 'input window, operand 6, single buffered']
    #allocation11 [shape = 'u8[131072]{0}', space=vmem, size = 0x20000, scoped, tag = 'input window, operand 8, single buffered']
    #allocation12 [shape = 's32[1]{0}', space=sflag, size = 0x4, scoped, tag = 'scoped memory for tpu_custom_call.1']
    #allocation13 [shape = 'u8[262144]{0}', space=vmem, size = 0x40000, scoped, tag = 'input window, operand 10, single buffered']
    #allocation14 [shape = 'u8[131072]{0}', space=vmem, size = 0x20000, scoped, tag = 'input window, operand 12, single buffered']
    #allocation15 [shape = 's32[1]{0}', space=sflag, size = 0x4, scoped, tag = 'scoped memory for tpu_custom_call.1']
    #allocation16 [shape = 'u8[8192]{0}', space=vmem, size = 0x2000, scoped, tag = 'output window, operand 0, single buffered']
    %19 = vsyncpa [#allocation3], 0
    %20 = vsyncpa [#allocation6], 0
    %21 = vsyncpa [#allocation9], 0
    %22 = vsyncpa [#allocation12], 0
    %23 = vsyncpa [#allocation15], 0
    %24 = vsyncpa [#allocation4], 0
    // Predicated region
    $region2: #{tpu_custom_call.1} parent=1 // pred_check
      _
    $region3: #{tpu_custom_call.1} parent=1 // pred_check_branch
      %26 = sbr.rel (0) target = $region5
    $region4: #{tpu_custom_call.1} parent=1 // pred_region
      %s28 = ssub.s32 128, 128
      %29 = vsyncadd [#allocation3], %s28
      %s30 = sshll.u32 [#allocation2], 4
      %s31 = int_to_ptr.vmem [resolvable:$true] %s30
      %36 = dma.hbm_to_vmem [thread:$0]  %s0, 128, %s31, [#allocation3], 64, 64, 4
    $region5: #{tpu_custom_call.1} parent=1 // pred_fallthru
      _
    // Predicated region
    $region6: #{tpu_custom_call.1} parent=1 // pred_check
      _
    $region7: #{tpu_custom_call.1} parent=1 // pred_check_branch
      %38 = sbr.rel (0) target = $region9
    $region8: #{tpu_custom_call.1} parent=1 // pred_region
      %s40 = ssub.s32 128, 128
      %41 = vsyncadd [#allocation6], %s40
      %s42 = sshll.u32 [#allocation5], 4
      %s43 = int_to_ptr.vmem [resolvable:$true] %s42
      %48 = dma.hbm_to_vmem [thread:$0]  %s1, 128, %s43, [#allocation6], 64, 64, 4
    $region9: #{tpu_custom_call.1} parent=1 // pred_fallthru
      _
    // Predicated region
    $region10: #{tpu_custom_call.1} parent=1 // pred_check
      _
    $region11: #{tpu_custom_call.1} parent=1 // pred_check_branch
      %50 = sbr.rel (0) target = $region13
    $region12: #{tpu_custom_call.1} parent=1 // pred_region
      %s52 = ssub.s32 4096, 4096
      %53 = vsyncadd [#allocation6], %s52
      %s54 = sshll.u32 [#allocation7], 4
      %s55 = int_to_ptr.vmem [resolvable:$true] %s54
      %60 = dma.hbm_to_vmem [thread:$0]  %s2, 4096, %s55, [#allocation6], 256, 256, 16
    $region13: #{tpu_custom_call.1} parent=1 // pred_fallthru
      _
    // Predicated region
    $region14: #{tpu_custom_call.1} parent=1 // pred_check
      _
    $region15: #{tpu_custom_call.1} parent=1 // pred_check_branch
      %62 = sbr.rel (0) target = $region17
    $region16: #{tpu_custom_call.1} parent=1 // pred_region
      _
    $region17: #{tpu_custom_call.1} parent=1 // pred_fallthru
      _
    // Predicated region
    $region18: #{tpu_custom_call.1} parent=1 // pred_check
      _
    $region19: #{tpu_custom_call.1} parent=1 // pred_check_branch
      %64 = sbr.rel (0) target = $region21
    $region20: #{tpu_custom_call.1} parent=1 // pred_region
      %s66 = ssub.s32 4096, 4096
      %67 = vsyncadd [#allocation9], %s66
      %s68 = sshll.u32 [#allocation8], 4
      %s69 = int_to_ptr.vmem [resolvable:$true] %s68
      %74 = dma.hbm_to_vmem [thread:$0]  %s4, 4096, %s69, [#allocation9], 64, 64, 4
    $region21: #{tpu_custom_call.1} parent=1 // pred_fallthru
      _
    // Predicated region
    $region22: #{tpu_custom_call.1} parent=1 // pred_check
      _
    $region23: #{tpu_custom_call.1} parent=1 // pred_check_branch
      %76 = sbr.rel (0) target = $region25
    $region24: #{tpu_custom_call.1} parent=1 // pred_region
      _
    $region25: #{tpu_custom_call.1} parent=1 // pred_fallthru
      _
    // Predicated region
    $region26: #{tpu_custom_call.1} parent=1 // pred_check
      _
    $region27: #{tpu_custom_call.1} parent=1 // pred_check_branch
      %78 = sbr.rel (0) target = $region29
    $region28: #{tpu_custom_call.1} parent=1 // pred_region
      %s80 = ssub.s32 4096, 4096
      %81 = vsyncadd [#allocation9], %s80
      %s82 = sshll.u32 [#allocation10], 4
      %s83 = int_to_ptr.vmem [resolvable:$true] %s82
      %88 = dma.hbm_to_vmem [thread:$0]  %s6, 4096, %s83, [#allocation9], 256, 256, 16
    $region29: #{tpu_custom_call.1} parent=1 // pred_fallthru
      _
    // Predicated region
    $region30: #{tpu_custom_call.1} parent=1 // pred_check
      _
    $region31: #{tpu_custom_call.1} parent=1 // pred_check_branch
      %90 = sbr.rel (0) target = $region33
    $region32: #{tpu_custom_call.1} parent=1 // pred_region
      _
    $region33: #{tpu_custom_call.1} parent=1 // pred_fallthru
      _
    // Predicated region
    $region34: #{tpu_custom_call.1} parent=1 // pred_check
      _
    $region35: #{tpu_custom_call.1} parent=1 // pred_check_branch
      %92 = sbr.rel (0) target = $region37
    $region36: #{tpu_custom_call.1} parent=1 // pred_region
      %s94 = ssub.s32 4096, 4096
      %95 = vsyncadd [#allocation12], %s94
      %s96 = sshll.u32 [#allocation11], 4
      %s97 = int_to_ptr.vmem [resolvable:$true] %s96
      %102 = dma.hbm_to_vmem [thread:$0]  %s8, 4096, %s97, [#allocation12], 64, 64, 4
    $region37: #{tpu_custom_call.1} parent=1 // pred_fallthru
      _
    // Predicated region
    $region38: #{tpu_custom_call.1} parent=1 // pred_check
      _
    $region39: #{tpu_custom_call.1} parent=1 // pred_check_branch
      %104 = sbr.rel (0) target = $region41
    $region40: #{tpu_custom_call.1} parent=1 // pred_region
      _
    $region41: #{tpu_custom_call.1} parent=1 // pred_fallthru
      _
    // Predicated region
    $region42: #{tpu_custom_call.1} parent=1 // pred_check
      _
    $region43: #{tpu_custom_call.1} parent=1 // pred_check_branch
      %106 = sbr.rel (0) target = $region45
    $region44: #{tpu_custom_call.1} parent=1 // pred_region
      %s108 = ssub.s32 8192, 8192
      %109 = vsyncadd [#allocation12], %s108
      %s110 = sshll.u32 [#allocation13], 4
      %s111 = int_to_ptr.vmem [resolvable:$true] %s110
      %116 = dma.hbm_to_vmem [thread:$0]  %s10, 8192, %s111, [#allocation12], 256, 256, 16
    $region45: #{tpu_custom_call.1} parent=1 // pred_fallthru
      _
    // Predicated region
    $region46: #{tpu_custom_call.1} parent=1 // pred_check
      _
    $region47: #{tpu_custom_call.1} parent=1 // pred_check_branch
      %118 = sbr.rel (0) target = $region49
    $region48: #{tpu_custom_call.1} parent=1 // pred_region
      _
    $region49: #{tpu_custom_call.1} parent=1 // pred_fallthru
      _
    // Predicated region
    $region50: #{tpu_custom_call.1} parent=1 // pred_check
      _
    $region51: #{tpu_custom_call.1} parent=1 // pred_check_branch
      %120 = sbr.rel (0) target = $region53
    $region52: #{tpu_custom_call.1} parent=1 // pred_region
      %s122 = ssub.s32 4096, 4096
      %123 = vsyncadd [#allocation15], %s122
      %s124 = sshll.u32 [#allocation14], 4
      %s125 = int_to_ptr.vmem [resolvable:$true] %s124
      %130 = dma.hbm_to_vmem [thread:$0]  %s12, 4096, %s125, [#allocation15], 64, 64, 4
    $region53: #{tpu_custom_call.1} parent=1 // pred_fallthru
      _
    // Predicated region
    $region54: #{tpu_custom_call.1} parent=1 // pred_check
      _
    $region55: #{tpu_custom_call.1} parent=1 // pred_check_branch
      %132 = sbr.rel (0) target = $region57
    $region56: #{tpu_custom_call.1} parent=1 // pred_region
      _
    $region57: #{tpu_custom_call.1} parent=1 // pred_fallthru
      _
    // Predicated region
    $region58: #{tpu_custom_call.1} parent=1 // pred_check
      _
    $region59: #{tpu_custom_call.1} parent=1 // pred_check_branch
      %134 = sbr.rel (0) target = $region61
    $region60: #{tpu_custom_call.1} parent=1 // pred_region
      %135 = dma.done [#allocation3], 128
    $region61: #{tpu_custom_call.1} parent=1 // pred_fallthru
      _
    // Predicated region
    $region62: #{tpu_custom_call.1} parent=1 // pred_check
      _
    $region63: #{tpu_custom_call.1} parent=1 // pred_check_branch
      %137 = sbr.rel (0) target = $region65
    $region64: #{tpu_custom_call.1} parent=1 // pred_region
      %138 = dma.done [#allocation6], 128
    $region65: #{tpu_custom_call.1} parent=1 // pred_fallthru
      _
    // Predicated region
    $region66: #{tpu_custom_call.1} parent=1 // pred_check
      _
    $region67: #{tpu_custom_call.1} parent=1 // pred_check_branch
      %140 = sbr.rel (0) target = $region69
    $region68: #{tpu_custom_call.1} parent=1 // pred_region
      %141 = dma.done [#allocation6], 4096
    $region69: #{tpu_custom_call.1} parent=1 // pred_fallthru
      _
    // Predicated region
    $region70: #{tpu_custom_call.1} parent=1 // pred_check
      _
    $region71: #{tpu_custom_call.1} parent=1 // pred_check_branch
      %143 = sbr.rel (0) target = $region73
    $region72: #{tpu_custom_call.1} parent=1 // pred_region
      %144 = dma.done [#allocation9], 4096
    $region73: #{tpu_custom_call.1} parent=1 // pred_fallthru
      _
    // Predicated region
    $region74: #{tpu_custom_call.1} parent=1 // pred_check
      _
    $region75: #{tpu_custom_call.1} parent=1 // pred_check_branch
      %146 = sbr.rel (0) target = $region77
    $region76: #{tpu_custom_call.1} parent=1 // pred_region
      %147 = dma.done [#allocation9], 4096
    $region77: #{tpu_custom_call.1} parent=1 // pred_fallthru
      _
    // Predicated region
    $region78: #{tpu_custom_call.1} parent=1 // pred_check
      _
    $region79: #{tpu_custom_call.1} parent=1 // pred_check_branch
      %149 = sbr.rel (0) target = $region81
    $region80: #{tpu_custom_call.1} parent=1 // pred_region
      %150 = dma.done [#allocation12], 4096
    $region81: #{tpu_custom_call.1} parent=1 // pred_fallthru
      _
    // Predicated region
    $region82: #{tpu_custom_call.1} parent=1 // pred_check
      _
    $region83: #{tpu_custom_call.1} parent=1 // pred_check_branch
      %152 = sbr.rel (0) target = $region85
    $region84: #{tpu_custom_call.1} parent=1 // pred_region
      %153 = dma.done [#allocation12], 8192
    $region85: #{tpu_custom_call.1} parent=1 // pred_fallthru
      _
    // Predicated region
    $region86: #{tpu_custom_call.1} parent=1 // pred_check
      _
    $region87: #{tpu_custom_call.1} parent=1 // pred_check_branch
      %155 = sbr.rel (0) target = $region89
    $region88: #{tpu_custom_call.1} parent=1 // pred_region
      %156 = dma.done [#allocation15], 4096
    $region89: #{tpu_custom_call.1} parent=1 // pred_fallthru
      _
    %v158 = vld [vmem:[#allocation2] sm:$0xf]
    %v159 = vld [vmem:[#allocation2 + $0x4] sm:$0xf]
    %v160 = vld [vmem:[#allocation5] sm:$0xf]
    %v161 = vld [vmem:[#allocation5 + $0x4] sm:$0xf]
    %v162 = vld [vmem:[#allocation7] sm:$0xff]
    %v163 = vld [vmem:[#allocation7 + $0x8] sm:$0xff]
    %v164 = vld [vmem:[#allocation7 + $0x10] sm:$0xff]
    %v165 = vld [vmem:[#allocation7 + $0x18] sm:$0xff]
    %v166 = vld [vmem:[#allocation7 + $0x20] sm:$0xff]
    %v167 = vld [vmem:[#allocation7 + $0x28] sm:$0xff]
    %v168 = vld [vmem:[#allocation7 + $0x30] sm:$0xff]
    %v169 = vld [vmem:[#allocation7 + $0x38] sm:$0xff]
    %v170 = vld [vmem:[#allocation7 + $0x40] sm:$0xff]
    %v171 = vld [vmem:[#allocation7 + $0x48] sm:$0xff]
    %v172 = vld [vmem:[#allocation7 + $0x50] sm:$0xff]
    %v173 = vld [vmem:[#allocation7 + $0x58] sm:$0xff]
    %v174 = vld [vmem:[#allocation7 + $0x60] sm:$0xff]
    %v175 = vld [vmem:[#allocation7 + $0x68] sm:$0xff]
    %v176 = vld [vmem:[#allocation7 + $0x70] sm:$0xff]
    %v177 = vld [vmem:[#allocation7 + $0x78] sm:$0xff]
    %v178 = vld [vmem:[#allocation7 + $0x80] sm:$0xff]
    %v179 = vld [vmem:[#allocation7 + $0x88] sm:$0xff]
    %v180 = vld [vmem:[#allocation7 + $0x90] sm:$0xff]
    %v181 = vld [vmem:[#allocation7 + $0x98] sm:$0xff]
    %v182 = vld [vmem:[#allocation7 + $0xa0] sm:$0xff]
    %v183 = vld [vmem:[#allocation7 + $0xa8] sm:$0xff]
    %v184 = vld [vmem:[#allocation7 + $0xb0] sm:$0xff]
    %v185 = vld [vmem:[#allocation7 + $0xb8] sm:$0xff]
    %v186 = vld [vmem:[#allocation7 + $0xc0] sm:$0xff]
    %v187 = vld [vmem:[#allocation7 + $0xc8] sm:$0xff]
    %v188 = vld [vmem:[#allocation7 + $0xd0] sm:$0xff]
    %v189 = vld [vmem:[#allocation7 + $0xd8] sm:$0xff]
    %v190 = vld [vmem:[#allocation7 + $0xe0] sm:$0xff]
    %v191 = vld [vmem:[#allocation7 + $0xe8] sm:$0xff]
    %v192 = vld [vmem:[#allocation7 + $0xf0] sm:$0xff]
    %v193 = vld [vmem:[#allocation7 + $0xf8] sm:$0xff]
    %v194 = vld [vmem:[%s3] sm:$0xf]
    %v196 = vlaneseq
    %v197 = vshrl.u32 %v196, 7
    %v198 = vsub.s32 0, %v197
    %v199 = vrot.slane %v194, %v198
    %v200 = vlaneseq
    %v201 = vshrl.u32 %v200, 7
    %v202 = vsub.s32 1, %v201
    %v203 = vrot.slane %v194, %v202
    %v204 = vlaneseq
    %v205 = vshrl.u32 %v204, 7
    %v206 = vsub.s32 2, %v205
    %v207 = vrot.slane %v194, %v206
    %v208 = vlaneseq
    %v209 = vshrl.u32 %v208, 7
    %v210 = vsub.s32 3, %v209
    %v211 = vrot.slane %v194, %v210
    %v218 = vunpack.c.l.b16 %v158
    %v219 = vunpack.c.l.b16 %v159
    %v220 = vpack.c.b16 %v219, %v218
    %v254 = vunpack.c.l.b16 %v162
    %v255 = vunpack.c.h.b16 %v162
    %v256 = vunpack.c.l.b16 %v163
    %v257 = vunpack.c.h.b16 %v163
    %v258 = vunpack.c.l.b16 %v164
    %v259 = vunpack.c.h.b16 %v164
    %v260 = vunpack.c.l.b16 %v165
    %v261 = vunpack.c.h.b16 %v165
    %v262 = vunpack.c.l.b16 %v166
    %v263 = vunpack.c.h.b16 %v166
    %v264 = vunpack.c.l.b16 %v167
    %v265 = vunpack.c.h.b16 %v167
    %v266 = vunpack.c.l.b16 %v168
    %v267 = vunpack.c.h.b16 %v168
    %v268 = vunpack.c.l.b16 %v169
    %v269 = vunpack.c.h.b16 %v169
    %v270 = vunpack.c.l.b16 %v170
    %v271 = vunpack.c.h.b16 %v170
    %v272 = vunpack.c.l.b16 %v171
    %v273 = vunpack.c.h.b16 %v171
    %v274 = vunpack.c.l.b16 %v172
    %v275 = vunpack.c.h.b16 %v172
    %v276 = vunpack.c.l.b16 %v173
    %v277 = vunpack.c.h.b16 %v173
    %v278 = vunpack.c.l.b16 %v174
    %v279 = vunpack.c.h.b16 %v174
    %v280 = vunpack.c.l.b16 %v175
    %v281 = vunpack.c.h.b16 %v175
    %v282 = vunpack.c.l.b16 %v176
    %v283 = vunpack.c.h.b16 %v176
    %v284 = vunpack.c.l.b16 %v177
    %v285 = vunpack.c.h.b16 %v177
    %v286 = vunpack.c.l.b16 %v178
    %v287 = vunpack.c.h.b16 %v178
    %v288 = vunpack.c.l.b16 %v179
    %v289 = vunpack.c.h.b16 %v179
    %v290 = vunpack.c.l.b16 %v180
    %v291 = vunpack.c.h.b16 %v180
    %v292 = vunpack.c.l.b16 %v181
    %v293 = vunpack.c.h.b16 %v181
    %v294 = vunpack.c.l.b16 %v182
    %v295 = vunpack.c.h.b16 %v182
    %v296 = vunpack.c.l.b16 %v183
    %v297 = vunpack.c.h.b16 %v183
    %v298 = vunpack.c.l.b16 %v184
    %v299 = vunpack.c.h.b16 %v184
    %v300 = vunpack.c.l.b16 %v185
    %v301 = vunpack.c.h.b16 %v185
    %v302 = vunpack.c.l.b16 %v186
    %v303 = vunpack.c.h.b16 %v186
    %v304 = vunpack.c.l.b16 %v187
    %v305 = vunpack.c.h.b16 %v187
    %v306 = vunpack.c.l.b16 %v188
    %v307 = vunpack.c.h.b16 %v188
    %v308 = vunpack.c.l.b16 %v189
    %v309 = vunpack.c.h.b16 %v189
    %v310 = vunpack.c.l.b16 %v190
    %v311 = vunpack.c.h.b16 %v190
    %v312 = vunpack.c.l.b16 %v191
    %v313 = vunpack.c.h.b16 %v191
    %v314 = vunpack.c.l.b16 %v192
    %v315 = vunpack.c.h.b16 %v192
    %v316 = vunpack.c.l.b16 %v193
    %v317 = vunpack.c.h.b16 %v193
    %v318 = vpack.c.b16 %v258, %v254
    %v319 = vpack.c.b16 %v259, %v255
    %v320 = vpack.c.b16 %v260, %v256
    %v321 = vpack.c.b16 %v261, %v257
    %v322 = vpack.c.b16 %v266, %v262
    %v323 = vpack.c.b16 %v267, %v263
    %v324 = vpack.c.b16 %v268, %v264
    %v325 = vpack.c.b16 %v269, %v265
    %v326 = vpack.c.b16 %v274, %v270
    %v327 = vpack.c.b16 %v275, %v271
    %v328 = vpack.c.b16 %v276, %v272
    %v329 = vpack.c.b16 %v277, %v273
    %v330 = vpack.c.b16 %v282, %v278
    %v331 = vpack.c.b16 %v283, %v279
    %v332 = vpack.c.b16 %v284, %v280
    %v333 = vpack.c.b16 %v285, %v281
    %v334 = vpack.c.b16 %v290, %v286
    %v335 = vpack.c.b16 %v291, %v287
    %v336 = vpack.c.b16 %v292, %v288
    %v337 = vpack.c.b16 %v293, %v289
    %v338 = vpack.c.b16 %v298, %v294
    %v339 = vpack.c.b16 %v299, %v295
    %v340 = vpack.c.b16 %v300, %v296
    %v341 = vpack.c.b16 %v301, %v297
    %v342 = vpack.c.b16 %v306, %v302
    %v343 = vpack.c.b16 %v307, %v303
    %v344 = vpack.c.b16 %v308, %v304
    %v345 = vpack.c.b16 %v309, %v305
    %v346 = vpack.c.b16 %v314, %v310
    %v347 = vpack.c.b16 %v315, %v311
    %v348 = vpack.c.b16 %v316, %v312
    %v349 = vpack.c.b16 %v317, %v313
    %382 = vmatprep.subr.bf16.mxu0 %v319
    %383 = vmatpush1.bf16.msra.mxu0 %v318
    %384 = vmatprep.subr.bf16.mxu0 %v323
    %385 = vmatpush1.bf16.msra.mxu0 %v322
    %386 = vmatprep.subr.bf16.mxu0 %v327
    %387 = vmatpush1.bf16.msra.mxu0 %v326
    %388 = vmatprep.subr.bf16.mxu0 %v331
    %389 = vmatpush1.bf16.msra.mxu0 %v330
    %390 = vmatprep.subr.bf16.mxu0 %v335
    %391 = vmatpush1.bf16.msra.mxu0 %v334
    %392 = vmatprep.subr.bf16.mxu0 %v339
    %393 = vmatpush1.bf16.msra.mxu0 %v338
    %394 = vmatprep.subr.bf16.mxu0 %v343
    %395 = vmatpush1.bf16.msra.mxu0 %v342
    %396 = vmatprep.subr.bf16.mxu0 %v347
    %397 = vmatpush1.bf16.msra.mxu0 %v346
    %398 = vmatprep.subr.bf16.mxu0 0
    %399 = vmatpush1.bf16.msra.mxu0 0
    %400 = vmatprep.subr.bf16.mxu0 0
    %401 = vmatpush1.bf16.msra.mxu0 0
    %402 = vmatprep.subr.bf16.mxu0 0
    %403 = vmatpush1.bf16.msra.mxu0 0
    %404 = vmatprep.subr.bf16.mxu0 0
    %405 = vmatpush1.bf16.msra.mxu0 0
    %406 = vmatprep.subr.bf16.mxu0 0
    %407 = vmatpush1.bf16.msra.mxu0 0
    %408 = vmatprep.subr.bf16.mxu0 0
    %409 = vmatpush1.bf16.msra.mxu0 0
    %410 = vmatprep.subr.bf16.mxu0 0
    %411 = vmatpush1.bf16.msra.mxu0 0
    %412 = vmatprep.subr.bf16.mxu0 0
    %413 = vmatpush1.bf16.msra.mxu0 0
    %414 = vmatprep.mubr.bf16.mxu0 0
    %415 = vmatmul.mubr.bf16.gmra.mrb[0].mxu0 %v220
    %v416 = vpop.f32.mrb[0].mxu0
    %v417 = vadd.f32 %v199, %v416
    %v418 = vpop.f32.mrb[0].mxu0
    %v419 = vadd.f32 %v203, %v418
    %v420 = vpop.f32.mrb[0].mxu0
    %v421 = vadd.f32 %v199, %v420
    %v422 = vpop.f32.mrb[0].mxu0
    %v423 = vadd.f32 %v203, %v422
    %424 = vdwg.mxu0
    %425 = vmatprep.subr.bf16.mxu0 %v321
    %426 = vmatpush1.bf16.msra.mxu0 %v320
    %427 = vmatprep.subr.bf16.mxu0 %v325
    %428 = vmatpush1.bf16.msra.mxu0 %v324
    %429 = vmatprep.subr.bf16.mxu0 %v329
    %430 = vmatpush1.bf16.msra.mxu0 %v328
    %431 = vmatprep.subr.bf16.mxu0 %v333
    %432 = vmatpush1.bf16.msra.mxu0 %v332
    %433 = vmatprep.subr.bf16.mxu0 %v337
    %434 = vmatpush1.bf16.msra.mxu0 %v336
    %435 = vmatprep.subr.bf16.mxu0 %v341
    %436 = vmatpush1.bf16.msra.mxu0 %v340
    %437 = vmatprep.subr.bf16.mxu0 %v345
    %438 = vmatpush1.bf16.msra.mxu0 %v344
    %439 = vmatprep.subr.bf16.mxu0 %v349
    %440 = vmatpush1.bf16.msra.mxu0 %v348
    %441 = vmatprep.subr.bf16.mxu0 0
    %442 = vmatpush1.bf16.msra.mxu0 0
    %443 = vmatprep.subr.bf16.mxu0 0
    %444 = vmatpush1.bf16.msra.mxu0 0
    %445 = vmatprep.subr.bf16.mxu0 0
    %446 = vmatpush1.bf16.msra.mxu0 0
    %447 = vmatprep.subr.bf16.mxu0 0
    %448 = vmatpush1.bf16.msra.mxu0 0
    %449 = vmatprep.subr.bf16.mxu0 0
    %450 = vmatpush1.bf16.msra.mxu0 0
    %451 = vmatprep.subr.bf16.mxu0 0
    %452 = vmatpush1.bf16.msra.mxu0 0
    %453 = vmatprep.subr.bf16.mxu0 0
    %454 = vmatpush1.bf16.msra.mxu0 0
    %455 = vmatprep.subr.bf16.mxu0 0
    %456 = vmatpush1.bf16.msra.mxu0 0
    %457 = vmatprep.mubr.bf16.mxu0 0
    %458 = vmatmul.mubr.bf16.gmra.mrb[0].mxu0 %v220
    %v459 = vpop.f32.mrb[0].mxu0
    %v460 = vadd.f32 %v207, %v459
    %v461 = vpop.f32.mrb[0].mxu0
    %v462 = vadd.f32 %v211, %v461
    %v463 = vpop.f32.mrb[0].mxu0
    %v464 = vadd.f32 %v207, %v463
    %v465 = vpop.f32.mrb[0].mxu0
    %v466 = vadd.f32 %v211, %v465
    %467 = vdwg.mxu0
    %v468 = vmax.f32 %v417, 0.0
    %v469 = vmax.f32 %v419, 0.0
    %v470 = vmax.f32 %v460, 0.0
    %v471 = vmax.f32 %v462, 0.0
    %v472 = vmax.f32 %v421, 0.0
    %v473 = vmax.f32 %v423, 0.0
    %v474 = vmax.f32 %v464, 0.0
    %v475 = vmax.f32 %v466, 0.0
    %v476 = vpack.c.bf16 %v472, %v468
    %v477 = vpack.c.bf16 %v473, %v469
    %v478 = vpack.c.bf16 %v474, %v470
    %v479 = vpack.c.bf16 %v475, %v471
    %v480 = vld [vmem:[#allocation8] sm:$0xf]
    %v481 = vld [vmem:[#allocation8 + $0x4] sm:$0xf]
    %v482 = vld [vmem:[#allocation8 + $0x8] sm:$0xf]
    %v483 = vld [vmem:[#allocation8 + $0xc] sm:$0xf]
    %v484 = vld [vmem:[#allocation8 + $0x10] sm:$0xf]
    %v485 = vld [vmem:[#allocation8 + $0x14] sm:$0xf]
    %v486 = vld [vmem:[#allocation8 + $0x18] sm:$0xf]
    %v487 = vld [vmem:[#allocation8 + $0x1c] sm:$0xf]
    %v488 = vld [vmem:[#allocation8 + $0x20] sm:$0xf]
    %v489 = vld [vmem:[#allocation8 + $0x24] sm:$0xf]
    %v490 = vld [vmem:[#allocation8 + $0x28] sm:$0xf]
    %v491 = vld [vmem:[#allocation8 + $0x2c] sm:$0xf]
    %v492 = vld [vmem:[#allocation8 + $0x30] sm:$0xf]
    %v493 = vld [vmem:[#allocation8 + $0x34] sm:$0xf]
    %v494 = vld [vmem:[#allocation8 + $0x38] sm:$0xf]
    %v495 = vld [vmem:[#allocation8 + $0x3c] sm:$0xf]
    %v496 = vld [vmem:[#allocation8 + $0x40] sm:$0xf]
    %v497 = vld [vmem:[#allocation8 + $0x44] sm:$0xf]
    %v498 = vld [vmem:[#allocation8 + $0x48] sm:$0xf]
    %v499 = vld [vmem:[#allocation8 + $0x4c] sm:$0xf]
    %v500 = vld [vmem:[#allocation8 + $0x50] sm:$0xf]
    %v501 = vld [vmem:[#allocation8 + $0x54] sm:$0xf]
    %v502 = vld [vmem:[#allocation8 + $0x58] sm:$0xf]
    %v503 = vld [vmem:[#allocation8 + $0x5c] sm:$0xf]
    %v504 = vld [vmem:[#allocation8 + $0x60] sm:$0xf]
    %v505 = vld [vmem:[#allocation8 + $0x64] sm:$0xf]
    %v506 = vld [vmem:[#allocation8 + $0x68] sm:$0xf]
    %v507 = vld [vmem:[#allocation8 + $0x6c] sm:$0xf]
    %v508 = vld [vmem:[#allocation8 + $0x70] sm:$0xf]
    %v509 = vld [vmem:[#allocation8 + $0x74] sm:$0xf]
    %v510 = vld [vmem:[#allocation8 + $0x78] sm:$0xf]
    %v511 = vld [vmem:[#allocation8 + $0x7c] sm:$0xf]
    %v512 = vld [vmem:[#allocation8 + $0x80] sm:$0xf]
    %v513 = vld [vmem:[#allocation8 + $0x84] sm:$0xf]
    %v514 = vld [vmem:[#allocation8 + $0x88] sm:$0xf]
    %v515 = vld [vmem:[#allocation8 + $0x8c] sm:$0xf]
    %v516 = vld [vmem:[#allocation8 + $0x90] sm:$0xf]
    %v517 = vld [vmem:[#allocation8 + $0x94] sm:$0xf]
    %v518 = vld [vmem:[#allocation8 + $0x98] sm:$0xf]
    %v519 = vld [vmem:[#allocation8 + $0x9c] sm:$0xf]
    %v520 = vld [vmem:[#allocation8 + $0xa0] sm:$0xf]
    %v521 = vld [vmem:[#allocation8 + $0xa4] sm:$0xf]
    %v522 = vld [vmem:[#allocation8 + $0xa8] sm:$0xf]
    %v523 = vld [vmem:[#allocation8 + $0xac] sm:$0xf]
    %v524 = vld [vmem:[#allocation8 + $0xb0] sm:$0xf]
    %v525 = vld [vmem:[#allocation8 + $0xb4] sm:$0xf]
    %v526 = vld [vmem:[#allocation8 + $0xb8] sm:$0xf]
    %v527 = vld [vmem:[#allocation8 + $0xbc] sm:$0xf]
    %v528 = vld [vmem:[#allocation8 + $0xc0] sm:$0xf]
    %v529 = vld [vmem:[#allocation8 + $0xc4] sm:$0xf]
    %v530 = vld [vmem:[#allocation8 + $0xc8] sm:$0xf]
    %v531 = vld [vmem:[#allocation8 + $0xcc] sm:$0xf]
    %v532 = vld [vmem:[#allocation8 + $0xd0] sm:$0xf]
    %v533 = vld [vmem:[#allocation8 + $0xd4] sm:$0xf]
    %v534 = vld [vmem:[#allocation8 + $0xd8] sm:$0xf]
    %v535 = vld [vmem:[#allocation8 + $0xdc] sm:$0xf]
    %v536 = vld [vmem:[#allocation8 + $0xe0] sm:$0xf]
    %v537 = vld [vmem:[#allocation8 + $0xe4] sm:$0xf]
    %v538 = vld [vmem:[#allocation8 + $0xe8] sm:$0xf]
    %v539 = vld [vmem:[#allocation8 + $0xec] sm:$0xf]
    %v540 = vld [vmem:[#allocation8 + $0xf0] sm:$0xf]
    %v541 = vld [vmem:[#allocation8 + $0xf4] sm:$0xf]
    %v542 = vld [vmem:[#allocation8 + $0xf8] sm:$0xf]
    %v543 = vld [vmem:[#allocation8 + $0xfc] sm:$0xf]
    %v544 = vld [vmem:[%s5] sm:$0x1]
    %v546 = vlaneseq
    %v547 = vshrl.u32 %v546, 7
    %v548 = vsub.s32 0, %v547
    %v549 = vrot.slane %v544, %v548
    %v615 = vunpack.c.l.b16 %v480
    %v616 = vunpack.c.l.b16 %v481
    %v617 = vunpack.c.l.b16 %v482
    %v618 = vunpack.c.l.b16 %v483
    %v619 = vunpack.c.l.b16 %v484
    %v620 = vunpack.c.l.b16 %v485
    %v621 = vunpack.c.l.b16 %v486
    %v622 = vunpack.c.l.b16 %v487
    %v623 = vunpack.c.l.b16 %v488
    %v624 = vunpack.c.l.b16 %v489
    %v625 = vunpack.c.l.b16 %v490
    %v626 = vunpack.c.l.b16 %v491
    %v627 = vunpack.c.l.b16 %v492
    %v628 = vunpack.c.l.b16 %v493
    %v629 = vunpack.c.l.b16 %v494
    %v630 = vunpack.c.l.b16 %v495
    %v631 = vunpack.c.l.b16 %v496
    %v632 = vunpack.c.l.b16 %v497
    %v633 = vunpack.c.l.b16 %v498
    %v634 = vunpack.c.l.b16 %v499
    %v635 = vunpack.c.l.b16 %v500
    %v636 = vunpack.c.l.b16 %v501
    %v637 = vunpack.c.l.b16 %v502
    %v638 = vunpack.c.l.b16 %v503
    %v639 = vunpack.c.l.b16 %v504
    %v640 = vunpack.c.l.b16 %v505
    %v641 = vunpack.c.l.b16 %v506
    %v642 = vunpack.c.l.b16 %v507
    %v643 = vunpack.c.l.b16 %v508
    %v644 = vunpack.c.l.b16 %v509
    %v645 = vunpack.c.l.b16 %v510
    %v646 = vunpack.c.l.b16 %v511
    %v647 = vunpack.c.l.b16 %v512
    %v648 = vunpack.c.l.b16 %v513
    %v649 = vunpack.c.l.b16 %v514
    %v650 = vunpack.c.l.b16 %v515
    %v651 = vunpack.c.l.b16 %v516
    %v652 = vunpack.c.l.b16 %v517
    %v653 = vunpack.c.l.b16 %v518
    %v654 = vunpack.c.l.b16 %v519
    %v655 = vunpack.c.l.b16 %v520
    %v656 = vunpack.c.l.b16 %v521
    %v657 = vunpack.c.l.b16 %v522
    %v658 = vunpack.c.l.b16 %v523
    %v659 = vunpack.c.l.b16 %v524
    %v660 = vunpack.c.l.b16 %v525
    %v661 = vunpack.c.l.b16 %v526
    %v662 = vunpack.c.l.b16 %v527
    %v663 = vunpack.c.l.b16 %v528
    %v664 = vunpack.c.l.b16 %v529
    %v665 = vunpack.c.l.b16 %v530
    %v666 = vunpack.c.l.b16 %v531
    %v667 = vunpack.c.l.b16 %v532
    %v668 = vunpack.c.l.b16 %v533
    %v669 = vunpack.c.l.b16 %v534
    %v670 = vunpack.c.l.b16 %v535
    %v671 = vunpack.c.l.b16 %v536
    %v672 = vunpack.c.l.b16 %v537
    %v673 = vunpack.c.l.b16 %v538
    %v674 = vunpack.c.l.b16 %v539
    %v675 = vunpack.c.l.b16 %v540
    %v676 = vunpack.c.l.b16 %v541
    %v677 = vunpack.c.l.b16 %v542
    %v678 = vunpack.c.l.b16 %v543
    %v679 = vpack.c.b16 %v616, %v615
    %v680 = vpack.c.b16 %v618, %v617
    %v681 = vpack.c.b16 %v620, %v619
    %v682 = vpack.c.b16 %v622, %v621
    %v683 = vpack.c.b16 %v624, %v623
    %v684 = vpack.c.b16 %v626, %v625
    %v685 = vpack.c.b16 %v628, %v627
    %v686 = vpack.c.b16 %v630, %v629
    %v687 = vpack.c.b16 %v632, %v631
    %v688 = vpack.c.b16 %v634, %v633
    %v689 = vpack.c.b16 %v636, %v635
    %v690 = vpack.c.b16 %v638, %v637
    %v691 = vpack.c.b16 %v640, %v639
    %v692 = vpack.c.b16 %v642, %v641
    %v693 = vpack.c.b16 %v644, %v643
    %v694 = vpack.c.b16 %v646, %v645
    %v695 = vpack.c.b16 %v648, %v647
    %v696 = vpack.c.b16 %v650, %v649
    %v697 = vpack.c.b16 %v652, %v651
    %v698 = vpack.c.b16 %v654, %v653
    %v699 = vpack.c.b16 %v656, %v655
    %v700 = vpack.c.b16 %v658, %v657
    %v701 = vpack.c.b16 %v660, %v659
    %v702 = vpack.c.b16 %v662, %v661
    %v703 = vpack.c.b16 %v664, %v663
    %v704 = vpack.c.b16 %v666, %v665
    %v705 = vpack.c.b16 %v668, %v667
    %v706 = vpack.c.b16 %v670, %v669
    %v707 = vpack.c.b16 %v672, %v671
    %v708 = vpack.c.b16 %v674, %v673
    %v709 = vpack.c.b16 %v676, %v675
    %v710 = vpack.c.b16 %v678, %v677
    %743 = vmatprep.subr.bf16.mxu0 0
    %744 = vmatpush1.bf16.msra.mxu0 %v679
    %745 = vmatprep.subr.bf16.mxu0 0
    %746 = vmatpush1.bf16.msra.mxu0 %v680
    %747 = vmatprep.subr.bf16.mxu0 0
    %748 = vmatpush1.bf16.msra.mxu0 %v681
    %749 = vmatprep.subr.bf16.mxu0 0
    %750 = vmatpush1.bf16.msra.mxu0 %v682
    %751 = vmatprep.subr.bf16.mxu0 0
    %752 = vmatpush1.bf16.msra.mxu0 %v683
    %753 = vmatprep.subr.bf16.mxu0 0
    %754 = vmatpush1.bf16.msra.mxu0 %v684
    %755 = vmatprep.subr.bf16.mxu0 0
    %756 = vmatpush1.bf16.msra.mxu0 %v685
    %757 = vmatprep.subr.bf16.mxu0 0
    %758 = vmatpush1.bf16.msra.mxu0 %v686
    %759 = vmatprep.subr.bf16.mxu0 0
    %760 = vmatpush1.bf16.msra.mxu0 %v687
    %761 = vmatprep.subr.bf16.mxu0 0
    %762 = vmatpush1.bf16.msra.mxu0 %v688
    %763 = vmatprep.subr.bf16.mxu0 0
    %764 = vmatpush1.bf16.msra.mxu0 %v689
    %765 = vmatprep.subr.bf16.mxu0 0
    %766 = vmatpush1.bf16.msra.mxu0 %v690
    %767 = vmatprep.subr.bf16.mxu0 0
    %768 = vmatpush1.bf16.msra.mxu0 %v691
    %769 = vmatprep.subr.bf16.mxu0 0
    %770 = vmatpush1.bf16.msra.mxu0 %v692
    %771 = vmatprep.subr.bf16.mxu0 0
    %772 = vmatpush1.bf16.msra.mxu0 %v693
    %773 = vmatprep.subr.bf16.mxu0 0
    %774 = vmatpush1.bf16.msra.mxu0 %v694
    %775 = vmatprep.mubr.bf16.mxu0 %v477
    %776 = vmatmul.mubr.bf16.gmra.mrb[0].mxu0 %v476
    %v777 = vpop.f32.mrb[0].mxu0
    %v778 = vadd.f32 %v549, %v777
    %v779 = vpop.f32.mrb[0].mxu0
    %v780 = vpop.f32.mrb[0].mxu0
    %v781 = vadd.f32 %v549, %v780
    %v782 = vpop.f32.mrb[0].mxu0
    %783 = vdwg.mxu0
    %784 = vmatprep.subr.bf16.mxu0 0
    %785 = vmatpush1.bf16.msra.mxu0 %v695
    %786 = vmatprep.subr.bf16.mxu0 0
    %787 = vmatpush1.bf16.msra.mxu0 %v696
    %788 = vmatprep.subr.bf16.mxu0 0
    %789 = vmatpush1.bf16.msra.mxu0 %v697
    %790 = vmatprep.subr.bf16.mxu0 0
    %791 = vmatpush1.bf16.msra.mxu0 %v698
    %792 = vmatprep.subr.bf16.mxu0 0
    %793 = vmatpush1.bf16.msra.mxu0 %v699
    %794 = vmatprep.subr.bf16.mxu0 0
    %795 = vmatpush1.bf16.msra.mxu0 %v700
    %796 = vmatprep.subr.bf16.mxu0 0
    %797 = vmatpush1.bf16.msra.mxu0 %v701
    %798 = vmatprep.subr.bf16.mxu0 0
    %799 = vmatpush1.bf16.msra.mxu0 %v702
    %800 = vmatprep.subr.bf16.mxu0 0
    %801 = vmatpush1.bf16.msra.mxu0 %v703
    %802 = vmatprep.subr.bf16.mxu0 0
    %803 = vmatpush1.bf16.msra.mxu0 %v704
    %804 = vmatprep.subr.bf16.mxu0 0
    %805 = vmatpush1.bf16.msra.mxu0 %v705
    %806 = vmatprep.subr.bf16.mxu0 0
    %807 = vmatpush1.bf16.msra.mxu0 %v706
    %808 = vmatprep.subr.bf16.mxu0 0
    %809 = vmatpush1.bf16.msra.mxu0 %v707
    %810 = vmatprep.subr.bf16.mxu0 0
    %811 = vmatpush1.bf16.msra.mxu0 %v708
    %812 = vmatprep.subr.bf16.mxu0 0
    %813 = vmatpush1.bf16.msra.mxu0 %v709
    %814 = vmatprep.subr.bf16.mxu0 0
    %815 = vmatpush1.bf16.msra.mxu0 %v710
    %816 = vmatprep.mubr.bf16.mxu0 %v479
    %817 = vmatmul.mubr.bf16.gmra.mrb[0].mxu0 %v478
    %v818 = vpop.f32.mrb[0].mxu0
    %v819 = vadd.f32 %v778, %v818
    %v820 = vpop.f32.mrb[0].mxu0
    %v821 = vpop.f32.mrb[0].mxu0
    %v822 = vadd.f32 %v781, %v821
    %v823 = vpop.f32.mrb[0].mxu0
    %824 = vdwg.mxu0
    %v825 = vld [vmem:[#allocation10] sm:$0xff]
    %v826 = vld [vmem:[#allocation10 + $0x8] sm:$0xff]
    %v827 = vld [vmem:[#allocation10 + $0x10] sm:$0xff]
    %v828 = vld [vmem:[#allocation10 + $0x18] sm:$0xff]
    %v829 = vld [vmem:[#allocation10 + $0x20] sm:$0xff]
    %v830 = vld [vmem:[#allocation10 + $0x28] sm:$0xff]
    %v831 = vld [vmem:[#allocation10 + $0x30] sm:$0xff]
    %v832 = vld [vmem:[#allocation10 + $0x38] sm:$0xff]
    %v833 = vld [vmem:[#allocation10 + $0x40] sm:$0xff]
    %v834 = vld [vmem:[#allocation10 + $0x48] sm:$0xff]
    %v835 = vld [vmem:[#allocation10 + $0x50] sm:$0xff]
    %v836 = vld [vmem:[#allocation10 + $0x58] sm:$0xff]
    %v837 = vld [vmem:[#allocation10 + $0x60] sm:$0xff]
    %v838 = vld [vmem:[#allocation10 + $0x68] sm:$0xff]
    %v839 = vld [vmem:[#allocation10 + $0x70] sm:$0xff]
    %v840 = vld [vmem:[#allocation10 + $0x78] sm:$0xff]
    %v841 = vld [vmem:[#allocation10 + $0x80] sm:$0xff]
    %v842 = vld [vmem:[#allocation10 + $0x88] sm:$0xff]
    %v843 = vld [vmem:[#allocation10 + $0x90] sm:$0xff]
    %v844 = vld [vmem:[#allocation10 + $0x98] sm:$0xff]
    %v845 = vld [vmem:[#allocation10 + $0xa0] sm:$0xff]
    %v846 = vld [vmem:[#allocation10 + $0xa8] sm:$0xff]
    %v847 = vld [vmem:[#allocation10 + $0xb0] sm:$0xff]
    %v848 = vld [vmem:[#allocation10 + $0xb8] sm:$0xff]
    %v849 = vld [vmem:[#allocation10 + $0xc0] sm:$0xff]
    %v850 = vld [vmem:[#allocation10 + $0xc8] sm:$0xff]
    %v851 = vld [vmem:[#allocation10 + $0xd0] sm:$0xff]
    %v852 = vld [vmem:[#allocation10 + $0xd8] sm:$0xff]
    %v853 = vld [vmem:[#allocation10 + $0xe0] sm:$0xff]
    %v854 = vld [vmem:[#allocation10 + $0xe8] sm:$0xff]
    %v855 = vld [vmem:[#allocation10 + $0xf0] sm:$0xff]
    %v856 = vld [vmem:[#allocation10 + $0xf8] sm:$0xff]
    %v857 = vld [vmem:[%s7] sm:$0xf]
    %v859 = vlaneseq
    %v860 = vshrl.u32 %v859, 7
    %v861 = vsub.s32 0, %v860
    %v862 = vrot.slane %v857, %v861
    %v863 = vlaneseq
    %v864 = vshrl.u32 %v863, 7
    %v865 = vsub.s32 1, %v864
    %v866 = vrot.slane %v857, %v865
    %v867 = vlaneseq
    %v868 = vshrl.u32 %v867, 7
    %v869 = vsub.s32 2, %v868
    %v870 = vrot.slane %v857, %v869
    %v871 = vlaneseq
    %v872 = vshrl.u32 %v871, 7
    %v873 = vsub.s32 3, %v872
    %v874 = vrot.slane %v857, %v873
    %v881 = vunpack.c.l.b16 %v160
    %v882 = vunpack.c.l.b16 %v161
    %v883 = vpack.c.b16 %v882, %v881
    %v917 = vunpack.c.l.b16 %v825
    %v918 = vunpack.c.h.b16 %v825
    %v919 = vunpack.c.l.b16 %v826
    %v920 = vunpack.c.h.b16 %v826
    %v921 = vunpack.c.l.b16 %v827
    %v922 = vunpack.c.h.b16 %v827
    %v923 = vunpack.c.l.b16 %v828
    %v924 = vunpack.c.h.b16 %v828
    %v925 = vunpack.c.l.b16 %v829
    %v926 = vunpack.c.h.b16 %v829
    %v927 = vunpack.c.l.b16 %v830
    %v928 = vunpack.c.h.b16 %v830
    %v929 = vunpack.c.l.b16 %v831
    %v930 = vunpack.c.h.b16 %v831
    %v931 = vunpack.c.l.b16 %v832
    %v932 = vunpack.c.h.b16 %v832
    %v933 = vunpack.c.l.b16 %v833
    %v934 = vunpack.c.h.b16 %v833
    %v935 = vunpack.c.l.b16 %v834
    %v936 = vunpack.c.h.b16 %v834
    %v937 = vunpack.c.l.b16 %v835
    %v938 = vunpack.c.h.b16 %v835
    %v939 = vunpack.c.l.b16 %v836
    %v940 = vunpack.c.h.b16 %v836
    %v941 = vunpack.c.l.b16 %v837
    %v942 = vunpack.c.h.b16 %v837
    %v943 = vunpack.c.l.b16 %v838
    %v944 = vunpack.c.h.b16 %v838
    %v945 = vunpack.c.l.b16 %v839
    %v946 = vunpack.c.h.b16 %v839
    %v947 = vunpack.c.l.b16 %v840
    %v948 = vunpack.c.h.b16 %v840
    %v949 = vunpack.c.l.b16 %v841
    %v950 = vunpack.c.h.b16 %v841
    %v951 = vunpack.c.l.b16 %v842
    %v952 = vunpack.c.h.b16 %v842
    %v953 = vunpack.c.l.b16 %v843
    %v954 = vunpack.c.h.b16 %v843
    %v955 = vunpack.c.l.b16 %v844
    %v956 = vunpack.c.h.b16 %v844
    %v957 = vunpack.c.l.b16 %v845
    %v958 = vunpack.c.h.b16 %v845
    %v959 = vunpack.c.l.b16 %v846
    %v960 = vunpack.c.h.b16 %v846
    %v961 = vunpack.c.l.b16 %v847
    %v962 = vunpack.c.h.b16 %v847
    %v963 = vunpack.c.l.b16 %v848
    %v964 = vunpack.c.h.b16 %v848
    %v965 = vunpack.c.l.b16 %v849
    %v966 = vunpack.c.h.b16 %v849
    %v967 = vunpack.c.l.b16 %v850
    %v968 = vunpack.c.h.b16 %v850
    %v969 = vunpack.c.l.b16 %v851
    %v970 = vunpack.c.h.b16 %v851
    %v971 = vunpack.c.l.b16 %v852
    %v972 = vunpack.c.h.b16 %v852
    %v973 = vunpack.c.l.b16 %v853
    %v974 = vunpack.c.h.b16 %v853
    %v975 = vunpack.c.l.b16 %v854
    %v976 = vunpack.c.h.b16 %v854
    %v977 = vunpack.c.l.b16 %v855
    %v978 = vunpack.c.h.b16 %v855
    %v979 = vunpack.c.l.b16 %v856
    %v980 = vunpack.c.h.b16 %v856
    %v981 = vpack.c.b16 %v921, %v917
    %v982 = vpack.c.b16 %v922, %v918
    %v983 = vpack.c.b16 %v923, %v919
    %v984 = vpack.c.b16 %v924, %v920
    %v985 = vpack.c.b16 %v929, %v925
    %v986 = vpack.c.b16 %v930, %v926
    %v987 = vpack.c.b16 %v931, %v927
    %v988 = vpack.c.b16 %v932, %v928
    %v989 = vpack.c.b16 %v937, %v933
    %v990 = vpack.c.b16 %v938, %v934
    %v991 = vpack.c.b16 %v939, %v935
    %v992 = vpack.c.b16 %v940, %v936
    %v993 = vpack.c.b16 %v945, %v941
    %v994 = vpack.c.b16 %v946, %v942
    %v995 = vpack.c.b16 %v947, %v943
    %v996 = vpack.c.b16 %v948, %v944
    %v997 = vpack.c.b16 %v953, %v949
    %v998 = vpack.c.b16 %v954, %v950
    %v999 = vpack.c.b16 %v955, %v951
    %v1000 = vpack.c.b16 %v956, %v952
    %v1001 = vpack.c.b16 %v961, %v957
    %v1002 = vpack.c.b16 %v962, %v958
    %v1003 = vpack.c.b16 %v963, %v959
    %v1004 = vpack.c.b16 %v964, %v960
    %v1005 = vpack.c.b16 %v969, %v965
    %v1006 = vpack.c.b16 %v970, %v966
    %v1007 = vpack.c.b16 %v971, %v967
    %v1008 = vpack.c.b16 %v972, %v968
    %v1009 = vpack.c.b16 %v977, %v973
    %v1010 = vpack.c.b16 %v978, %v974
    %v1011 = vpack.c.b16 %v979, %v975
    %v1012 = vpack.c.b16 %v980, %v976
    %1045 = vmatprep.subr.bf16.mxu0 %v982
    %1046 = vmatpush1.bf16.msra.mxu0 %v981
    %1047 = vmatprep.subr.bf16.mxu0 %v986
    %1048 = vmatpush1.bf16.msra.mxu0 %v985
    %1049 = vmatprep.subr.bf16.mxu0 %v990
    %1050 = vmatpush1.bf16.msra.mxu0 %v989
    %1051 = vmatprep.subr.bf16.mxu0 %v994
    %1052 = vmatpush1.bf16.msra.mxu0 %v993
    %1053 = vmatprep.subr.bf16.mxu0 %v998
    %1054 = vmatpush1.bf16.msra.mxu0 %v997
    %1055 = vmatprep.subr.bf16.mxu0 %v1002
    %1056 = vmatpush1.bf16.msra.mxu0 %v1001
    %1057 = vmatprep.subr.bf16.mxu0 %v1006
    %1058 = vmatpush1.bf16.msra.mxu0 %v1005
    %1059 = vmatprep.subr.bf16.mxu0 %v1010
    %1060 = vmatpush1.bf16.msra.mxu0 %v1009
    %1061 = vmatprep.subr.bf16.mxu0 0
    %1062 = vmatpush1.bf16.msra.mxu0 0
    %1063 = vmatprep.subr.bf16.mxu0 0
    %1064 = vmatpush1.bf16.msra.mxu0 0
    %1065 = vmatprep.subr.bf16.mxu0 0
    %1066 = vmatpush1.bf16.msra.mxu0 0
    %1067 = vmatprep.subr.bf16.mxu0 0
    %1068 = vmatpush1.bf16.msra.mxu0 0
    %1069 = vmatprep.subr.bf16.mxu0 0
    %1070 = vmatpush1.bf16.msra.mxu0 0
    %1071 = vmatprep.subr.bf16.mxu0 0
    %1072 = vmatpush1.bf16.msra.mxu0 0
    %1073 = vmatprep.subr.bf16.mxu0 0
    %1074 = vmatpush1.bf16.msra.mxu0 0
    %1075 = vmatprep.subr.bf16.mxu0 0
    %1076 = vmatpush1.bf16.msra.mxu0 0
    %1077 = vmatprep.mubr.bf16.mxu0 0
    %1078 = vmatmul.mubr.bf16.gmra.mrb[0].mxu0 %v883
    %v1079 = vpop.f32.mrb[0].mxu0
    %v1080 = vadd.f32 %v862, %v1079
    %v1081 = vpop.f32.mrb[0].mxu0
    %v1082 = vadd.f32 %v866, %v1081
    %v1083 = vpop.f32.mrb[0].mxu0
    %v1084 = vadd.f32 %v862, %v1083
    %v1085 = vpop.f32.mrb[0].mxu0
    %v1086 = vadd.f32 %v866, %v1085
    %1087 = vdwg.mxu0
    %1088 = vmatprep.subr.bf16.mxu0 %v984
    %1089 = vmatpush1.bf16.msra.mxu0 %v983
    %1090 = vmatprep.subr.bf16.mxu0 %v988
    %1091 = vmatpush1.bf16.msra.mxu0 %v987
    %1092 = vmatprep.subr.bf16.mxu0 %v992
    %1093 = vmatpush1.bf16.msra.mxu0 %v991
    %1094 = vmatprep.subr.bf16.mxu0 %v996
    %1095 = vmatpush1.bf16.msra.mxu0 %v995
    %1096 = vmatprep.subr.bf16.mxu0 %v1000
    %1097 = vmatpush1.bf16.msra.mxu0 %v999
    %1098 = vmatprep.subr.bf16.mxu0 %v1004
    %1099 = vmatpush1.bf16.msra.mxu0 %v1003
    %1100 = vmatprep.subr.bf16.mxu0 %v1008
    %1101 = vmatpush1.bf16.msra.mxu0 %v1007
    %1102 = vmatprep.subr.bf16.mxu0 %v1012
    %1103 = vmatpush1.bf16.msra.mxu0 %v1011
    %1104 = vmatprep.subr.bf16.mxu0 0
    %1105 = vmatpush1.bf16.msra.mxu0 0
    %1106 = vmatprep.subr.bf16.mxu0 0
    %1107 = vmatpush1.bf16.msra.mxu0 0
    %1108 = vmatprep.subr.bf16.mxu0 0
    %1109 = vmatpush1.bf16.msra.mxu0 0
    %1110 = vmatprep.subr.bf16.mxu0 0
    %1111 = vmatpush1.bf16.msra.mxu0 0
    %1112 = vmatprep.subr.bf16.mxu0 0
    %1113 = vmatpush1.bf16.msra.mxu0 0
    %1114 = vmatprep.subr.bf16.mxu0 0
    %1115 = vmatpush1.bf16.msra.mxu0 0
    %1116 = vmatprep.subr.bf16.mxu0 0
    %1117 = vmatpush1.bf16.msra.mxu0 0
    %1118 = vmatprep.subr.bf16.mxu0 0
    %1119 = vmatpush1.bf16.msra.mxu0 0
    %1120 = vmatprep.mubr.bf16.mxu0 0
    %1121 = vmatmul.mubr.bf16.gmra.mrb[0].mxu0 %v883
    %v1122 = vpop.f32.mrb[0].mxu0
    %v1123 = vadd.f32 %v870, %v1122
    %v1124 = vpop.f32.mrb[0].mxu0
    %v1125 = vadd.f32 %v874, %v1124
    %v1126 = vpop.f32.mrb[0].mxu0
    %v1127 = vadd.f32 %v870, %v1126
    %v1128 = vpop.f32.mrb[0].mxu0
    %v1129 = vadd.f32 %v874, %v1128
    %1130 = vdwg.mxu0
    %v1131 = vmax.f32 %v1080, 0.0
    %v1132 = vmax.f32 %v1082, 0.0
    %v1133 = vmax.f32 %v1123, 0.0
    %v1134 = vmax.f32 %v1125, 0.0
    %v1135 = vmax.f32 %v1084, 0.0
    %v1136 = vmax.f32 %v1086, 0.0
    %v1137 = vmax.f32 %v1127, 0.0
    %v1138 = vmax.f32 %v1129, 0.0
    %v1139 = vpack.c.bf16 %v1135, %v1131
    %v1140 = vpack.c.bf16 %v1136, %v1132
    %v1141 = vpack.c.bf16 %v1137, %v1133
    %v1142 = vpack.c.bf16 %v1138, %v1134
    %v1143 = vld [vmem:[#allocation11] sm:$0xf]
    %v1144 = vld [vmem:[#allocation11 + $0x4] sm:$0xf]
    %v1145 = vld [vmem:[#allocation11 + $0x8] sm:$0xf]
    %v1146 = vld [vmem:[#allocation11 + $0xc] sm:$0xf]
    %v1147 = vld [vmem:[#allocation11 + $0x10] sm:$0xf]
    %v1148 = vld [vmem:[#allocation11 + $0x14] sm:$0xf]
    %v1149 = vld [vmem:[#allocation11 + $0x18] sm:$0xf]
    %v1150 = vld [vmem:[#allocation11 + $0x1c] sm:$0xf]
    %v1151 = vld [vmem:[#allocation11 + $0x20] sm:$0xf]
    %v1152 = vld [vmem:[#allocation11 + $0x24] sm:$0xf]
    %v1153 = vld [vmem:[#allocation11 + $0x28] sm:$0xf]
    %v1154 = vld [vmem:[#allocation11 + $0x2c] sm:$0xf]
    %v1155 = vld [vmem:[#allocation11 + $0x30] sm:$0xf]
    %v1156 = vld [vmem:[#allocation11 + $0x34] sm:$0xf]
    %v1157 = vld [vmem:[#allocation11 + $0x38] sm:$0xf]
    %v1158 = vld [vmem:[#allocation11 + $0x3c] sm:$0xf]
    %v1159 = vld [vmem:[#allocation11 + $0x40] sm:$0xf]
    %v1160 = vld [vmem:[#allocation11 + $0x44] sm:$0xf]
    %v1161 = vld [vmem:[#allocation11 + $0x48] sm:$0xf]
    %v1162 = vld [vmem:[#allocation11 + $0x4c] sm:$0xf]
    %v1163 = vld [vmem:[#allocation11 + $0x50] sm:$0xf]
    %v1164 = vld [vmem:[#allocation11 + $0x54] sm:$0xf]
    %v1165 = vld [vmem:[#allocation11 + $0x58] sm:$0xf]
    %v1166 = vld [vmem:[#allocation11 + $0x5c] sm:$0xf]
    %v1167 = vld [vmem:[#allocation11 + $0x60] sm:$0xf]
    %v1168 = vld [vmem:[#allocation11 + $0x64] sm:$0xf]
    %v1169 = vld [vmem:[#allocation11 + $0x68] sm:$0xf]
    %v1170 = vld [vmem:[#allocation11 + $0x6c] sm:$0xf]
    %v1171 = vld [vmem:[#allocation11 + $0x70] sm:$0xf]
    %v1172 = vld [vmem:[#allocation11 + $0x74] sm:$0xf]
    %v1173 = vld [vmem:[#allocation11 + $0x78] sm:$0xf]
    %v1174 = vld [vmem:[#allocation11 + $0x7c] sm:$0xf]
    %v1175 = vld [vmem:[#allocation11 + $0x80] sm:$0xf]
    %v1176 = vld [vmem:[#allocation11 + $0x84] sm:$0xf]
    %v1177 = vld [vmem:[#allocation11 + $0x88] sm:$0xf]
    %v1178 = vld [vmem:[#allocation11 + $0x8c] sm:$0xf]
    %v1179 = vld [vmem:[#allocation11 + $0x90] sm:$0xf]
    %v1180 = vld [vmem:[#allocation11 + $0x94] sm:$0xf]
    %v1181 = vld [vmem:[#allocation11 + $0x98] sm:$0xf]
    %v1182 = vld [vmem:[#allocation11 + $0x9c] sm:$0xf]
    %v1183 = vld [vmem:[#allocation11 + $0xa0] sm:$0xf]
    %v1184 = vld [vmem:[#allocation11 + $0xa4] sm:$0xf]
    %v1185 = vld [vmem:[#allocation11 + $0xa8] sm:$0xf]
    %v1186 = vld [vmem:[#allocation11 + $0xac] sm:$0xf]
    %v1187 = vld [vmem:[#allocation11 + $0xb0] sm:$0xf]
    %v1188 = vld [vmem:[#allocation11 + $0xb4] sm:$0xf]
    %v1189 = vld [vmem:[#allocation11 + $0xb8] sm:$0xf]
    %v1190 = vld [vmem:[#allocation11 + $0xbc] sm:$0xf]
    %v1191 = vld [vmem:[#allocation11 + $0xc0] sm:$0xf]
    %v1192 = vld [vmem:[#allocation11 + $0xc4] sm:$0xf]
    %v1193 = vld [vmem:[#allocation11 + $0xc8] sm:$0xf]
    %v1194 = vld [vmem:[#allocation11 + $0xcc] sm:$0xf]
    %v1195 = vld [vmem:[#allocation11 + $0xd0] sm:$0xf]
    %v1196 = vld [vmem:[#allocation11 + $0xd4] sm:$0xf]
    %v1197 = vld [vmem:[#allocation11 + $0xd8] sm:$0xf]
    %v1198 = vld [vmem:[#allocation11 + $0xdc] sm:$0xf]
    %v1199 = vld [vmem:[#allocation11 + $0xe0] sm:$0xf]
    %v1200 = vld [vmem:[#allocation11 + $0xe4] sm:$0xf]
    %v1201 = vld [vmem:[#allocation11 + $0xe8] sm:$0xf]
    %v1202 = vld [vmem:[#allocation11 + $0xec] sm:$0xf]
    %v1203 = vld [vmem:[#allocation11 + $0xf0] sm:$0xf]
    %v1204 = vld [vmem:[#allocation11 + $0xf4] sm:$0xf]
    %v1205 = vld [vmem:[#allocation11 + $0xf8] sm:$0xf]
    %v1206 = vld [vmem:[#allocation11 + $0xfc] sm:$0xf]
    %v1207 = vld [vmem:[%s9] sm:$0x1]
    %v1209 = vlaneseq
    %v1210 = vshrl.u32 %v1209, 7
    %v1211 = vsub.s32 0, %v1210
    %v1212 = vrot.slane %v1207, %v1211
    %v1278 = vunpack.c.l.b16 %v1143
    %v1279 = vunpack.c.l.b16 %v1144
    %v1280 = vunpack.c.l.b16 %v1145
    %v1281 = vunpack.c.l.b16 %v1146
    %v1282 = vunpack.c.l.b16 %v1147
    %v1283 = vunpack.c.l.b16 %v1148
    %v1284 = vunpack.c.l.b16 %v1149
    %v1285 = vunpack.c.l.b16 %v1150
    %v1286 = vunpack.c.l.b16 %v1151
    %v1287 = vunpack.c.l.b16 %v1152
    %v1288 = vunpack.c.l.b16 %v1153
    %v1289 = vunpack.c.l.b16 %v1154
    %v1290 = vunpack.c.l.b16 %v1155
    %v1291 = vunpack.c.l.b16 %v1156
    %v1292 = vunpack.c.l.b16 %v1157
    %v1293 = vunpack.c.l.b16 %v1158
    %v1294 = vunpack.c.l.b16 %v1159
    %v1295 = vunpack.c.l.b16 %v1160
    %v1296 = vunpack.c.l.b16 %v1161
    %v1297 = vunpack.c.l.b16 %v1162
    %v1298 = vunpack.c.l.b16 %v1163
    %v1299 = vunpack.c.l.b16 %v1164
    %v1300 = vunpack.c.l.b16 %v1165
    %v1301 = vunpack.c.l.b16 %v1166
    %v1302 = vunpack.c.l.b16 %v1167
    %v1303 = vunpack.c.l.b16 %v1168
    %v1304 = vunpack.c.l.b16 %v1169
    %v1305 = vunpack.c.l.b16 %v1170
    %v1306 = vunpack.c.l.b16 %v1171
    %v1307 = vunpack.c.l.b16 %v1172
    %v1308 = vunpack.c.l.b16 %v1173
    %v1309 = vunpack.c.l.b16 %v1174
    %v1310 = vunpack.c.l.b16 %v1175
    %v1311 = vunpack.c.l.b16 %v1176
    %v1312 = vunpack.c.l.b16 %v1177
    %v1313 = vunpack.c.l.b16 %v1178
    %v1314 = vunpack.c.l.b16 %v1179
    %v1315 = vunpack.c.l.b16 %v1180
    %v1316 = vunpack.c.l.b16 %v1181
    %v1317 = vunpack.c.l.b16 %v1182
    %v1318 = vunpack.c.l.b16 %v1183
    %v1319 = vunpack.c.l.b16 %v1184
    %v1320 = vunpack.c.l.b16 %v1185
    %v1321 = vunpack.c.l.b16 %v1186
    %v1322 = vunpack.c.l.b16 %v1187
    %v1323 = vunpack.c.l.b16 %v1188
    %v1324 = vunpack.c.l.b16 %v1189
    %v1325 = vunpack.c.l.b16 %v1190
    %v1326 = vunpack.c.l.b16 %v1191
    %v1327 = vunpack.c.l.b16 %v1192
    %v1328 = vunpack.c.l.b16 %v1193
    %v1329 = vunpack.c.l.b16 %v1194
    %v1330 = vunpack.c.l.b16 %v1195
    %v1331 = vunpack.c.l.b16 %v1196
    %v1332 = vunpack.c.l.b16 %v1197
    %v1333 = vunpack.c.l.b16 %v1198
    %v1334 = vunpack.c.l.b16 %v1199
    %v1335 = vunpack.c.l.b16 %v1200
    %v1336 = vunpack.c.l.b16 %v1201
    %v1337 = vunpack.c.l.b16 %v1202
    %v1338 = vunpack.c.l.b16 %v1203
    %v1339 = vunpack.c.l.b16 %v1204
    %v1340 = vunpack.c.l.b16 %v1205
    %v1341 = vunpack.c.l.b16 %v1206
    %v1342 = vpack.c.b16 %v1279, %v1278
    %v1343 = vpack.c.b16 %v1281, %v1280
    %v1344 = vpack.c.b16 %v1283, %v1282
    %v1345 = vpack.c.b16 %v1285, %v1284
    %v1346 = vpack.c.b16 %v1287, %v1286
    %v1347 = vpack.c.b16 %v1289, %v1288
    %v1348 = vpack.c.b16 %v1291, %v1290
    %v1349 = vpack.c.b16 %v1293, %v1292
    %v1350 = vpack.c.b16 %v1295, %v1294
    %v1351 = vpack.c.b16 %v1297, %v1296
    %v1352 = vpack.c.b16 %v1299, %v1298
    %v1353 = vpack.c.b16 %v1301, %v1300
    %v1354 = vpack.c.b16 %v1303, %v1302
    %v1355 = vpack.c.b16 %v1305, %v1304
    %v1356 = vpack.c.b16 %v1307, %v1306
    %v1357 = vpack.c.b16 %v1309, %v1308
    %v1358 = vpack.c.b16 %v1311, %v1310
    %v1359 = vpack.c.b16 %v1313, %v1312
    %v1360 = vpack.c.b16 %v1315, %v1314
    %v1361 = vpack.c.b16 %v1317, %v1316
    %v1362 = vpack.c.b16 %v1319, %v1318
    %v1363 = vpack.c.b16 %v1321, %v1320
    %v1364 = vpack.c.b16 %v1323, %v1322
    %v1365 = vpack.c.b16 %v1325, %v1324
    %v1366 = vpack.c.b16 %v1327, %v1326
    %v1367 = vpack.c.b16 %v1329, %v1328
    %v1368 = vpack.c.b16 %v1331, %v1330
    %v1369 = vpack.c.b16 %v1333, %v1332
    %v1370 = vpack.c.b16 %v1335, %v1334
    %v1371 = vpack.c.b16 %v1337, %v1336
    %v1372 = vpack.c.b16 %v1339, %v1338
    %v1373 = vpack.c.b16 %v1341, %v1340
    %1406 = vmatprep.subr.bf16.mxu0 0
    %1407 = vmatpush1.bf16.msra.mxu0 %v1342
    %1408 = vmatprep.subr.bf16.mxu0 0
    %1409 = vmatpush1.bf16.msra.mxu0 %v1343
    %1410 = vmatprep.subr.bf16.mxu0 0
    %1411 = vmatpush1.bf16.msra.mxu0 %v1344
    %1412 = vmatprep.subr.bf16.mxu0 0
    %1413 = vmatpush1.bf16.msra.mxu0 %v1345
    %1414 = vmatprep.subr.bf16.mxu0 0
    %1415 = vmatpush1.bf16.msra.mxu0 %v1346
    %1416 = vmatprep.subr.bf16.mxu0 0
    %1417 = vmatpush1.bf16.msra.mxu0 %v1347
    %1418 = vmatprep.subr.bf16.mxu0 0
    %1419 = vmatpush1.bf16.msra.mxu0 %v1348
    %1420 = vmatprep.subr.bf16.mxu0 0
    %1421 = vmatpush1.bf16.msra.mxu0 %v1349
    %1422 = vmatprep.subr.bf16.mxu0 0
    %1423 = vmatpush1.bf16.msra.mxu0 %v1350
    %1424 = vmatprep.subr.bf16.mxu0 0
    %1425 = vmatpush1.bf16.msra.mxu0 %v1351
    %1426 = vmatprep.subr.bf16.mxu0 0
    %1427 = vmatpush1.bf16.msra.mxu0 %v1352
    %1428 = vmatprep.subr.bf16.mxu0 0
    %1429 = vmatpush1.bf16.msra.mxu0 %v1353
    %1430 = vmatprep.subr.bf16.mxu0 0
    %1431 = vmatpush1.bf16.msra.mxu0 %v1354
    %1432 = vmatprep.subr.bf16.mxu0 0
    %1433 = vmatpush1.bf16.msra.mxu0 %v1355
    %1434 = vmatprep.subr.bf16.mxu0 0
    %1435 = vmatpush1.bf16.msra.mxu0 %v1356
    %1436 = vmatprep.subr.bf16.mxu0 0
    %1437 = vmatpush1.bf16.msra.mxu0 %v1357
    %1438 = vmatprep.mubr.bf16.mxu0 %v1140
    %1439 = vmatmul.mubr.bf16.gmra.mrb[0].mxu0 %v1139
    %v1440 = vpop.f32.mrb[0].mxu0
    %v1441 = vadd.f32 %v1212, %v1440
    %v1442 = vpop.f32.mrb[0].mxu0
    %v1443 = vpop.f32.mrb[0].mxu0
    %v1444 = vadd.f32 %v1212, %v1443
    %v1445 = vpop.f32.mrb[0].mxu0
    %1446 = vdwg.mxu0
    %1447 = vmatprep.subr.bf16.mxu0 0
    %1448 = vmatpush1.bf16.msra.mxu0 %v1358
    %1449 = vmatprep.subr.bf16.mxu0 0
    %1450 = vmatpush1.bf16.msra.mxu0 %v1359
    %1451 = vmatprep.subr.bf16.mxu0 0
    %1452 = vmatpush1.bf16.msra.mxu0 %v1360
    %1453 = vmatprep.subr.bf16.mxu0 0
    %1454 = vmatpush1.bf16.msra.mxu0 %v1361
    %1455 = vmatprep.subr.bf16.mxu0 0
    %1456 = vmatpush1.bf16.msra.mxu0 %v1362
    %1457 = vmatprep.subr.bf16.mxu0 0
    %1458 = vmatpush1.bf16.msra.mxu0 %v1363
    %1459 = vmatprep.subr.bf16.mxu0 0
    %1460 = vmatpush1.bf16.msra.mxu0 %v1364
    %1461 = vmatprep.subr.bf16.mxu0 0
    %1462 = vmatpush1.bf16.msra.mxu0 %v1365
    %1463 = vmatprep.subr.bf16.mxu0 0
    %1464 = vmatpush1.bf16.msra.mxu0 %v1366
    %1465 = vmatprep.subr.bf16.mxu0 0
    %1466 = vmatpush1.bf16.msra.mxu0 %v1367
    %1467 = vmatprep.subr.bf16.mxu0 0
    %1468 = vmatpush1.bf16.msra.mxu0 %v1368
    %1469 = vmatprep.subr.bf16.mxu0 0
    %1470 = vmatpush1.bf16.msra.mxu0 %v1369
    %1471 = vmatprep.subr.bf16.mxu0 0
    %1472 = vmatpush1.bf16.msra.mxu0 %v1370
    %1473 = vmatprep.subr.bf16.mxu0 0
    %1474 = vmatpush1.bf16.msra.mxu0 %v1371
    %1475 = vmatprep.subr.bf16.mxu0 0
    %1476 = vmatpush1.bf16.msra.mxu0 %v1372
    %1477 = vmatprep.subr.bf16.mxu0 0
    %1478 = vmatpush1.bf16.msra.mxu0 %v1373
    %1479 = vmatprep.mubr.bf16.mxu0 %v1142
    %1480 = vmatmul.mubr.bf16.gmra.mrb[0].mxu0 %v1141
    %v1481 = vpop.f32.mrb[0].mxu0
    %v1482 = vadd.f32 %v1441, %v1481
    %v1483 = vpop.f32.mrb[0].mxu0
    %v1484 = vpop.f32.mrb[0].mxu0
    %v1485 = vadd.f32 %v1444, %v1484
    %v1486 = vpop.f32.mrb[0].mxu0
    %1487 = vdwg.mxu0
    %v1488 = vpack.c.bf16 %v822, %v819
    %v1489 = vpack.c.bf16 %v1485, %v1482
    %v1490 = vld [vmem:[#allocation13] sm:$0xff]
    %v1491 = vld [vmem:[#allocation13 + $0x8] sm:$0xff]
    %v1492 = vld [vmem:[#allocation13 + $0x10] sm:$0xff]
    %v1493 = vld [vmem:[#allocation13 + $0x18] sm:$0xff]
    %v1494 = vld [vmem:[#allocation13 + $0x20] sm:$0xff]
    %v1495 = vld [vmem:[#allocation13 + $0x28] sm:$0xff]
    %v1496 = vld [vmem:[#allocation13 + $0x30] sm:$0xff]
    %v1497 = vld [vmem:[#allocation13 + $0x38] sm:$0xff]
    %v1498 = vld [vmem:[#allocation13 + $0x40] sm:$0xff]
    %v1499 = vld [vmem:[#allocation13 + $0x48] sm:$0xff]
    %v1500 = vld [vmem:[#allocation13 + $0x50] sm:$0xff]
    %v1501 = vld [vmem:[#allocation13 + $0x58] sm:$0xff]
    %v1502 = vld [vmem:[#allocation13 + $0x60] sm:$0xff]
    %v1503 = vld [vmem:[#allocation13 + $0x68] sm:$0xff]
    %v1504 = vld [vmem:[#allocation13 + $0x70] sm:$0xff]
    %v1505 = vld [vmem:[#allocation13 + $0x78] sm:$0xff]
    %v1506 = vld [vmem:[#allocation13 + $0x80] sm:$0xff]
    %v1507 = vld [vmem:[#allocation13 + $0x88] sm:$0xff]
    %v1508 = vld [vmem:[#allocation13 + $0x90] sm:$0xff]
    %v1509 = vld [vmem:[#allocation13 + $0x98] sm:$0xff]
    %v1510 = vld [vmem:[#allocation13 + $0xa0] sm:$0xff]
    %v1511 = vld [vmem:[#allocation13 + $0xa8] sm:$0xff]
    %v1512 = vld [vmem:[#allocation13 + $0xb0] sm:$0xff]
    %v1513 = vld [vmem:[#allocation13 + $0xb8] sm:$0xff]
    %v1514 = vld [vmem:[#allocation13 + $0xc0] sm:$0xff]
    %v1515 = vld [vmem:[#allocation13 + $0xc8] sm:$0xff]
    %v1516 = vld [vmem:[#allocation13 + $0xd0] sm:$0xff]
    %v1517 = vld [vmem:[#allocation13 + $0xd8] sm:$0xff]
    %v1518 = vld [vmem:[#allocation13 + $0xe0] sm:$0xff]
    %v1519 = vld [vmem:[#allocation13 + $0xe8] sm:$0xff]
    %v1520 = vld [vmem:[#allocation13 + $0xf0] sm:$0xff]
    %v1521 = vld [vmem:[#allocation13 + $0xf8] sm:$0xff]
    %v1522 = vld [vmem:[#allocation13 + $0x100] sm:$0xff]
    %v1523 = vld [vmem:[#allocation13 + $0x108] sm:$0xff]
    %v1524 = vld [vmem:[#allocation13 + $0x110] sm:$0xff]
    %v1525 = vld [vmem:[#allocation13 + $0x118] sm:$0xff]
    %v1526 = vld [vmem:[#allocation13 + $0x120] sm:$0xff]
    %v1527 = vld [vmem:[#allocation13 + $0x128] sm:$0xff]
    %v1528 = vld [vmem:[#allocation13 + $0x130] sm:$0xff]
    %v1529 = vld [vmem:[#allocation13 + $0x138] sm:$0xff]
    %v1530 = vld [vmem:[#allocation13 + $0x140] sm:$0xff]
    %v1531 = vld [vmem:[#allocation13 + $0x148] sm:$0xff]
    %v1532 = vld [vmem:[#allocation13 + $0x150] sm:$0xff]
    %v1533 = vld [vmem:[#allocation13 + $0x158] sm:$0xff]
    %v1534 = vld [vmem:[#allocation13 + $0x160] sm:$0xff]
    %v1535 = vld [vmem:[#allocation13 + $0x168] sm:$0xff]
    %v1536 = vld [vmem:[#allocation13 + $0x170] sm:$0xff]
    %v1537 = vld [vmem:[#allocation13 + $0x178] sm:$0xff]
    %v1538 = vld [vmem:[#allocation13 + $0x180] sm:$0xff]
    %v1539 = vld [vmem:[#allocation13 + $0x188] sm:$0xff]
    %v1540 = vld [vmem:[#allocation13 + $0x190] sm:$0xff]
    %v1541 = vld [vmem:[#allocation13 + $0x198] sm:$0xff]
    %v1542 = vld [vmem:[#allocation13 + $0x1a0] sm:$0xff]
    %v1543 = vld [vmem:[#allocation13 + $0x1a8] sm:$0xff]
    %v1544 = vld [vmem:[#allocation13 + $0x1b0] sm:$0xff]
    %v1545 = vld [vmem:[#allocation13 + $0x1b8] sm:$0xff]
    %v1546 = vld [vmem:[#allocation13 + $0x1c0] sm:$0xff]
    %v1547 = vld [vmem:[#allocation13 + $0x1c8] sm:$0xff]
    %v1548 = vld [vmem:[#allocation13 + $0x1d0] sm:$0xff]
    %v1549 = vld [vmem:[#allocation13 + $0x1d8] sm:$0xff]
    %v1550 = vld [vmem:[#allocation13 + $0x1e0] sm:$0xff]
    %v1551 = vld [vmem:[#allocation13 + $0x1e8] sm:$0xff]
    %v1552 = vld [vmem:[#allocation13 + $0x1f0] sm:$0xff]
    %v1553 = vld [vmem:[#allocation13 + $0x1f8] sm:$0xff]
    %v1554 = vld [vmem:[%s11] sm:$0xf]
    %v1556 = vlaneseq
    %v1557 = vshrl.u32 %v1556, 7
    %v1558 = vsub.s32 0, %v1557
    %v1559 = vrot.slane %v1554, %v1558
    %v1560 = vlaneseq
    %v1561 = vshrl.u32 %v1560, 7
    %v1562 = vsub.s32 1, %v1561
    %v1563 = vrot.slane %v1554, %v1562
    %v1564 = vlaneseq
    %v1565 = vshrl.u32 %v1564, 7
    %v1566 = vsub.s32 2, %v1565
    %v1567 = vrot.slane %v1554, %v1566
    %v1568 = vlaneseq
    %v1569 = vshrl.u32 %v1568, 7
    %v1570 = vsub.s32 3, %v1569
    %v1571 = vrot.slane %v1554, %v1570
    %v1640 = vunpack.c.l.b16 %v1490
    %v1641 = vunpack.c.h.b16 %v1490
    %v1642 = vunpack.c.l.b16 %v1491
    %v1643 = vunpack.c.h.b16 %v1491
    %v1644 = vunpack.c.l.b16 %v1492
    %v1645 = vunpack.c.h.b16 %v1492
    %v1646 = vunpack.c.l.b16 %v1493
    %v1647 = vunpack.c.h.b16 %v1493
    %v1648 = vunpack.c.l.b16 %v1494
    %v1649 = vunpack.c.h.b16 %v1494
    %v1650 = vunpack.c.l.b16 %v1495
    %v1651 = vunpack.c.h.b16 %v1495
    %v1652 = vunpack.c.l.b16 %v1496
    %v1653 = vunpack.c.h.b16 %v1496
    %v1654 = vunpack.c.l.b16 %v1497
    %v1655 = vunpack.c.h.b16 %v1497
    %v1656 = vunpack.c.l.b16 %v1498
    %v1657 = vunpack.c.h.b16 %v1498
    %v1658 = vunpack.c.l.b16 %v1499
    %v1659 = vunpack.c.h.b16 %v1499
    %v1660 = vunpack.c.l.b16 %v1500
    %v1661 = vunpack.c.h.b16 %v1500
    %v1662 = vunpack.c.l.b16 %v1501
    %v1663 = vunpack.c.h.b16 %v1501
    %v1664 = vunpack.c.l.b16 %v1502
    %v1665 = vunpack.c.h.b16 %v1502
    %v1666 = vunpack.c.l.b16 %v1503
    %v1667 = vunpack.c.h.b16 %v1503
    %v1668 = vunpack.c.l.b16 %v1504
    %v1669 = vunpack.c.h.b16 %v1504
    %v1670 = vunpack.c.l.b16 %v1505
    %v1671 = vunpack.c.h.b16 %v1505
    %v1672 = vunpack.c.l.b16 %v1506
    %v1673 = vunpack.c.h.b16 %v1506
    %v1674 = vunpack.c.l.b16 %v1507
    %v1675 = vunpack.c.h.b16 %v1507
    %v1676 = vunpack.c.l.b16 %v1508
    %v1677 = vunpack.c.h.b16 %v1508
    %v1678 = vunpack.c.l.b16 %v1509
    %v1679 = vunpack.c.h.b16 %v1509
    %v1680 = vunpack.c.l.b16 %v1510
    %v1681 = vunpack.c.h.b16 %v1510
    %v1682 = vunpack.c.l.b16 %v1511
    %v1683 = vunpack.c.h.b16 %v1511
    %v1684 = vunpack.c.l.b16 %v1512
    %v1685 = vunpack.c.h.b16 %v1512
    %v1686 = vunpack.c.l.b16 %v1513
    %v1687 = vunpack.c.h.b16 %v1513
    %v1688 = vunpack.c.l.b16 %v1514
    %v1689 = vunpack.c.h.b16 %v1514
    %v1690 = vunpack.c.l.b16 %v1515
    %v1691 = vunpack.c.h.b16 %v1515
    %v1692 = vunpack.c.l.b16 %v1516
    %v1693 = vunpack.c.h.b16 %v1516
    %v1694 = vunpack.c.l.b16 %v1517
    %v1695 = vunpack.c.h.b16 %v1517
    %v1696 = vunpack.c.l.b16 %v1518
    %v1697 = vunpack.c.h.b16 %v1518
    %v1698 = vunpack.c.l.b16 %v1519
    %v1699 = vunpack.c.h.b16 %v1519
    %v1700 = vunpack.c.l.b16 %v1520
    %v1701 = vunpack.c.h.b16 %v1520
    %v1702 = vunpack.c.l.b16 %v1521
    %v1703 = vunpack.c.h.b16 %v1521
    %v1704 = vunpack.c.l.b16 %v1522
    %v1705 = vunpack.c.h.b16 %v1522
    %v1706 = vunpack.c.l.b16 %v1523
    %v1707 = vunpack.c.h.b16 %v1523
    %v1708 = vunpack.c.l.b16 %v1524
    %v1709 = vunpack.c.h.b16 %v1524
    %v1710 = vunpack.c.l.b16 %v1525
    %v1711 = vunpack.c.h.b16 %v1525
    %v1712 = vunpack.c.l.b16 %v1526
    %v1713 = vunpack.c.h.b16 %v1526
    %v1714 = vunpack.c.l.b16 %v1527
    %v1715 = vunpack.c.h.b16 %v1527
    %v1716 = vunpack.c.l.b16 %v1528
    %v1717 = vunpack.c.h.b16 %v1528
    %v1718 = vunpack.c.l.b16 %v1529
    %v1719 = vunpack.c.h.b16 %v1529
    %v1720 = vunpack.c.l.b16 %v1530
    %v1721 = vunpack.c.h.b16 %v1530
    %v1722 = vunpack.c.l.b16 %v1531
    %v1723 = vunpack.c.h.b16 %v1531
    %v1724 = vunpack.c.l.b16 %v1532
    %v1725 = vunpack.c.h.b16 %v1532
    %v1726 = vunpack.c.l.b16 %v1533
    %v1727 = vunpack.c.h.b16 %v1533
    %v1728 = vunpack.c.l.b16 %v1534
    %v1729 = vunpack.c.h.b16 %v1534
    %v1730 = vunpack.c.l.b16 %v1535
    %v1731 = vunpack.c.h.b16 %v1535
    %v1732 = vunpack.c.l.b16 %v1536
    %v1733 = vunpack.c.h.b16 %v1536
    %v1734 = vunpack.c.l.b16 %v1537
    %v1735 = vunpack.c.h.b16 %v1537
    %v1736 = vunpack.c.l.b16 %v1538
    %v1737 = vunpack.c.h.b16 %v1538
    %v1738 = vunpack.c.l.b16 %v1539
    %v1739 = vunpack.c.h.b16 %v1539
    %v1740 = vunpack.c.l.b16 %v1540
    %v1741 = vunpack.c.h.b16 %v1540
    %v1742 = vunpack.c.l.b16 %v1541
    %v1743 = vunpack.c.h.b16 %v1541
    %v1744 = vunpack.c.l.b16 %v1542
    %v1745 = vunpack.c.h.b16 %v1542
    %v1746 = vunpack.c.l.b16 %v1543
    %v1747 = vunpack.c.h.b16 %v1543
    %v1748 = vunpack.c.l.b16 %v1544
    %v1749 = vunpack.c.h.b16 %v1544
    %v1750 = vunpack.c.l.b16 %v1545
    %v1751 = vunpack.c.h.b16 %v1545
    %v1752 = vunpack.c.l.b16 %v1546
    %v1753 = vunpack.c.h.b16 %v1546
    %v1754 = vunpack.c.l.b16 %v1547
    %v1755 = vunpack.c.h.b16 %v1547
    %v1756 = vunpack.c.l.b16 %v1548
    %v1757 = vunpack.c.h.b16 %v1548
    %v1758 = vunpack.c.l.b16 %v1549
    %v1759 = vunpack.c.h.b16 %v1549
    %v1760 = vunpack.c.l.b16 %v1550
    %v1761 = vunpack.c.h.b16 %v1550
    %v1762 = vunpack.c.l.b16 %v1551
    %v1763 = vunpack.c.h.b16 %v1551
    %v1764 = vunpack.c.l.b16 %v1552
    %v1765 = vunpack.c.h.b16 %v1552
    %v1766 = vunpack.c.l.b16 %v1553
    %v1767 = vunpack.c.h.b16 %v1553
    %v1768 = vpack.c.b16 %v1644, %v1640
    %v1769 = vpack.c.b16 %v1645, %v1641
    %v1770 = vpack.c.b16 %v1646, %v1642
    %v1771 = vpack.c.b16 %v1647, %v1643
    %v1772 = vpack.c.b16 %v1652, %v1648
    %v1773 = vpack.c.b16 %v1653, %v1649
    %v1774 = vpack.c.b16 %v1654, %v1650
    %v1775 = vpack.c.b16 %v1655, %v1651
    %v1776 = vpack.c.b16 %v1660, %v1656
    %v1777 = vpack.c.b16 %v1661, %v1657
    %v1778 = vpack.c.b16 %v1662, %v1658
    %v1779 = vpack.c.b16 %v1663, %v1659
    %v1780 = vpack.c.b16 %v1668, %v1664
    %v1781 = vpack.c.b16 %v1669, %v1665
    %v1782 = vpack.c.b16 %v1670, %v1666
    %v1783 = vpack.c.b16 %v1671, %v1667
    %v1784 = vpack.c.b16 %v1676, %v1672
    %v1785 = vpack.c.b16 %v1677, %v1673
    %v1786 = vpack.c.b16 %v1678, %v1674
    %v1787 = vpack.c.b16 %v1679, %v1675
    %v1788 = vpack.c.b16 %v1684, %v1680
    %v1789 = vpack.c.b16 %v1685, %v1681
    %v1790 = vpack.c.b16 %v1686, %v1682
    %v1791 = vpack.c.b16 %v1687, %v1683
    %v1792 = vpack.c.b16 %v1692, %v1688
    %v1793 = vpack.c.b16 %v1693, %v1689
    %v1794 = vpack.c.b16 %v1694, %v1690
    %v1795 = vpack.c.b16 %v1695, %v1691
    %v1796 = vpack.c.b16 %v1700, %v1696
    %v1797 = vpack.c.b16 %v1701, %v1697
    %v1798 = vpack.c.b16 %v1702, %v1698
    %v1799 = vpack.c.b16 %v1703, %v1699
    %v1800 = vpack.c.b16 %v1708, %v1704
    %v1801 = vpack.c.b16 %v1709, %v1705
    %v1802 = vpack.c.b16 %v1710, %v1706
    %v1803 = vpack.c.b16 %v1711, %v1707
    %v1804 = vpack.c.b16 %v1716, %v1712
    %v1805 = vpack.c.b16 %v1717, %v1713
    %v1806 = vpack.c.b16 %v1718, %v1714
    %v1807 = vpack.c.b16 %v1719, %v1715
    %v1808 = vpack.c.b16 %v1724, %v1720
    %v1809 = vpack.c.b16 %v1725, %v1721
    %v1810 = vpack.c.b16 %v1726, %v1722
    %v1811 = vpack.c.b16 %v1727, %v1723
    %v1812 = vpack.c.b16 %v1732, %v1728
    %v1813 = vpack.c.b16 %v1733, %v1729
    %v1814 = vpack.c.b16 %v1734, %v1730
    %v1815 = vpack.c.b16 %v1735, %v1731
    %v1816 = vpack.c.b16 %v1740, %v1736
    %v1817 = vpack.c.b16 %v1741, %v1737
    %v1818 = vpack.c.b16 %v1742, %v1738
    %v1819 = vpack.c.b16 %v1743, %v1739
    %v1820 = vpack.c.b16 %v1748, %v1744
    %v1821 = vpack.c.b16 %v1749, %v1745
    %v1822 = vpack.c.b16 %v1750, %v1746
    %v1823 = vpack.c.b16 %v1751, %v1747
    %v1824 = vpack.c.b16 %v1756, %v1752
    %v1825 = vpack.c.b16 %v1757, %v1753
    %v1826 = vpack.c.b16 %v1758, %v1754
    %v1827 = vpack.c.b16 %v1759, %v1755
    %v1828 = vpack.c.b16 %v1764, %v1760
    %v1829 = vpack.c.b16 %v1765, %v1761
    %v1830 = vpack.c.b16 %v1766, %v1762
    %v1831 = vpack.c.b16 %v1767, %v1763
    %1896 = vmatprep.subr.bf16.mxu0 %v1769
    %1897 = vmatpush1.bf16.msra.mxu0 %v1768
    %1898 = vmatprep.subr.bf16.mxu0 %v1773
    %1899 = vmatpush1.bf16.msra.mxu0 %v1772
    %1900 = vmatprep.subr.bf16.mxu0 %v1777
    %1901 = vmatpush1.bf16.msra.mxu0 %v1776
    %1902 = vmatprep.subr.bf16.mxu0 %v1781
    %1903 = vmatpush1.bf16.msra.mxu0 %v1780
    %1904 = vmatprep.subr.bf16.mxu0 %v1785
    %1905 = vmatpush1.bf16.msra.mxu0 %v1784
    %1906 = vmatprep.subr.bf16.mxu0 %v1789
    %1907 = vmatpush1.bf16.msra.mxu0 %v1788
    %1908 = vmatprep.subr.bf16.mxu0 %v1793
    %1909 = vmatpush1.bf16.msra.mxu0 %v1792
    %1910 = vmatprep.subr.bf16.mxu0 %v1797
    %1911 = vmatpush1.bf16.msra.mxu0 %v1796
    %1912 = vmatprep.subr.bf16.mxu0 %v1801
    %1913 = vmatpush1.bf16.msra.mxu0 %v1800
    %1914 = vmatprep.subr.bf16.mxu0 %v1805
    %1915 = vmatpush1.bf16.msra.mxu0 %v1804
    %1916 = vmatprep.subr.bf16.mxu0 %v1809
    %1917 = vmatpush1.bf16.msra.mxu0 %v1808
    %1918 = vmatprep.subr.bf16.mxu0 %v1813
    %1919 = vmatpush1.bf16.msra.mxu0 %v1812
    %1920 = vmatprep.subr.bf16.mxu0 %v1817
    %1921 = vmatpush1.bf16.msra.mxu0 %v1816
    %1922 = vmatprep.subr.bf16.mxu0 %v1821
    %1923 = vmatpush1.bf16.msra.mxu0 %v1820
    %1924 = vmatprep.subr.bf16.mxu0 %v1825
    %1925 = vmatpush1.bf16.msra.mxu0 %v1824
    %1926 = vmatprep.subr.bf16.mxu0 %v1829
    %1927 = vmatpush1.bf16.msra.mxu0 %v1828
    %1928 = vmatprep.mubr.bf16.mxu0 %v1489
    %1929 = vmatmul.mubr.bf16.gmra.mrb[0].mxu0 %v1488
    %v1930 = vpop.f32.mrb[0].mxu0
    %v1931 = vadd.f32 %v1559, %v1930
    %v1932 = vpop.f32.mrb[0].mxu0
    %v1933 = vadd.f32 %v1563, %v1932
    %v1934 = vpop.f32.mrb[0].mxu0
    %v1935 = vadd.f32 %v1559, %v1934
    %v1936 = vpop.f32.mrb[0].mxu0
    %v1937 = vadd.f32 %v1563, %v1936
    %1938 = vdwg.mxu0
    %1939 = vmatprep.subr.bf16.mxu0 %v1771
    %1940 = vmatpush1.bf16.msra.mxu0 %v1770
    %1941 = vmatprep.subr.bf16.mxu0 %v1775
    %1942 = vmatpush1.bf16.msra.mxu0 %v1774
    %1943 = vmatprep.subr.bf16.mxu0 %v1779
    %1944 = vmatpush1.bf16.msra.mxu0 %v1778
    %1945 = vmatprep.subr.bf16.mxu0 %v1783
    %1946 = vmatpush1.bf16.msra.mxu0 %v1782
    %1947 = vmatprep.subr.bf16.mxu0 %v1787
    %1948 = vmatpush1.bf16.msra.mxu0 %v1786
    %1949 = vmatprep.subr.bf16.mxu0 %v1791
    %1950 = vmatpush1.bf16.msra.mxu0 %v1790
    %1951 = vmatprep.subr.bf16.mxu0 %v1795
    %1952 = vmatpush1.bf16.msra.mxu0 %v1794
    %1953 = vmatprep.subr.bf16.mxu0 %v1799
    %1954 = vmatpush1.bf16.msra.mxu0 %v1798
    %1955 = vmatprep.subr.bf16.mxu0 %v1803
    %1956 = vmatpush1.bf16.msra.mxu0 %v1802
    %1957 = vmatprep.subr.bf16.mxu0 %v1807
    %1958 = vmatpush1.bf16.msra.mxu0 %v1806
    %1959 = vmatprep.subr.bf16.mxu0 %v1811
    %1960 = vmatpush1.bf16.msra.mxu0 %v1810
    %1961 = vmatprep.subr.bf16.mxu0 %v1815
    %1962 = vmatpush1.bf16.msra.mxu0 %v1814
    %1963 = vmatprep.subr.bf16.mxu0 %v1819
    %1964 = vmatpush1.bf16.msra.mxu0 %v1818
    %1965 = vmatprep.subr.bf16.mxu0 %v1823
    %1966 = vmatpush1.bf16.msra.mxu0 %v1822
    %1967 = vmatprep.subr.bf16.mxu0 %v1827
    %1968 = vmatpush1.bf16.msra.mxu0 %v1826
    %1969 = vmatprep.subr.bf16.mxu0 %v1831
    %1970 = vmatpush1.bf16.msra.mxu0 %v1830
    %1971 = vmatprep.mubr.bf16.mxu0 %v1489
    %1972 = vmatmul.mubr.bf16.gmra.mrb[0].mxu0 %v1488
    %v1973 = vpop.f32.mrb[0].mxu0
    %v1974 = vadd.f32 %v1567, %v1973
    %v1975 = vpop.f32.mrb[0].mxu0
    %v1976 = vadd.f32 %v1571, %v1975
    %v1977 = vpop.f32.mrb[0].mxu0
    %v1978 = vadd.f32 %v1567, %v1977
    %v1979 = vpop.f32.mrb[0].mxu0
    %v1980 = vadd.f32 %v1571, %v1979
    %1981 = vdwg.mxu0
    %v1982 = vmax.f32 %v1931, 0.0
    %v1983 = vmax.f32 %v1933, 0.0
    %v1984 = vmax.f32 %v1974, 0.0
    %v1985 = vmax.f32 %v1976, 0.0
    %v1986 = vmax.f32 %v1935, 0.0
    %v1987 = vmax.f32 %v1937, 0.0
    %v1988 = vmax.f32 %v1978, 0.0
    %v1989 = vmax.f32 %v1980, 0.0
    %v1990 = vpack.c.bf16 %v1986, %v1982
    %v1991 = vpack.c.bf16 %v1987, %v1983
    %v1992 = vpack.c.bf16 %v1988, %v1984
    %v1993 = vpack.c.bf16 %v1989, %v1985
    %v1994 = vld [vmem:[#allocation14] sm:$0xf]
    %v1995 = vld [vmem:[#allocation14 + $0x4] sm:$0xf]
    %v1996 = vld [vmem:[#allocation14 + $0x8] sm:$0xf]
    %v1997 = vld [vmem:[#allocation14 + $0xc] sm:$0xf]
    %v1998 = vld [vmem:[#allocation14 + $0x10] sm:$0xf]
    %v1999 = vld [vmem:[#allocation14 + $0x14] sm:$0xf]
    %v2000 = vld [vmem:[#allocation14 + $0x18] sm:$0xf]
    %v2001 = vld [vmem:[#allocation14 + $0x1c] sm:$0xf]
    %v2002 = vld [vmem:[#allocation14 + $0x20] sm:$0xf]
    %v2003 = vld [vmem:[#allocation14 + $0x24] sm:$0xf]
    %v2004 = vld [vmem:[#allocation14 + $0x28] sm:$0xf]
    %v2005 = vld [vmem:[#allocation14 + $0x2c] sm:$0xf]
    %v2006 = vld [vmem:[#allocation14 + $0x30] sm:$0xf]
    %v2007 = vld [vmem:[#allocation14 + $0x34] sm:$0xf]
    %v2008 = vld [vmem:[#allocation14 + $0x38] sm:$0xf]
    %v2009 = vld [vmem:[#allocation14 + $0x3c] sm:$0xf]
    %v2010 = vld [vmem:[#allocation14 + $0x40] sm:$0xf]
    %v2011 = vld [vmem:[#allocation14 + $0x44] sm:$0xf]
    %v2012 = vld [vmem:[#allocation14 + $0x48] sm:$0xf]
    %v2013 = vld [vmem:[#allocation14 + $0x4c] sm:$0xf]
    %v2014 = vld [vmem:[#allocation14 + $0x50] sm:$0xf]
    %v2015 = vld [vmem:[#allocation14 + $0x54] sm:$0xf]
    %v2016 = vld [vmem:[#allocation14 + $0x58] sm:$0xf]
    %v2017 = vld [vmem:[#allocation14 + $0x5c] sm:$0xf]
    %v2018 = vld [vmem:[#allocation14 + $0x60] sm:$0xf]
    %v2019 = vld [vmem:[#allocation14 + $0x64] sm:$0xf]
    %v2020 = vld [vmem:[#allocation14 + $0x68] sm:$0xf]
    %v2021 = vld [vmem:[#allocation14 + $0x6c] sm:$0xf]
    %v2022 = vld [vmem:[#allocation14 + $0x70] sm:$0xf]
    %v2023 = vld [vmem:[#allocation14 + $0x74] sm:$0xf]
    %v2024 = vld [vmem:[#allocation14 + $0x78] sm:$0xf]
    %v2025 = vld [vmem:[#allocation14 + $0x7c] sm:$0xf]
    %v2026 = vld [vmem:[#allocation14 + $0x80] sm:$0xf]
    %v2027 = vld [vmem:[#allocation14 + $0x84] sm:$0xf]
    %v2028 = vld [vmem:[#allocation14 + $0x88] sm:$0xf]
    %v2029 = vld [vmem:[#allocation14 + $0x8c] sm:$0xf]
    %v2030 = vld [vmem:[#allocation14 + $0x90] sm:$0xf]
    %v2031 = vld [vmem:[#allocation14 + $0x94] sm:$0xf]
    %v2032 = vld [vmem:[#allocation14 + $0x98] sm:$0xf]
    %v2033 = vld [vmem:[#allocation14 + $0x9c] sm:$0xf]
    %v2034 = vld [vmem:[#allocation14 + $0xa0] sm:$0xf]
    %v2035 = vld [vmem:[#allocation14 + $0xa4] sm:$0xf]
    %v2036 = vld [vmem:[#allocation14 + $0xa8] sm:$0xf]
    %v2037 = vld [vmem:[#allocation14 + $0xac] sm:$0xf]
    %v2038 = vld [vmem:[#allocation14 + $0xb0] sm:$0xf]
    %v2039 = vld [vmem:[#allocation14 + $0xb4] sm:$0xf]
    %v2040 = vld [vmem:[#allocation14 + $0xb8] sm:$0xf]
    %v2041 = vld [vmem:[#allocation14 + $0xbc] sm:$0xf]
    %v2042 = vld [vmem:[#allocation14 + $0xc0] sm:$0xf]
    %v2043 = vld [vmem:[#allocation14 + $0xc4] sm:$0xf]
    %v2044 = vld [vmem:[#allocation14 + $0xc8] sm:$0xf]
    %v2045 = vld [vmem:[#allocation14 + $0xcc] sm:$0xf]
    %v2046 = vld [vmem:[#allocation14 + $0xd0] sm:$0xf]
    %v2047 = vld [vmem:[#allocation14 + $0xd4] sm:$0xf]
    %v2048 = vld [vmem:[#allocation14 + $0xd8] sm:$0xf]
    %v2049 = vld [vmem:[#allocation14 + $0xdc] sm:$0xf]
    %v2050 = vld [vmem:[#allocation14 + $0xe0] sm:$0xf]
    %v2051 = vld [vmem:[#allocation14 + $0xe4] sm:$0xf]
    %v2052 = vld [vmem:[#allocation14 + $0xe8] sm:$0xf]
    %v2053 = vld [vmem:[#allocation14 + $0xec] sm:$0xf]
    %v2054 = vld [vmem:[#allocation14 + $0xf0] sm:$0xf]
    %v2055 = vld [vmem:[#allocation14 + $0xf4] sm:$0xf]
    %v2056 = vld [vmem:[#allocation14 + $0xf8] sm:$0xf]
    %v2057 = vld [vmem:[#allocation14 + $0xfc] sm:$0xf]
    %v2058 = vld [vmem:[%s13] sm:$0x1]
    %v2060 = vlaneseq
    %v2061 = vshrl.u32 %v2060, 7
    %v2062 = vsub.s32 0, %v2061
    %v2063 = vrot.slane %v2058, %v2062
    %v2129 = vunpack.c.l.b16 %v1994
    %v2130 = vunpack.c.l.b16 %v1995
    %v2131 = vunpack.c.l.b16 %v1996
    %v2132 = vunpack.c.l.b16 %v1997
    %v2133 = vunpack.c.l.b16 %v1998
    %v2134 = vunpack.c.l.b16 %v1999
    %v2135 = vunpack.c.l.b16 %v2000
    %v2136 = vunpack.c.l.b16 %v2001
    %v2137 = vunpack.c.l.b16 %v2002
    %v2138 = vunpack.c.l.b16 %v2003
    %v2139 = vunpack.c.l.b16 %v2004
    %v2140 = vunpack.c.l.b16 %v2005
    %v2141 = vunpack.c.l.b16 %v2006
    %v2142 = vunpack.c.l.b16 %v2007
    %v2143 = vunpack.c.l.b16 %v2008
    %v2144 = vunpack.c.l.b16 %v2009
    %v2145 = vunpack.c.l.b16 %v2010
    %v2146 = vunpack.c.l.b16 %v2011
    %v2147 = vunpack.c.l.b16 %v2012
    %v2148 = vunpack.c.l.b16 %v2013
    %v2149 = vunpack.c.l.b16 %v2014
    %v2150 = vunpack.c.l.b16 %v2015
    %v2151 = vunpack.c.l.b16 %v2016
    %v2152 = vunpack.c.l.b16 %v2017
    %v2153 = vunpack.c.l.b16 %v2018
    %v2154 = vunpack.c.l.b16 %v2019
    %v2155 = vunpack.c.l.b16 %v2020
    %v2156 = vunpack.c.l.b16 %v2021
    %v2157 = vunpack.c.l.b16 %v2022
    %v2158 = vunpack.c.l.b16 %v2023
    %v2159 = vunpack.c.l.b16 %v2024
    %v2160 = vunpack.c.l.b16 %v2025
    %v2161 = vunpack.c.l.b16 %v2026
    %v2162 = vunpack.c.l.b16 %v2027
    %v2163 = vunpack.c.l.b16 %v2028
    %v2164 = vunpack.c.l.b16 %v2029
    %v2165 = vunpack.c.l.b16 %v2030
    %v2166 = vunpack.c.l.b16 %v2031
    %v2167 = vunpack.c.l.b16 %v2032
    %v2168 = vunpack.c.l.b16 %v2033
    %v2169 = vunpack.c.l.b16 %v2034
    %v2170 = vunpack.c.l.b16 %v2035
    %v2171 = vunpack.c.l.b16 %v2036
    %v2172 = vunpack.c.l.b16 %v2037
    %v2173 = vunpack.c.l.b16 %v2038
    %v2174 = vunpack.c.l.b16 %v2039
    %v2175 = vunpack.c.l.b16 %v2040
    %v2176 = vunpack.c.l.b16 %v2041
    %v2177 = vunpack.c.l.b16 %v2042
    %v2178 = vunpack.c.l.b16 %v2043
    %v2179 = vunpack.c.l.b16 %v2044
    %v2180 = vunpack.c.l.b16 %v2045
    %v2181 = vunpack.c.l.b16 %v2046
    %v2182 = vunpack.c.l.b16 %v2047
    %v2183 = vunpack.c.l.b16 %v2048
    %v2184 = vunpack.c.l.b16 %v2049
    %v2185 = vunpack.c.l.b16 %v2050
    %v2186 = vunpack.c.l.b16 %v2051
    %v2187 = vunpack.c.l.b16 %v2052
    %v2188 = vunpack.c.l.b16 %v2053
    %v2189 = vunpack.c.l.b16 %v2054
    %v2190 = vunpack.c.l.b16 %v2055
    %v2191 = vunpack.c.l.b16 %v2056
    %v2192 = vunpack.c.l.b16 %v2057
    %v2193 = vpack.c.b16 %v2130, %v2129
    %v2194 = vpack.c.b16 %v2132, %v2131
    %v2195 = vpack.c.b16 %v2134, %v2133
    %v2196 = vpack.c.b16 %v2136, %v2135
    %v2197 = vpack.c.b16 %v2138, %v2137
    %v2198 = vpack.c.b16 %v2140, %v2139
    %v2199 = vpack.c.b16 %v2142, %v2141
    %v2200 = vpack.c.b16 %v2144, %v2143
    %v2201 = vpack.c.b16 %v2146, %v2145
    %v2202 = vpack.c.b16 %v2148, %v2147
    %v2203 = vpack.c.b16 %v2150, %v2149
    %v2204 = vpack.c.b16 %v2152, %v2151
    %v2205 = vpack.c.b16 %v2154, %v2153
    %v2206 = vpack.c.b16 %v2156, %v2155
    %v2207 = vpack.c.b16 %v2158, %v2157
    %v2208 = vpack.c.b16 %v2160, %v2159
    %v2209 = vpack.c.b16 %v2162, %v2161
    %v2210 = vpack.c.b16 %v2164, %v2163
    %v2211 = vpack.c.b16 %v2166, %v2165
    %v2212 = vpack.c.b16 %v2168, %v2167
    %v2213 = vpack.c.b16 %v2170, %v2169
    %v2214 = vpack.c.b16 %v2172, %v2171
    %v2215 = vpack.c.b16 %v2174, %v2173
    %v2216 = vpack.c.b16 %v2176, %v2175
    %v2217 = vpack.c.b16 %v2178, %v2177
    %v2218 = vpack.c.b16 %v2180, %v2179
    %v2219 = vpack.c.b16 %v2182, %v2181
    %v2220 = vpack.c.b16 %v2184, %v2183
    %v2221 = vpack.c.b16 %v2186, %v2185
    %v2222 = vpack.c.b16 %v2188, %v2187
    %v2223 = vpack.c.b16 %v2190, %v2189
    %v2224 = vpack.c.b16 %v2192, %v2191
    %2257 = vmatprep.subr.bf16.mxu0 0
    %2258 = vmatpush1.bf16.msra.mxu0 %v2193
    %2259 = vmatprep.subr.bf16.mxu0 0
    %2260 = vmatpush1.bf16.msra.mxu0 %v2194
    %2261 = vmatprep.subr.bf16.mxu0 0
    %2262 = vmatpush1.bf16.msra.mxu0 %v2195
    %2263 = vmatprep.subr.bf16.mxu0 0
    %2264 = vmatpush1.bf16.msra.mxu0 %v2196
    %2265 = vmatprep.subr.bf16.mxu0 0
    %2266 = vmatpush1.bf16.msra.mxu0 %v2197
    %2267 = vmatprep.subr.bf16.mxu0 0
    %2268 = vmatpush1.bf16.msra.mxu0 %v2198
    %2269 = vmatprep.subr.bf16.mxu0 0
    %2270 = vmatpush1.bf16.msra.mxu0 %v2199
    %2271 = vmatprep.subr.bf16.mxu0 0
    %2272 = vmatpush1.bf16.msra.mxu0 %v2200
    %2273 = vmatprep.subr.bf16.mxu0 0
    %2274 = vmatpush1.bf16.msra.mxu0 %v2201
    %2275 = vmatprep.subr.bf16.mxu0 0
    %2276 = vmatpush1.bf16.msra.mxu0 %v2202
    %2277 = vmatprep.subr.bf16.mxu0 0
    %2278 = vmatpush1.bf16.msra.mxu0 %v2203
    %2279 = vmatprep.subr.bf16.mxu0 0
    %2280 = vmatpush1.bf16.msra.mxu0 %v2204
    %2281 = vmatprep.subr.bf16.mxu0 0
    %2282 = vmatpush1.bf16.msra.mxu0 %v2205
    %2283 = vmatprep.subr.bf16.mxu0 0
    %2284 = vmatpush1.bf16.msra.mxu0 %v2206
    %2285 = vmatprep.subr.bf16.mxu0 0
    %2286 = vmatpush1.bf16.msra.mxu0 %v2207
    %2287 = vmatprep.subr.bf16.mxu0 0
    %2288 = vmatpush1.bf16.msra.mxu0 %v2208
    %2289 = vmatprep.mubr.bf16.mxu0 %v1991
    %2290 = vmatmul.mubr.bf16.gmra.mrb[0].mxu0 %v1990
    %v2291 = vpop.f32.mrb[0].mxu0
    %v2292 = vadd.f32 %v2063, %v2291
    %v2293 = vpop.f32.mrb[0].mxu0
    %v2294 = vpop.f32.mrb[0].mxu0
    %v2295 = vadd.f32 %v2063, %v2294
    %v2296 = vpop.f32.mrb[0].mxu0
    %2297 = vdwg.mxu0
    %2298 = vmatprep.subr.bf16.mxu0 0
    %2299 = vmatpush1.bf16.msra.mxu0 %v2209
    %2300 = vmatprep.subr.bf16.mxu0 0
    %2301 = vmatpush1.bf16.msra.mxu0 %v2210
    %2302 = vmatprep.subr.bf16.mxu0 0
    %2303 = vmatpush1.bf16.msra.mxu0 %v2211
    %2304 = vmatprep.subr.bf16.mxu0 0
    %2305 = vmatpush1.bf16.msra.mxu0 %v2212
    %2306 = vmatprep.subr.bf16.mxu0 0
    %2307 = vmatpush1.bf16.msra.mxu0 %v2213
    %2308 = vmatprep.subr.bf16.mxu0 0
    %2309 = vmatpush1.bf16.msra.mxu0 %v2214
    %2310 = vmatprep.subr.bf16.mxu0 0
    %2311 = vmatpush1.bf16.msra.mxu0 %v2215
    %2312 = vmatprep.subr.bf16.mxu0 0
    %2313 = vmatpush1.bf16.msra.mxu0 %v2216
    %2314 = vmatprep.subr.bf16.mxu0 0
    %2315 = vmatpush1.bf16.msra.mxu0 %v2217
    %2316 = vmatprep.subr.bf16.mxu0 0
    %2317 = vmatpush1.bf16.msra.mxu0 %v2218
    %2318 = vmatprep.subr.bf16.mxu0 0
    %2319 = vmatpush1.bf16.msra.mxu0 %v2219
    %2320 = vmatprep.subr.bf16.mxu0 0
    %2321 = vmatpush1.bf16.msra.mxu0 %v2220
    %2322 = vmatprep.subr.bf16.mxu0 0
    %2323 = vmatpush1.bf16.msra.mxu0 %v2221
    %2324 = vmatprep.subr.bf16.mxu0 0
    %2325 = vmatpush1.bf16.msra.mxu0 %v2222
    %2326 = vmatprep.subr.bf16.mxu0 0
    %2327 = vmatpush1.bf16.msra.mxu0 %v2223
    %2328 = vmatprep.subr.bf16.mxu0 0
    %2329 = vmatpush1.bf16.msra.mxu0 %v2224
    %2330 = vmatprep.mubr.bf16.mxu0 %v1993
    %2331 = vmatmul.mubr.bf16.gmra.mrb[0].mxu0 %v1992
    %v2332 = vpop.f32.mrb[0].mxu0
    %v2333 = vadd.f32 %v2292, %v2332
    %v2334 = vpop.f32.mrb[0].mxu0
    %v2335 = vpop.f32.mrb[0].mxu0
    %v2336 = vadd.f32 %v2295, %v2335
    %v2337 = vpop.f32.mrb[0].mxu0
    %2338 = vdwg.mxu0
    %2339 = vst [vmem:[#allocation16] sm:$0xff] %v2333
    %2340 = vst [vmem:[#allocation16 + $0x8] sm:$0xff] %v2336
    // Predicated region
    $region90: #{tpu_custom_call.1} parent=1 // pred_check
      _
    $region91: #{tpu_custom_call.1} parent=1 // pred_check_branch
      %2342 = sbr.rel (0) target = $region93
    $region92: #{tpu_custom_call.1} parent=1 // pred_region
      %s2344 = ssub.s32 256, 256
      %2345 = vsyncadd [#allocation4], %s2344
      %s2346 = sshll.u32 [#allocation16], 4
      %s2347 = int_to_ptr.vmem [resolvable:$true] %s2346
      %2352 = dma.vmem_to_hbm [thread:$0]  %s2347, 256, %s14, [#allocation4], 128, 128, 8
    $region93: #{tpu_custom_call.1} parent=1 // pred_fallthru
      _
    // Predicated region
    $region94: #{tpu_custom_call.1} parent=1 // pred_check
      _
    $region95: #{tpu_custom_call.1} parent=1 // pred_check_branch
      %2354 = sbr.rel (0) target = $region97
    $region96: #{tpu_custom_call.1} parent=1 // pred_region
      %2355 = dma.done [#allocation4], 256
    $region97: #{tpu_custom_call.1} parent=1 // pred_fallthru
      _
    %2356 = vsyncpa [#allocation3], 1
    %2357 = vsyncpa [#allocation6], 1
    %2358 = vsyncpa [#allocation9], 1
    %2359 = vsyncpa [#allocation12], 1
    %2360 = vsyncpa [#allocation15], 1
    %2361 = vsyncpa [#allocation4], 1

</llo_original>
